<compile_context>
chip_gen: v7x
topology: tpu7x:2x2x1
jax: 0.10.0
libtpu: 0.0.40
codegen_flags: <defaults>
</compile_context>

<pallas_src>
import functools
import math

import jax
import jax.numpy as jnp
from jax.experimental import pallas as pl
from jax.experimental.pallas import tpu as pltpu


# ----------------------------- kernel helpers -----------------------------

def _layernorm(x, w, b, eps=1e-5):
    mean = jnp.mean(x, axis=-1, keepdims=True)
    xc = x - mean
    var = jnp.mean(xc * xc, axis=-1, keepdims=True)
    inv = jax.lax.rsqrt(var + eps)
    return xc * inv * w + b


# ----------------------------- fused Pallas kernel -------------------------

def _fused_forward_kernel(
    # layer-independent inputs (constant block index -> fetched once)
    x_ref, pe_ref, emb_w_ref, emb_b_ref,
    rev_w_ref, rev_b_ref, dec_wt_ref, dec_sel_ref, dec_b_ref,
    # stacked per-layer weights (block index = layer -> auto double-buffered)
    wq_ref, bq_ref, wk_ref, bk_ref, wv_ref, bv_ref, wo_ref, bo_ref,
    ln1w_ref, ln1b_ref, w1_ref, b1_ref, w2_ref, b2_ref, ln2w_ref, ln2b_ref,
    # output + VMEM-resident hidden state
    o_ref, h_scr,
    *, batch, seq, nhead):
    l = pl.program_id(0)
    n_layers = pl.num_programs(0)
    d_model = h_scr.shape[-1]
    dh = d_model // nhead
    scale = 1.0 / math.sqrt(dh)

    # ---- embedding + positional encoding (first grid step only) ----
    @pl.when(l == 0)
    def _embed():
        emb = x_ref[...] * emb_w_ref[...] + emb_b_ref[...]           # (B*S, D)
        emb3 = emb.reshape(batch, seq, d_model) + pe_ref[...][None, :, :]
        h_scr[...] = emb3.reshape(batch * seq, d_model)

    # ---- encoder layer l (post-LN, ReLU FFN, eval mode) ----
    x2 = h_scr[...]                                                  # (B*S, D)

    q = (jnp.dot(x2, wq_ref[...], preferred_element_type=jnp.float32)
         + bq_ref[...]) * scale
    k = jnp.dot(x2, wk_ref[...], preferred_element_type=jnp.float32) + bk_ref[...]
    v = jnp.dot(x2, wv_ref[...], preferred_element_type=jnp.float32) + bv_ref[...]

    head_outs = []
    for hd in range(nhead):                       # tiny fixed loop: O(nhead) trace
        cols = slice(hd * dh, (hd + 1) * dh)
        qh = q[:, cols].reshape(batch, seq, dh)
        kh = k[:, cols].reshape(batch, seq, dh)
        vh = v[:, cols].reshape(batch, seq, dh)
        s = jnp.einsum('bqd,bkd->bqk', qh, kh,
                       preferred_element_type=jnp.float32)           # (B, S, S)
        s = s - jnp.max(s, axis=-1, keepdims=True)
        p = jnp.exp(s)
        denom = jnp.sum(p, axis=-1, keepdims=True)
        oh = jnp.einsum('bqk,bkd->bqd', p, vh,
                        preferred_element_type=jnp.float32)          # (B, S, dh)
        oh = oh * pl.reciprocal(denom, approx=True)
        head_outs.append(oh.reshape(batch * seq, dh))
    attn = jnp.concatenate(head_outs, axis=-1)                       # (B*S, D)
    attn = jnp.dot(attn, wo_ref[...],
                   preferred_element_type=jnp.float32) + bo_ref[...]

    y = _layernorm(x2 + attn, ln1w_ref[...], ln1b_ref[...])

    h1 = jnp.dot(y, w1_ref[...], preferred_element_type=jnp.float32) + b1_ref[...]
    h1 = jnp.maximum(h1, 0.0)
    ff = jnp.dot(h1, w2_ref[...], preferred_element_type=jnp.float32) + b2_ref[...]

    y2 = _layernorm(y + ff, ln2w_ref[...], ln2b_ref[...])
    h_scr[...] = y2

    # ---- fused tail (last grid step): reverse-embedding + decoder ----
    @pl.when(l == n_layers - 1)
    def _tail():
        # reverse_embedding: Linear(D, 1)
        din = jnp.sum(y2 * rev_w_ref[...], axis=-1, keepdims=True) + rev_b_ref[...]
        # decoder Linear(S, horizon) on the per-batch sequence, done with 2-D ops
        # only: elementwise-weight then a batch-sum selector matmul.
        tmp = din * dec_wt_ref[...]                                  # (B*S, horizon)
        o_ref[...] = (jnp.dot(dec_sel_ref[...], tmp,
                              preferred_element_type=jnp.float32)
                      + dec_b_ref[...])                              # (B, horizon)


# ----------------------------- wrappers ------------------------------------

def make_positional_encoding(seq_len, d_model):
    position = jnp.arange(seq_len, dtype=jnp.float32)[:, None]
    div_term = jnp.exp(jnp.arange(0, d_model, 2, dtype=jnp.float32)
                       * (-math.log(10000.0) / d_model))
    ang = position * div_term
    pe = jnp.zeros((seq_len, d_model), jnp.float32)
    pe = pe.at[:, 0::2].set(jnp.sin(ang))
    pe = pe.at[:, 1::2].set(jnp.cos(ang))
    return pe


def init_params(key, d_model, nhead, num_layers, dim_ff, history_length, horizon):
    s = 0.02
    ks = jax.random.split(key, 18)
    nrm = lambda k, shape: jax.random.normal(k, shape, jnp.float32) * s
    L, D, FF = num_layers, d_model, dim_ff
    return {
        # embedding Linear(1, D): stored as (1, D) = W^T
        "emb_w": nrm(ks[0], (1, D)), "emb_b": nrm(ks[1], (1, D)),
        # reverse_embedding Linear(D, 1)
        "rev_w": nrm(ks[2], (1, D)), "rev_b": nrm(ks[3], (1, 1)),
        # decoder Linear(history_length, horizon): stored (in, out) lane-dense
        "dec_w": nrm(ks[4], (history_length, horizon)),
        "dec_b": nrm(ks[5], (1, horizon)),
        # stacked per-layer weights, all (in, out) layout
        "wq": nrm(ks[6], (L, D, D)),  "bq": nrm(ks[7], (L, 1, D)),
        "wk": nrm(ks[8], (L, D, D)),  "bk": nrm(ks[9], (L, 1, D)),
        "wv": nrm(ks[10], (L, D, D)), "bv": nrm(ks[11], (L, 1, D)),
        "wo": nrm(ks[12], (L, D, D)), "bo": nrm(ks[13], (L, 1, D)),
        "ln1w": jnp.ones((L, 1, D), jnp.float32),
        "ln1b": jnp.zeros((L, 1, D), jnp.float32),
        "w1": nrm(ks[14], (L, D, FF)), "b1": nrm(ks[15], (L, 1, FF)),
        "w2": nrm(ks[16], (L, FF, D)), "b2": nrm(ks[17], (L, 1, D)),
        "ln2w": jnp.ones((L, 1, D), jnp.float32),
        "ln2b": jnp.zeros((L, 1, D), jnp.float32),
    }


def ts_transformer_forward(x, params, *, nhead):
    """x: (B, S, 1) float32  ->  (B, horizon) float32"""
    B, S, nvar = x.shape
    assert nvar == 1
    D = params["emb_w"].shape[-1]
    L = params["wq"].shape[0]
    FF = params["w1"].shape[-1]
    H = params["dec_b"].shape[-1]
    assert D % nhead == 0
    assert params["dec_w"].shape == (S, H)

    x2d = x.reshape(B * S, 1)
    pe = make_positional_encoding(S, D)                                 # (S, D)
    # tiny tail helpers (a few hundred bytes), computed once in the wrapper
    dec_w_tiled = jnp.tile(params["dec_w"], (B, 1))                     # (B*S, H)
    dec_sel = jnp.repeat(jnp.eye(B, dtype=jnp.float32), S, axis=1)      # (B, B*S)

    def _full(shape):
        zeros = (0,) * len(shape)
        return pl.BlockSpec(shape, lambda l: zeros)

    def _per_layer(shape):
        zeros = (0,) * len(shape)
        return pl.BlockSpec((None,) + shape, lambda l: (l,) + zeros)

    grid_spec = pltpu.PrefetchScalarGridSpec(
        num_scalar_prefetch=0,
        grid=(L,),
        in_specs=[
            _full((B * S, 1)),      # x
            _full((S, D)),          # pe
            _full((1, D)),          # emb_w
            _full((1, D)),          # emb_b
            _full((1, D)),          # rev_w
            _full((1, 1)),          # rev_b
            _full((B * S, H)),      # dec_w tiled over batch
            _full((B, B * S)),      # batch-sum selector
            _full((1, H)),          # dec_b
            _per_layer((D, D)), _per_layer((1, D)),     # wq, bq
            _per_layer((D, D)), _per_layer((1, D)),     # wk, bk
            _per_layer((D, D)), _per_layer((1, D)),     # wv, bv
            _per_layer((D, D)), _per_layer((1, D)),     # wo, bo
            _per_layer((1, D)), _per_layer((1, D)),     # ln1w, ln1b
            _per_layer((D, FF)), _per_layer((1, FF)),   # w1, b1
            _per_layer((FF, D)), _per_layer((1, D)),    # w2, b2
            _per_layer((1, D)), _per_layer((1, D)),     # ln2w, ln2b
        ],
        out_specs=pl.BlockSpec((B, H), lambda l: (0, 0)),
        scratch_shapes=[pltpu.VMEM((B * S, D), jnp.float32)],
    )

    kernel = functools.partial(_fused_forward_kernel,
                               batch=B, seq=S, nhead=nhead)
    return pl.pallas_call(
        kernel,
        out_shape=jax.ShapeDtypeStruct((B, H), jnp.float32),
        grid_spec=grid_spec,
        compiler_params=pltpu.CompilerParams(
            dimension_semantics=("arbitrary",),
            vmem_limit_bytes=32 * 1024 * 1024,
        ),
    )(x2d, pe, params["emb_w"], params["emb_b"],
      params["rev_w"], params["rev_b"], dec_w_tiled, dec_sel, params["dec_b"],
      params["wq"], params["bq"], params["wk"], params["bk"],
      params["wv"], params["bv"], params["wo"], params["bo"],
      params["ln1w"], params["ln1b"], params["w1"], params["b1"],
      params["w2"], params["b2"], params["ln2w"], params["ln2b"])


# ----------------------------- main ----------------------------------------

if __name__ == "__main__":
    B = 2
    HISTORY_LENGTH = 8          # seq_len
    HORIZON = 4
    D_MODEL = 32
    NHEAD = 4
    NUM_LAYERS = 2
    DIM_FF = 2048               # PyTorch nn.TransformerEncoderLayer default

    key = jax.random.PRNGKey(0)
    k_x, k_p = jax.random.split(key)

    x = jax.random.normal(k_x, (B, HISTORY_LENGTH, 1), jnp.float32)
    params = init_params(k_p, D_MODEL, NHEAD, NUM_LAYERS, DIM_FF,
                         HISTORY_LENGTH, HORIZON)

    fwd = jax.jit(functools.partial(ts_transformer_forward, nhead=NHEAD))
    out = fwd(x, params)
    out = jax.block_until_ready(out)
    assert out.shape == (B, HORIZON), out.shape
    assert bool(jnp.all(jnp.isfinite(out)))
    print("KERNEL_OK")
</pallas_src>

<mosaic_0001>
module attributes {stable_mosaic.version = 11 : i64} {
  func.func @_fused_forward_kernel(%arg0: i32, %arg1: memref<16x1xf32, #tpu.memory_space<vmem>>, %arg2: memref<8x32xf32, #tpu.memory_space<vmem>>, %arg3: memref<1x32xf32, #tpu.memory_space<vmem>>, %arg4: memref<1x32xf32, #tpu.memory_space<vmem>>, %arg5: memref<1x32xf32, #tpu.memory_space<vmem>>, %arg6: memref<1x1xf32, #tpu.memory_space<vmem>>, %arg7: memref<16x4xf32, #tpu.memory_space<vmem>>, %arg8: memref<2x16xf32, #tpu.memory_space<vmem>>, %arg9: memref<1x4xf32, #tpu.memory_space<vmem>>, %arg10: memref<1x32x32xf32, #tpu.memory_space<vmem>>, %arg11: memref<1x1x32xf32, #tpu.memory_space<vmem>>, %arg12: memref<1x32x32xf32, #tpu.memory_space<vmem>>, %arg13: memref<1x1x32xf32, #tpu.memory_space<vmem>>, %arg14: memref<1x32x32xf32, #tpu.memory_space<vmem>>, %arg15: memref<1x1x32xf32, #tpu.memory_space<vmem>>, %arg16: memref<1x32x32xf32, #tpu.memory_space<vmem>>, %arg17: memref<1x1x32xf32, #tpu.memory_space<vmem>>, %arg18: memref<1x1x32xf32, #tpu.memory_space<vmem>>, %arg19: memref<1x1x32xf32, #tpu.memory_space<vmem>>, %arg20: memref<1x32x2048xf32, #tpu.memory_space<vmem>>, %arg21: memref<1x1x2048xf32, #tpu.memory_space<vmem>>, %arg22: memref<1x2048x32xf32, #tpu.memory_space<vmem>>, %arg23: memref<1x1x32xf32, #tpu.memory_space<vmem>>, %arg24: memref<1x1x32xf32, #tpu.memory_space<vmem>>, %arg25: memref<1x1x32xf32, #tpu.memory_space<vmem>>, %arg26: memref<2x4xf32, #tpu.memory_space<vmem>>, %arg27: memref<16x32xf32, #tpu.memory_space<vmem>>) attributes {dimension_semantics = [#tpu.dimension_semantics<arbitrary>], iteration_bounds = array<i64: 2>, scalar_prefetch = 0 : i64, scratch_operands = 1 : i64, tpu.core_type = #tpu.core_type<tc>, window_params = [{pipeline_mode = #tpu.pipeline_mode<synchronous>, transform_indices = @transform_0, window_bounds = array<i64: 16, 1>}, {pipeline_mode = #tpu.pipeline_mode<synchronous>, transform_indices = @transform_1, window_bounds = array<i64: 8, 32>}, {pipeline_mode = #tpu.pipeline_mode<synchronous>, transform_indices = @transform_2, window_bounds = array<i64: 1, 32>}, {pipeline_mode = #tpu.pipeline_mode<synchronous>, transform_indices = @transform_3, window_bounds = array<i64: 1, 32>}, {pipeline_mode = #tpu.pipeline_mode<synchronous>, transform_indices = @transform_4, window_bounds = array<i64: 1, 32>}, {pipeline_mode = #tpu.pipeline_mode<synchronous>, transform_indices = @transform_5, window_bounds = array<i64: 1, 1>}, {pipeline_mode = #tpu.pipeline_mode<synchronous>, transform_indices = @transform_6, window_bounds = array<i64: 16, 4>}, {pipeline_mode = #tpu.pipeline_mode<synchronous>, transform_indices = @transform_7, window_bounds = array<i64: 2, 16>}, {pipeline_mode = #tpu.pipeline_mode<synchronous>, transform_indices = @transform_8, window_bounds = array<i64: 1, 4>}, {transform_indices = @transform_9, window_bounds = array<i64: 1, 32, 32>}, {transform_indices = @transform_10, window_bounds = array<i64: 1, 1, 32>}, {transform_indices = @transform_11, window_bounds = array<i64: 1, 32, 32>}, {transform_indices = @transform_12, window_bounds = array<i64: 1, 1, 32>}, {transform_indices = @transform_13, window_bounds = array<i64: 1, 32, 32>}, {transform_indices = @transform_14, window_bounds = array<i64: 1, 1, 32>}, {transform_indices = @transform_15, window_bounds = array<i64: 1, 32, 32>}, {transform_indices = @transform_16, window_bounds = array<i64: 1, 1, 32>}, {transform_indices = @transform_17, window_bounds = array<i64: 1, 1, 32>}, {transform_indices = @transform_18, window_bounds = array<i64: 1, 1, 32>}, {transform_indices = @transform_19, window_bounds = array<i64: 1, 32, 2048>}, {transform_indices = @transform_20, window_bounds = array<i64: 1, 1, 2048>}, {transform_indices = @transform_21, window_bounds = array<i64: 1, 2048, 32>}, {transform_indices = @transform_22, window_bounds = array<i64: 1, 1, 32>}, {transform_indices = @transform_23, window_bounds = array<i64: 1, 1, 32>}, {transform_indices = @transform_24, window_bounds = array<i64: 1, 1, 32>}, {pipeline_mode = #tpu.pipeline_mode<synchronous>, transform_indices = @transform_25, window_bounds = array<i64: 2, 4>}]} {
    %c0_i32 = arith.constant 0 : i32
    %0 = arith.cmpi eq, %arg0, %c0_i32 : i32
    %1 = arith.extui %0 : i1 to i32
    %c0_i32_0 = arith.constant 0 : i32
    %2 = arith.cmpi ne, %1, %c0_i32_0 : i32
    scf.if %2 {
      %c0_86 = arith.constant 0 : index
      %c0_87 = arith.constant 0 : index
      %181 = vector.load %arg1[%c0_86, %c0_87] : memref<16x1xf32, #tpu.memory_space<vmem>>, vector<16x1xf32>
      %c0_88 = arith.constant 0 : index
      %c0_89 = arith.constant 0 : index
      %182 = vector.load %arg3[%c0_88, %c0_89] : memref<1x32xf32, #tpu.memory_space<vmem>>, vector<1x32xf32>
      %183 = vector.broadcast %181 : vector<16x1xf32> to vector<16x32xf32>
      %184 = vector.broadcast %182 : vector<1x32xf32> to vector<16x32xf32>
      %185 = arith.mulf %183, %184 : vector<16x32xf32>
      %c0_90 = arith.constant 0 : index
      %c0_91 = arith.constant 0 : index
      %186 = vector.load %arg4[%c0_90, %c0_91] : memref<1x32xf32, #tpu.memory_space<vmem>>, vector<1x32xf32>
      %187 = vector.broadcast %186 : vector<1x32xf32> to vector<16x32xf32>
      %188 = arith.addf %185, %187 : vector<16x32xf32>
      %189 = vector.shape_cast %188 : vector<16x32xf32> to vector<2x8x32xf32>
      %c0_92 = arith.constant 0 : index
      %c0_93 = arith.constant 0 : index
      %190 = vector.load %arg2[%c0_92, %c0_93] : memref<8x32xf32, #tpu.memory_space<vmem>>, vector<8x32xf32>
      %191 = vector.shape_cast %190 : vector<8x32xf32> to vector<1x8x32xf32>
      %192 = vector.broadcast %191 : vector<1x8x32xf32> to vector<2x8x32xf32>
      %193 = arith.addf %189, %192 : vector<2x8x32xf32>
      %194 = vector.shape_cast %193 : vector<2x8x32xf32> to vector<16x32xf32>
      %c0_94 = arith.constant 0 : index
      %c0_95 = arith.constant 0 : index
      %195 = vector.load %arg27[%c0_94, %c0_95] : memref<16x32xf32, #tpu.memory_space<vmem>>, vector<16x32xf32>
      tpu.vector_store %arg27[%c0_94, %c0_95], %194 {strides = array<i32>} : memref<16x32xf32, #tpu.memory_space<vmem>>, vector<16x32xf32>,
    } else {
    }
    %c0 = arith.constant 0 : index
    %c0_1 = arith.constant 0 : index
    %3 = vector.load %arg27[%c0, %c0_1] : memref<16x32xf32, #tpu.memory_space<vmem>>, vector<16x32xf32>
    %c0_2 = arith.constant 0 : index
    %c0_3 = arith.constant 0 : index
    %c0_4 = arith.constant 0 : index
    %4 = vector.load %arg10[%c0_2, %c0_3, %c0_4] : memref<1x32x32xf32, #tpu.memory_space<vmem>>, vector<1x32x32xf32>
    %5 = vector.shape_cast %4 : vector<1x32x32xf32> to vector<32x32xf32>
    %cst = arith.constant dense<0.000000e+00> : vector<16x32xf32>
    %6 = tpu.matmul %3, %5, %cst {dimension_numbers = #tpu.dot_dimension_numbers<[1], [0], [0], [1], [0, 0, 1, 1], [], []>} : vector<16x32xf32>, vector<32x32xf32>, vector<16x32xf32> -> vector<16x32xf32>
    %c0_5 = arith.constant 0 : index
    %c0_6 = arith.constant 0 : index
    %c0_7 = arith.constant 0 : index
    %7 = vector.load %arg11[%c0_5, %c0_6, %c0_7] : memref<1x1x32xf32, #tpu.memory_space<vmem>>, vector<1x1x32xf32>
    %8 = vector.shape_cast %7 : vector<1x1x32xf32> to vector<1x32xf32>
    %9 = vector.broadcast %8 : vector<1x32xf32> to vector<16x32xf32>
    %10 = arith.addf %6, %9 : vector<16x32xf32>
    %cst_8 = arith.constant 0.353553385 : f32
    %11 = vector.broadcast %cst_8 : f32 to vector<16x32xf32>
    %12 = arith.mulf %10, %11 : vector<16x32xf32>
    %c0_9 = arith.constant 0 : index
    %c0_10 = arith.constant 0 : index
    %c0_11 = arith.constant 0 : index
    %13 = vector.load %arg12[%c0_9, %c0_10, %c0_11] : memref<1x32x32xf32, #tpu.memory_space<vmem>>, vector<1x32x32xf32>
    %14 = vector.shape_cast %13 : vector<1x32x32xf32> to vector<32x32xf32>
    %cst_12 = arith.constant dense<0.000000e+00> : vector<16x32xf32>
    %15 = tpu.matmul %3, %14, %cst_12 {dimension_numbers = #tpu.dot_dimension_numbers<[1], [0], [0], [1], [0, 0, 1, 1], [], []>} : vector<16x32xf32>, vector<32x32xf32>, vector<16x32xf32> -> vector<16x32xf32>
    %c0_13 = arith.constant 0 : index
    %c0_14 = arith.constant 0 : index
    %c0_15 = arith.constant 0 : index
    %16 = vector.load %arg13[%c0_13, %c0_14, %c0_15] : memref<1x1x32xf32, #tpu.memory_space<vmem>>, vector<1x1x32xf32>
    %17 = vector.shape_cast %16 : vector<1x1x32xf32> to vector<1x32xf32>
    %18 = vector.broadcast %17 : vector<1x32xf32> to vector<16x32xf32>
    %19 = arith.addf %15, %18 : vector<16x32xf32>
    %c0_16 = arith.constant 0 : index
    %c0_17 = arith.constant 0 : index
    %c0_18 = arith.constant 0 : index
    %20 = vector.load %arg14[%c0_16, %c0_17, %c0_18] : memref<1x32x32xf32, #tpu.memory_space<vmem>>, vector<1x32x32xf32>
    %21 = vector.shape_cast %20 : vector<1x32x32xf32> to vector<32x32xf32>
    %cst_19 = arith.constant dense<0.000000e+00> : vector<16x32xf32>
    %22 = tpu.matmul %3, %21, %cst_19 {dimension_numbers = #tpu.dot_dimension_numbers<[1], [0], [0], [1], [0, 0, 1, 1], [], []>} : vector<16x32xf32>, vector<32x32xf32>, vector<16x32xf32> -> vector<16x32xf32>
    %c0_20 = arith.constant 0 : index
    %c0_21 = arith.constant 0 : index
    %c0_22 = arith.constant 0 : index
    %23 = vector.load %arg15[%c0_20, %c0_21, %c0_22] : memref<1x1x32xf32, #tpu.memory_space<vmem>>, vector<1x1x32xf32>
    %24 = vector.shape_cast %23 : vector<1x1x32xf32> to vector<1x32xf32>
    %25 = vector.broadcast %24 : vector<1x32xf32> to vector<16x32xf32>
    %26 = arith.addf %22, %25 : vector<16x32xf32>
    %27 = vector.extract_strided_slice %12 {offsets = [0, 0], sizes = [16, 8], strides = [1, 1]} : vector<16x32xf32> to vector<16x8xf32>
    %28 = vector.shape_cast %27 : vector<16x8xf32> to vector<2x8x8xf32>
    %29 = vector.extract_strided_slice %19 {offsets = [0, 0], sizes = [16, 8], strides = [1, 1]} : vector<16x32xf32> to vector<16x8xf32>
    %30 = vector.shape_cast %29 : vector<16x8xf32> to vector<2x8x8xf32>
    %31 = vector.extract_strided_slice %26 {offsets = [0, 0], sizes = [16, 8], strides = [1, 1]} : vector<16x32xf32> to vector<16x8xf32>
    %32 = vector.shape_cast %31 : vector<16x8xf32> to vector<2x8x8xf32>
    "tpu.trace_start"() <{level = 10 : i32, message = "bqd,bkd->bqk"}> : () -> ()
    %cst_23 = arith.constant dense<0.000000e+00> : vector<2x8x8xf32>
    %33 = tpu.matmul %28, %30, %cst_23 {dimension_numbers = #tpu.dot_dimension_numbers<[2], [2], [1], [1], [0, 0, 0, 1, 1, 1], [0], [0]>} : vector<2x8x8xf32>, vector<2x8x8xf32>, vector<2x8x8xf32> -> vector<2x8x8xf32>
    "tpu.trace_stop"() : () -> ()
    %cst_24 = arith.constant dense<0xFF800000> : vector<2x8xf32>
    %34 = vector.multi_reduction <maximumf>, %33, %cst_24 [2] : vector<2x8x8xf32> to vector<2x8xf32>
    %35 = vector.shape_cast %34 : vector<2x8xf32> to vector<2x8x1xf32>
    %36 = vector.broadcast %35 : vector<2x8x1xf32> to vector<2x8x8xf32>
    %37 = arith.subf %33, %36 : vector<2x8x8xf32>
    %38 = math.exp %37 : vector<2x8x8xf32>
    %cst_25 = arith.constant dense<0.000000e+00> : vector<2x8xf32>
    %39 = vector.multi_reduction <add>, %38, %cst_25 [2] : vector<2x8x8xf32> to vector<2x8xf32>
    %40 = vector.shape_cast %39 : vector<2x8xf32> to vector<2x8x1xf32>
    "tpu.trace_start"() <{level = 10 : i32, message = "bqk,bkd->bqd"}> : () -> ()
    %cst_26 = arith.constant dense<0.000000e+00> : vector<2x8x8xf32>
    %41 = tpu.matmul %38, %32, %cst_26 {dimension_numbers = #tpu.dot_dimension_numbers<[2], [1], [1], [2], [0, 0, 0, 1, 1, 2], [0], [0]>} : vector<2x8x8xf32>, vector<2x8x8xf32>, vector<2x8x8xf32> -> vector<2x8x8xf32>
    "tpu.trace_stop"() : () -> ()
    %42 = tpu.reciprocal %40 {approx = true} : vector<2x8x1xf32> -> vector<2x8x1xf32>
    %43 = vector.broadcast %42 : vector<2x8x1xf32> to vector<2x8x8xf32>
    %44 = arith.mulf %41, %43 : vector<2x8x8xf32>
    %45 = vector.shape_cast %44 : vector<2x8x8xf32> to vector<16x8xf32>
    %46 = vector.extract_strided_slice %12 {offsets = [0, 8], sizes = [16, 8], strides = [1, 1]} : vector<16x32xf32> to vector<16x8xf32>
    %47 = vector.shape_cast %46 : vector<16x8xf32> to vector<2x8x8xf32>
    %48 = vector.extract_strided_slice %19 {offsets = [0, 8], sizes = [16, 8], strides = [1, 1]} : vector<16x32xf32> to vector<16x8xf32>
    %49 = vector.shape_cast %48 : vector<16x8xf32> to vector<2x8x8xf32>
    %50 = vector.extract_strided_slice %26 {offsets = [0, 8], sizes = [16, 8], strides = [1, 1]} : vector<16x32xf32> to vector<16x8xf32>
    %51 = vector.shape_cast %50 : vector<16x8xf32> to vector<2x8x8xf32>
    "tpu.trace_start"() <{level = 10 : i32, message = "bqd,bkd->bqk"}> : () -> ()
    %cst_27 = arith.constant dense<0.000000e+00> : vector<2x8x8xf32>
    %52 = tpu.matmul %47, %49, %cst_27 {dimension_numbers = #tpu.dot_dimension_numbers<[2], [2], [1], [1], [0, 0, 0, 1, 1, 1], [0], [0]>} : vector<2x8x8xf32>, vector<2x8x8xf32>, vector<2x8x8xf32> -> vector<2x8x8xf32>
    "tpu.trace_stop"() : () -> ()
    %cst_28 = arith.constant dense<0xFF800000> : vector<2x8xf32>
    %53 = vector.multi_reduction <maximumf>, %52, %cst_28 [2] : vector<2x8x8xf32> to vector<2x8xf32>
    %54 = vector.shape_cast %53 : vector<2x8xf32> to vector<2x8x1xf32>
    %55 = vector.broadcast %54 : vector<2x8x1xf32> to vector<2x8x8xf32>
    %56 = arith.subf %52, %55 : vector<2x8x8xf32>
    %57 = math.exp %56 : vector<2x8x8xf32>
    %cst_29 = arith.constant dense<0.000000e+00> : vector<2x8xf32>
    %58 = vector.multi_reduction <add>, %57, %cst_29 [2] : vector<2x8x8xf32> to vector<2x8xf32>
    %59 = vector.shape_cast %58 : vector<2x8xf32> to vector<2x8x1xf32>
    "tpu.trace_start"() <{level = 10 : i32, message = "bqk,bkd->bqd"}> : () -> ()
    %cst_30 = arith.constant dense<0.000000e+00> : vector<2x8x8xf32>
    %60 = tpu.matmul %57, %51, %cst_30 {dimension_numbers = #tpu.dot_dimension_numbers<[2], [1], [1], [2], [0, 0, 0, 1, 1, 2], [0], [0]>} : vector<2x8x8xf32>, vector<2x8x8xf32>, vector<2x8x8xf32> -> vector<2x8x8xf32>
    "tpu.trace_stop"() : () -> ()
    %61 = tpu.reciprocal %59 {approx = true} : vector<2x8x1xf32> -> vector<2x8x1xf32>
    %62 = vector.broadcast %61 : vector<2x8x1xf32> to vector<2x8x8xf32>
    %63 = arith.mulf %60, %62 : vector<2x8x8xf32>
    %64 = vector.shape_cast %63 : vector<2x8x8xf32> to vector<16x8xf32>
    %65 = vector.extract_strided_slice %12 {offsets = [0, 16], sizes = [16, 8], strides = [1, 1]} : vector<16x32xf32> to vector<16x8xf32>
    %66 = vector.shape_cast %65 : vector<16x8xf32> to vector<2x8x8xf32>
    %67 = vector.extract_strided_slice %19 {offsets = [0, 16], sizes = [16, 8], strides = [1, 1]} : vector<16x32xf32> to vector<16x8xf32>
    %68 = vector.shape_cast %67 : vector<16x8xf32> to vector<2x8x8xf32>
    %69 = vector.extract_strided_slice %26 {offsets = [0, 16], sizes = [16, 8], strides = [1, 1]} : vector<16x32xf32> to vector<16x8xf32>
    %70 = vector.shape_cast %69 : vector<16x8xf32> to vector<2x8x8xf32>
    "tpu.trace_start"() <{level = 10 : i32, message = "bqd,bkd->bqk"}> : () -> ()
    %cst_31 = arith.constant dense<0.000000e+00> : vector<2x8x8xf32>
    %71 = tpu.matmul %66, %68, %cst_31 {dimension_numbers = #tpu.dot_dimension_numbers<[2], [2], [1], [1], [0, 0, 0, 1, 1, 1], [0], [0]>} : vector<2x8x8xf32>, vector<2x8x8xf32>, vector<2x8x8xf32> -> vector<2x8x8xf32>
    "tpu.trace_stop"() : () -> ()
    %cst_32 = arith.constant dense<0xFF800000> : vector<2x8xf32>
    %72 = vector.multi_reduction <maximumf>, %71, %cst_32 [2] : vector<2x8x8xf32> to vector<2x8xf32>
    %73 = vector.shape_cast %72 : vector<2x8xf32> to vector<2x8x1xf32>
    %74 = vector.broadcast %73 : vector<2x8x1xf32> to vector<2x8x8xf32>
    %75 = arith.subf %71, %74 : vector<2x8x8xf32>
    %76 = math.exp %75 : vector<2x8x8xf32>
    %cst_33 = arith.constant dense<0.000000e+00> : vector<2x8xf32>
    %77 = vector.multi_reduction <add>, %76, %cst_33 [2] : vector<2x8x8xf32> to vector<2x8xf32>
    %78 = vector.shape_cast %77 : vector<2x8xf32> to vector<2x8x1xf32>
    "tpu.trace_start"() <{level = 10 : i32, message = "bqk,bkd->bqd"}> : () -> ()
    %cst_34 = arith.constant dense<0.000000e+00> : vector<2x8x8xf32>
    %79 = tpu.matmul %76, %70, %cst_34 {dimension_numbers = #tpu.dot_dimension_numbers<[2], [1], [1], [2], [0, 0, 0, 1, 1, 2], [0], [0]>} : vector<2x8x8xf32>, vector<2x8x8xf32>, vector<2x8x8xf32> -> vector<2x8x8xf32>
    "tpu.trace_stop"() : () -> ()
    %80 = tpu.reciprocal %78 {approx = true} : vector<2x8x1xf32> -> vector<2x8x1xf32>
    %81 = vector.broadcast %80 : vector<2x8x1xf32> to vector<2x8x8xf32>
    %82 = arith.mulf %79, %81 : vector<2x8x8xf32>
    %83 = vector.shape_cast %82 : vector<2x8x8xf32> to vector<16x8xf32>
    %84 = vector.extract_strided_slice %12 {offsets = [0, 24], sizes = [16, 8], strides = [1, 1]} : vector<16x32xf32> to vector<16x8xf32>
    %85 = vector.shape_cast %84 : vector<16x8xf32> to vector<2x8x8xf32>
    %86 = vector.extract_strided_slice %19 {offsets = [0, 24], sizes = [16, 8], strides = [1, 1]} : vector<16x32xf32> to vector<16x8xf32>
    %87 = vector.shape_cast %86 : vector<16x8xf32> to vector<2x8x8xf32>
    %88 = vector.extract_strided_slice %26 {offsets = [0, 24], sizes = [16, 8], strides = [1, 1]} : vector<16x32xf32> to vector<16x8xf32>
    %89 = vector.shape_cast %88 : vector<16x8xf32> to vector<2x8x8xf32>
    "tpu.trace_start"() <{level = 10 : i32, message = "bqd,bkd->bqk"}> : () -> ()
    %cst_35 = arith.constant dense<0.000000e+00> : vector<2x8x8xf32>
    %90 = tpu.matmul %85, %87, %cst_35 {dimension_numbers = #tpu.dot_dimension_numbers<[2], [2], [1], [1], [0, 0, 0, 1, 1, 1], [0], [0]>} : vector<2x8x8xf32>, vector<2x8x8xf32>, vector<2x8x8xf32> -> vector<2x8x8xf32>
    "tpu.trace_stop"() : () -> ()
    %cst_36 = arith.constant dense<0xFF800000> : vector<2x8xf32>
    %91 = vector.multi_reduction <maximumf>, %90, %cst_36 [2] : vector<2x8x8xf32> to vector<2x8xf32>
    %92 = vector.shape_cast %91 : vector<2x8xf32> to vector<2x8x1xf32>
    %93 = vector.broadcast %92 : vector<2x8x1xf32> to vector<2x8x8xf32>
    %94 = arith.subf %90, %93 : vector<2x8x8xf32>
    %95 = math.exp %94 : vector<2x8x8xf32>
    %cst_37 = arith.constant dense<0.000000e+00> : vector<2x8xf32>
    %96 = vector.multi_reduction <add>, %95, %cst_37 [2] : vector<2x8x8xf32> to vector<2x8xf32>
    %97 = vector.shape_cast %96 : vector<2x8xf32> to vector<2x8x1xf32>
    "tpu.trace_start"() <{level = 10 : i32, message = "bqk,bkd->bqd"}> : () -> ()
    %cst_38 = arith.constant dense<0.000000e+00> : vector<2x8x8xf32>
    %98 = tpu.matmul %95, %89, %cst_38 {dimension_numbers = #tpu.dot_dimension_numbers<[2], [1], [1], [2], [0, 0, 0, 1, 1, 2], [0], [0]>} : vector<2x8x8xf32>, vector<2x8x8xf32>, vector<2x8x8xf32> -> vector<2x8x8xf32>
    "tpu.trace_stop"() : () -> ()
    %99 = tpu.reciprocal %97 {approx = true} : vector<2x8x1xf32> -> vector<2x8x1xf32>
    %100 = vector.broadcast %99 : vector<2x8x1xf32> to vector<2x8x8xf32>
    %101 = arith.mulf %98, %100 : vector<2x8x8xf32>
    %102 = vector.shape_cast %101 : vector<2x8x8xf32> to vector<16x8xf32>
    %103 = tpu.concatenate %45, %64, %83, %102 in 1 : vector<16x8xf32>, vector<16x8xf32>, vector<16x8xf32>, vector<16x8xf32> -> vector<16x32xf32>
    %c0_39 = arith.constant 0 : index
    %c0_40 = arith.constant 0 : index
    %c0_41 = arith.constant 0 : index
    %104 = vector.load %arg16[%c0_39, %c0_40, %c0_41] : memref<1x32x32xf32, #tpu.memory_space<vmem>>, vector<1x32x32xf32>
    %105 = vector.shape_cast %104 : vector<1x32x32xf32> to vector<32x32xf32>
    %cst_42 = arith.constant dense<0.000000e+00> : vector<16x32xf32>
    %106 = tpu.matmul %103, %105, %cst_42 {dimension_numbers = #tpu.dot_dimension_numbers<[1], [0], [0], [1], [0, 0, 1, 1], [], []>} : vector<16x32xf32>, vector<32x32xf32>, vector<16x32xf32> -> vector<16x32xf32>
    %c0_43 = arith.constant 0 : index
    %c0_44 = arith.constant 0 : index
    %c0_45 = arith.constant 0 : index
    %107 = vector.load %arg17[%c0_43, %c0_44, %c0_45] : memref<1x1x32xf32, #tpu.memory_space<vmem>>, vector<1x1x32xf32>
    %108 = vector.shape_cast %107 : vector<1x1x32xf32> to vector<1x32xf32>
    %109 = vector.broadcast %108 : vector<1x32xf32> to vector<16x32xf32>
    %110 = arith.addf %106, %109 : vector<16x32xf32>
    %111 = arith.addf %3, %110 : vector<16x32xf32>
    %c0_46 = arith.constant 0 : index
    %c0_47 = arith.constant 0 : index
    %c0_48 = arith.constant 0 : index
    %112 = vector.load %arg18[%c0_46, %c0_47, %c0_48] : memref<1x1x32xf32, #tpu.memory_space<vmem>>, vector<1x1x32xf32>
    %113 = vector.shape_cast %112 : vector<1x1x32xf32> to vector<1x32xf32>
    %c0_49 = arith.constant 0 : index
    %c0_50 = arith.constant 0 : index
    %c0_51 = arith.constant 0 : index
    %114 = vector.load %arg19[%c0_49, %c0_50, %c0_51] : memref<1x1x32xf32, #tpu.memory_space<vmem>>, vector<1x1x32xf32>
    %115 = vector.shape_cast %114 : vector<1x1x32xf32> to vector<1x32xf32>
    %cst_52 = arith.constant dense<0.000000e+00> : vector<16xf32>
    %116 = vector.multi_reduction <add>, %111, %cst_52 [1] : vector<16x32xf32> to vector<16xf32>
    %117 = vector.shape_cast %116 : vector<16xf32> to vector<16x1xf32>
    %cst_53 = arith.constant 3.200000e+01 : f32
    %118 = vector.broadcast %cst_53 : f32 to vector<16x1xf32>
    %119 = arith.divf %117, %118 : vector<16x1xf32>
    %120 = vector.broadcast %119 : vector<16x1xf32> to vector<16x32xf32>
    %121 = arith.subf %111, %120 : vector<16x32xf32>
    %122 = arith.mulf %121, %121 : vector<16x32xf32>
    %cst_54 = arith.constant dense<0.000000e+00> : vector<16xf32>
    %123 = vector.multi_reduction <add>, %122, %cst_54 [1] : vector<16x32xf32> to vector<16xf32>
    %124 = vector.shape_cast %123 : vector<16xf32> to vector<16x1xf32>
    %cst_55 = arith.constant 3.200000e+01 : f32
    %125 = vector.broadcast %cst_55 : f32 to vector<16x1xf32>
    %126 = arith.divf %124, %125 : vector<16x1xf32>
    %cst_56 = arith.constant 9.99999974E-6 : f32
    %127 = vector.broadcast %cst_56 : f32 to vector<16x1xf32>
    %128 = arith.addf %126, %127 : vector<16x1xf32>
    %129 = math.rsqrt %128 : vector<16x1xf32>
    %130 = vector.broadcast %129 : vector<16x1xf32> to vector<16x32xf32>
    %131 = arith.mulf %121, %130 : vector<16x32xf32>
    %132 = vector.broadcast %113 : vector<1x32xf32> to vector<16x32xf32>
    %133 = arith.mulf %131, %132 : vector<16x32xf32>
    %134 = vector.broadcast %115 : vector<1x32xf32> to vector<16x32xf32>
    %135 = arith.addf %133, %134 : vector<16x32xf32>
    %c0_57 = arith.constant 0 : index
    %c0_58 = arith.constant 0 : index
    %c0_59 = arith.constant 0 : index
    %136 = vector.load %arg20[%c0_57, %c0_58, %c0_59] : memref<1x32x2048xf32, #tpu.memory_space<vmem>>, vector<1x32x2048xf32>
    %137 = vector.shape_cast %136 : vector<1x32x2048xf32> to vector<32x2048xf32>
    %cst_60 = arith.constant dense<0.000000e+00> : vector<16x2048xf32>
    %138 = tpu.matmul %135, %137, %cst_60 {dimension_numbers = #tpu.dot_dimension_numbers<[1], [0], [0], [1], [0, 0, 1, 1], [], []>} : vector<16x32xf32>, vector<32x2048xf32>, vector<16x2048xf32> -> vector<16x2048xf32>
    %c0_61 = arith.constant 0 : index
    %c0_62 = arith.constant 0 : index
    %c0_63 = arith.constant 0 : index
    %139 = vector.load %arg21[%c0_61, %c0_62, %c0_63] : memref<1x1x2048xf32, #tpu.memory_space<vmem>>, vector<1x1x2048xf32>
    %140 = vector.shape_cast %139 : vector<1x1x2048xf32> to vector<1x2048xf32>
    %141 = vector.broadcast %140 : vector<1x2048xf32> to vector<16x2048xf32>
    %142 = arith.addf %138, %141 : vector<16x2048xf32>
    %cst_64 = arith.constant 0.000000e+00 : f32
    %143 = vector.broadcast %cst_64 : f32 to vector<16x2048xf32>
    %144 = arith.maximumf %142, %143 : vector<16x2048xf32>
    %c0_65 = arith.constant 0 : index
    %c0_66 = arith.constant 0 : index
    %c0_67 = arith.constant 0 : index
    %145 = vector.load %arg22[%c0_65, %c0_66, %c0_67] : memref<1x2048x32xf32, #tpu.memory_space<vmem>>, vector<1x2048x32xf32>
    %146 = vector.shape_cast %145 : vector<1x2048x32xf32> to vector<2048x32xf32>
    %cst_68 = arith.constant dense<0.000000e+00> : vector<16x32xf32>
    %147 = tpu.matmul %144, %146, %cst_68 {dimension_numbers = #tpu.dot_dimension_numbers<[1], [0], [0], [1], [0, 0, 1, 1], [], []>} : vector<16x2048xf32>, vector<2048x32xf32>, vector<16x32xf32> -> vector<16x32xf32>
    %c0_69 = arith.constant 0 : index
    %c0_70 = arith.constant 0 : index
    %c0_71 = arith.constant 0 : index
    %148 = vector.load %arg23[%c0_69, %c0_70, %c0_71] : memref<1x1x32xf32, #tpu.memory_space<vmem>>, vector<1x1x32xf32>
    %149 = vector.shape_cast %148 : vector<1x1x32xf32> to vector<1x32xf32>
    %150 = vector.broadcast %149 : vector<1x32xf32> to vector<16x32xf32>
    %151 = arith.addf %147, %150 : vector<16x32xf32>
    %152 = arith.addf %135, %151 : vector<16x32xf32>
    %c0_72 = arith.constant 0 : index
    %c0_73 = arith.constant 0 : index
    %c0_74 = arith.constant 0 : index
    %153 = vector.load %arg24[%c0_72, %c0_73, %c0_74] : memref<1x1x32xf32, #tpu.memory_space<vmem>>, vector<1x1x32xf32>
    %154 = vector.shape_cast %153 : vector<1x1x32xf32> to vector<1x32xf32>
    %c0_75 = arith.constant 0 : index
    %c0_76 = arith.constant 0 : index
    %c0_77 = arith.constant 0 : index
    %155 = vector.load %arg25[%c0_75, %c0_76, %c0_77] : memref<1x1x32xf32, #tpu.memory_space<vmem>>, vector<1x1x32xf32>
    %156 = vector.shape_cast %155 : vector<1x1x32xf32> to vector<1x32xf32>
    %cst_78 = arith.constant dense<0.000000e+00> : vector<16xf32>
    %157 = vector.multi_reduction <add>, %152, %cst_78 [1] : vector<16x32xf32> to vector<16xf32>
    %158 = vector.shape_cast %157 : vector<16xf32> to vector<16x1xf32>
    %cst_79 = arith.constant 3.200000e+01 : f32
    %159 = vector.broadcast %cst_79 : f32 to vector<16x1xf32>
    %160 = arith.divf %158, %159 : vector<16x1xf32>
    %161 = vector.broadcast %160 : vector<16x1xf32> to vector<16x32xf32>
    %162 = arith.subf %152, %161 : vector<16x32xf32>
    %163 = arith.mulf %162, %162 : vector<16x32xf32>
    %cst_80 = arith.constant dense<0.000000e+00> : vector<16xf32>
    %164 = vector.multi_reduction <add>, %163, %cst_80 [1] : vector<16x32xf32> to vector<16xf32>
    %165 = vector.shape_cast %164 : vector<16xf32> to vector<16x1xf32>
    %cst_81 = arith.constant 3.200000e+01 : f32
    %166 = vector.broadcast %cst_81 : f32 to vector<16x1xf32>
    %167 = arith.divf %165, %166 : vector<16x1xf32>
    %cst_82 = arith.constant 9.99999974E-6 : f32
    %168 = vector.broadcast %cst_82 : f32 to vector<16x1xf32>
    %169 = arith.addf %167, %168 : vector<16x1xf32>
    %170 = math.rsqrt %169 : vector<16x1xf32>
    %171 = vector.broadcast %170 : vector<16x1xf32> to vector<16x32xf32>
    %172 = arith.mulf %162, %171 : vector<16x32xf32>
    %173 = vector.broadcast %154 : vector<1x32xf32> to vector<16x32xf32>
    %174 = arith.mulf %172, %173 : vector<16x32xf32>
    %175 = vector.broadcast %156 : vector<1x32xf32> to vector<16x32xf32>
    %176 = arith.addf %174, %175 : vector<16x32xf32>
    %c0_83 = arith.constant 0 : index
    %c0_84 = arith.constant 0 : index
    %177 = vector.load %arg27[%c0_83, %c0_84] : memref<16x32xf32, #tpu.memory_space<vmem>>, vector<16x32xf32>
    tpu.vector_store %arg27[%c0_83, %c0_84], %176 {strides = array<i32>} : memref<16x32xf32, #tpu.memory_space<vmem>>, vector<16x32xf32>,
    %c1_i32 = arith.constant 1 : i32
    %178 = arith.cmpi eq, %arg0, %c1_i32 : i32
    %179 = arith.extui %178 : i1 to i32
    %c0_i32_85 = arith.constant 0 : i32
    %180 = arith.cmpi ne, %179, %c0_i32_85 : i32
    scf.if %180 {
      %c0_86 = arith.constant 0 : index
      %c0_87 = arith.constant 0 : index
      %181 = vector.load %arg5[%c0_86, %c0_87] : memref<1x32xf32, #tpu.memory_space<vmem>>, vector<1x32xf32>
      %182 = vector.broadcast %181 : vector<1x32xf32> to vector<16x32xf32>
      %183 = arith.mulf %176, %182 : vector<16x32xf32>
      %cst_88 = arith.constant dense<0.000000e+00> : vector<16xf32>
      %184 = vector.multi_reduction <add>, %183, %cst_88 [1] : vector<16x32xf32> to vector<16xf32>
      %185 = vector.shape_cast %184 : vector<16xf32> to vector<16x1xf32>
      %c0_89 = arith.constant 0 : index
      %c0_90 = arith.constant 0 : index
      %186 = vector.load %arg6[%c0_89, %c0_90] : memref<1x1xf32, #tpu.memory_space<vmem>>, vector<1x1xf32>
      %187 = vector.broadcast %186 : vector<1x1xf32> to vector<16x1xf32>
      %188 = arith.addf %185, %187 : vector<16x1xf32>
      %c0_91 = arith.constant 0 : index
      %c0_92 = arith.constant 0 : index
      %189 = vector.load %arg7[%c0_91, %c0_92] : memref<16x4xf32, #tpu.memory_space<vmem>>, vector<16x4xf32>
      %190 = vector.broadcast %188 : vector<16x1xf32> to vector<16x4xf32>
      %191 = arith.mulf %190, %189 : vector<16x4xf32>
      %c0_93 = arith.constant 0 : index
      %c0_94 = arith.constant 0 : index
      %192 = vector.load %arg8[%c0_93, %c0_94] : memref<2x16xf32, #tpu.memory_space<vmem>>, vector<2x16xf32>
      %cst_95 = arith.constant dense<0.000000e+00> : vector<2x4xf32>
      %193 = tpu.matmul %192, %191, %cst_95 {dimension_numbers = #tpu.dot_dimension_numbers<[1], [0], [0], [1], [0, 0, 1, 1], [], []>} : vector<2x16xf32>, vector<16x4xf32>, vector<2x4xf32> -> vector<2x4xf32>
      %c0_96 = arith.constant 0 : index
      %c0_97 = arith.constant 0 : index
      %194 = vector.load %arg9[%c0_96, %c0_97] : memref<1x4xf32, #tpu.memory_space<vmem>>, vector<1x4xf32>
      %195 = vector.broadcast %194 : vector<1x4xf32> to vector<2x4xf32>
      %196 = arith.addf %193, %195 : vector<2x4xf32>
      %c0_98 = arith.constant 0 : index
      %c0_99 = arith.constant 0 : index
      %197 = vector.load %arg26[%c0_98, %c0_99] : memref<2x4xf32, #tpu.memory_space<vmem>>, vector<2x4xf32>
      tpu.vector_store %arg26[%c0_98, %c0_99], %196 {strides = array<i32>} : memref<2x4xf32, #tpu.memory_space<vmem>>, vector<2x4xf32>,
    } else {
    }
    return
  }
  func.func @transform_0(%arg0: i32) -> (i32, i32) {
    %c0_i32 = arith.constant 0 : i32
    %c0_i32_0 = arith.constant 0 : i32
    %c0_i32_1 = arith.constant 0 : i32
    return %c0_i32, %c0_i32_0 : i32, i32
  }
  func.func @transform_1(%arg0: i32) -> (i32, i32) {
    %c0_i32 = arith.constant 0 : i32
    %c0_i32_0 = arith.constant 0 : i32
    %c0_i32_1 = arith.constant 0 : i32
    return %c0_i32, %c0_i32_0 : i32, i32
  }
  func.func @transform_2(%arg0: i32) -> (i32, i32) {
    %c0_i32 = arith.constant 0 : i32
    %c0_i32_0 = arith.constant 0 : i32
    %c0_i32_1 = arith.constant 0 : i32
    return %c0_i32, %c0_i32_0 : i32, i32
  }
  func.func @transform_3(%arg0: i32) -> (i32, i32) {
    %c0_i32 = arith.constant 0 : i32
    %c0_i32_0 = arith.constant 0 : i32
    %c0_i32_1 = arith.constant 0 : i32
    return %c0_i32, %c0_i32_0 : i32, i32
  }
  func.func @transform_4(%arg0: i32) -> (i32, i32) {
    %c0_i32 = arith.constant 0 : i32
    %c0_i32_0 = arith.constant 0 : i32
    %c0_i32_1 = arith.constant 0 : i32
    return %c0_i32, %c0_i32_0 : i32, i32
  }
  func.func @transform_5(%arg0: i32) -> (i32, i32) {
    %c0_i32 = arith.constant 0 : i32
    %c0_i32_0 = arith.constant 0 : i32
    %c0_i32_1 = arith.constant 0 : i32
    return %c0_i32, %c0_i32_0 : i32, i32
  }
  func.func @transform_6(%arg0: i32) -> (i32, i32) {
    %c0_i32 = arith.constant 0 : i32
    %c0_i32_0 = arith.constant 0 : i32
    %c0_i32_1 = arith.constant 0 : i32
    return %c0_i32, %c0_i32_0 : i32, i32
  }
  func.func @transform_7(%arg0: i32) -> (i32, i32) {
    %c0_i32 = arith.constant 0 : i32
    %c0_i32_0 = arith.constant 0 : i32
    %c0_i32_1 = arith.constant 0 : i32
    return %c0_i32, %c0_i32_0 : i32, i32
  }
  func.func @transform_8(%arg0: i32) -> (i32, i32) {
    %c0_i32 = arith.constant 0 : i32
    %c0_i32_0 = arith.constant 0 : i32
    %c0_i32_1 = arith.constant 0 : i32
    return %c0_i32, %c0_i32_0 : i32, i32
  }
  func.func @transform_9(%arg0: i32) -> (i32, i32, i32) {
    %c0_i32 = arith.constant 0 : i32
    %c0_i32_0 = arith.constant 0 : i32
    %c0_i32_1 = arith.constant 0 : i32
    return %arg0, %c0_i32, %c0_i32_0 : i32, i32, i32
  }
  func.func @transform_10(%arg0: i32) -> (i32, i32, i32) {
    %c0_i32 = arith.constant 0 : i32
    %c0_i32_0 = arith.constant 0 : i32
    %c0_i32_1 = arith.constant 0 : i32
    return %arg0, %c0_i32, %c0_i32_0 : i32, i32, i32
  }
  func.func @transform_11(%arg0: i32) -> (i32, i32, i32) {
    %c0_i32 = arith.constant 0 : i32
    %c0_i32_0 = arith.constant 0 : i32
    %c0_i32_1 = arith.constant 0 : i32
    return %arg0, %c0_i32, %c0_i32_0 : i32, i32, i32
  }
  func.func @transform_12(%arg0: i32) -> (i32, i32, i32) {
    %c0_i32 = arith.constant 0 : i32
    %c0_i32_0 = arith.constant 0 : i32
    %c0_i32_1 = arith.constant 0 : i32
    return %arg0, %c0_i32, %c0_i32_0 : i32, i32, i32
  }
  func.func @transform_13(%arg0: i32) -> (i32, i32, i32) {
    %c0_i32 = arith.constant 0 : i32
    %c0_i32_0 = arith.constant 0 : i32
    %c0_i32_1 = arith.constant 0 : i32
    return %arg0, %c0_i32, %c0_i32_0 : i32, i32, i32
  }
  func.func @transform_14(%arg0: i32) -> (i32, i32, i32) {
    %c0_i32 = arith.constant 0 : i32
    %c0_i32_0 = arith.constant 0 : i32
    %c0_i32_1 = arith.constant 0 : i32
    return %arg0, %c0_i32, %c0_i32_0 : i32, i32, i32
  }
  func.func @transform_15(%arg0: i32) -> (i32, i32, i32) {
    %c0_i32 = arith.constant 0 : i32
    %c0_i32_0 = arith.constant 0 : i32
    %c0_i32_1 = arith.constant 0 : i32
    return %arg0, %c0_i32, %c0_i32_0 : i32, i32, i32
  }
  func.func @transform_16(%arg0: i32) -> (i32, i32, i32) {
    %c0_i32 = arith.constant 0 : i32
    %c0_i32_0 = arith.constant 0 : i32
    %c0_i32_1 = arith.constant 0 : i32
    return %arg0, %c0_i32, %c0_i32_0 : i32, i32, i32
  }
  func.func @transform_17(%arg0: i32) -> (i32, i32, i32) {
    %c0_i32 = arith.constant 0 : i32
    %c0_i32_0 = arith.constant 0 : i32
    %c0_i32_1 = arith.constant 0 : i32
    return %arg0, %c0_i32, %c0_i32_0 : i32, i32, i32
  }
  func.func @transform_18(%arg0: i32) -> (i32, i32, i32) {
    %c0_i32 = arith.constant 0 : i32
    %c0_i32_0 = arith.constant 0 : i32
    %c0_i32_1 = arith.constant 0 : i32
    return %arg0, %c0_i32, %c0_i32_0 : i32, i32, i32
  }
  func.func @transform_19(%arg0: i32) -> (i32, i32, i32) {
    %c0_i32 = arith.constant 0 : i32
    %c0_i32_0 = arith.constant 0 : i32
    %c0_i32_1 = arith.constant 0 : i32
    return %arg0, %c0_i32, %c0_i32_0 : i32, i32, i32
  }
  func.func @transform_20(%arg0: i32) -> (i32, i32, i32) {
    %c0_i32 = arith.constant 0 : i32
    %c0_i32_0 = arith.constant 0 : i32
    %c0_i32_1 = arith.constant 0 : i32
    return %arg0, %c0_i32, %c0_i32_0 : i32, i32, i32
  }
  func.func @transform_21(%arg0: i32) -> (i32, i32, i32) {
    %c0_i32 = arith.constant 0 : i32
    %c0_i32_0 = arith.constant 0 : i32
    %c0_i32_1 = arith.constant 0 : i32
    return %arg0, %c0_i32, %c0_i32_0 : i32, i32, i32
  }
  func.func @transform_22(%arg0: i32) -> (i32, i32, i32) {
    %c0_i32 = arith.constant 0 : i32
    %c0_i32_0 = arith.constant 0 : i32
    %c0_i32_1 = arith.constant 0 : i32
    return %arg0, %c0_i32, %c0_i32_0 : i32, i32, i32
  }
  func.func @transform_23(%arg0: i32) -> (i32, i32, i32) {
    %c0_i32 = arith.constant 0 : i32
    %c0_i32_0 = arith.constant 0 : i32
    %c0_i32_1 = arith.constant 0 : i32
    return %arg0, %c0_i32, %c0_i32_0 : i32, i32, i32
  }
  func.func @transform_24(%arg0: i32) -> (i32, i32, i32) {
    %c0_i32 = arith.constant 0 : i32
    %c0_i32_0 = arith.constant 0 : i32
    %c0_i32_1 = arith.constant 0 : i32
    return %arg0, %c0_i32, %c0_i32_0 : i32, i32, i32
  }
  func.func @transform_25(%arg0: i32) -> (i32, i32) {
    %c0_i32 = arith.constant 0 : i32
    %c0_i32_0 = arith.constant 0 : i32
    %c0_i32_1 = arith.constant 0 : i32
    return %c0_i32, %c0_i32_0 : i32, i32
  }
}

</mosaic_0001>

<llo_original>
// kernel: ts_transformer_forward.1
$region0: #{ts_transformer_forward.1}
  #allocation0 [shape = 'u32[]', space=smem, size = 0x4, offset = 0x4, fixed_abs, tag = 'smem constant byte address 0x4 - core index']
  #allocation1 [shape = 'u32[144,128]{1,0:T(1,128)}', space=vmem, size = 0x12000, scoped, tag = 'internal scratch']
  #allocation2 [shape = 'f32[16,32]{1,0:T(8,128)}', space=vmem, size = 0x2000, scoped, tag = 'scratch operand']
  #allocation3 [shape = 'f32[1,1]{1,0:T(1,128)S(1)}', space=vmem, size = 0x200, scoped, tag = 'scoped memory for ts_transformer_forward.1']
  %s0 = inlined_call_operand.vmem [shape: f32[16,1], index: 0, kind: input, shape index: {}]
  %s1 = inlined_call_operand.vmem [shape: f32[8,32], index: 1, kind: input, shape index: {}]
  %s2 = inlined_call_operand.vmem [shape: f32[1,32], index: 2, kind: input, shape index: {}]
  %s3 = inlined_call_operand.vmem [shape: f32[1,32], index: 3, kind: input, shape index: {}]
  %s4 = inlined_call_operand.vmem [shape: f32[1,32], index: 4, kind: input, shape index: {}]
  %s5 = inlined_call_operand.<no memory space> [shape: f32[1,1], index: 5, kind: input, shape index: {}]
  %s6 = inlined_call_operand.vmem [shape: f32[16,4], index: 6, kind: input, shape index: {}]
  %s7 = inlined_call_operand.vmem [shape: f32[2,16], index: 7, kind: input, shape index: {}]
  %s8 = inlined_call_operand.vmem [shape: f32[1,4], index: 8, kind: input, shape index: {}]
  %s9 = inlined_call_operand.vmem [shape: f32[2,32,32], index: 9, kind: input, shape index: {}]
  %s10 = inlined_call_operand.vmem [shape: f32[2,1,32], index: 10, kind: input, shape index: {}]
  %s11 = inlined_call_operand.vmem [shape: f32[2,32,32], index: 11, kind: input, shape index: {}]
  %s12 = inlined_call_operand.vmem [shape: f32[2,1,32], index: 12, kind: input, shape index: {}]
  %s13 = inlined_call_operand.vmem [shape: f32[2,32,32], index: 13, kind: input, shape index: {}]
  %s14 = inlined_call_operand.vmem [shape: f32[2,1,32], index: 14, kind: input, shape index: {}]
  %s15 = inlined_call_operand.vmem [shape: f32[2,32,32], index: 15, kind: input, shape index: {}]
  %s16 = inlined_call_operand.vmem [shape: f32[2,1,32], index: 16, kind: input, shape index: {}]
  %s17 = inlined_call_operand.vmem [shape: f32[2,1,32], index: 17, kind: input, shape index: {}]
  %s18 = inlined_call_operand.vmem [shape: f32[2,1,32], index: 18, kind: input, shape index: {}]
  %s19 = inlined_call_operand.vmem [shape: f32[2,32,2048], index: 19, kind: input, shape index: {}]
  %s20 = inlined_call_operand.vmem [shape: f32[2,1,2048], index: 20, kind: input, shape index: {}]
  %s21 = inlined_call_operand.vmem [shape: f32[2,2048,32], index: 21, kind: input, shape index: {}]
  %s22 = inlined_call_operand.vmem [shape: f32[2,1,32], index: 22, kind: input, shape index: {}]
  %s23 = inlined_call_operand.vmem [shape: f32[2,1,32], index: 23, kind: input, shape index: {}]
  %s24 = inlined_call_operand.vmem [shape: f32[2,1,32], index: 24, kind: input, shape index: {}]
  %s25 = inlined_call_operand.hbm [shape: f32[2,4], index: 25, kind: output, shape index: {}]
  %s26 = sld [smem:[#allocation0]]
  $region141: #{ts_transformer_forward.1} parent=0
    _
  %s28 = ssub.s32 1, %s26
  %s29 = scalar_select 0, %s28, %s26
  %v30 = vstv %s5
  %31 = vst [vmem:[#allocation3] sm:$0x1] %v30
  $region1: #{ts_transformer_forward.1} parent=0
    #allocation4 [shape = 'u8[1024]{0}', space=vmem, size = 0x400, scoped, tag = 'output window, operand 0, single buffered']
    #allocation5 [shape = 's32[2]{0}', space=sflag, size = 0x8, scoped, tag = 'scoped memory for ts_transformer_forward.1']
    %32 = vsyncpa [#allocation5], 0
    loop: start=0, step=1, limit=4
    $region2: #{ts_transformer_forward.1} parent=1 // loop_pre_header
      _
    $region3: #{ts_transformer_forward.1} parent=1 // loop_header
      %s34 = sphi 0, %s38
      %p35 = scmp.ge.s32.totalorder %s34, 4
      %s42 = sphi 0, %s42
      %s44 = sphi 0, %s42
      %s45 = sphi 0, %s44
      %s59 = sphi 0, %s45
      %s63 = sphi 0, %s63
      %s65 = sphi 0, %s63
      %s66 = sphi 0, %s65
      %s80 = sphi 0, %s66
      %s84 = sphi 0, %s84
      %s86 = sphi 0, %s84
      %s87 = sphi 0, %s86
      %s101 = sphi 0, %s87
      %s105 = sphi 0, %s105
      %s107 = sphi 0, %s105
      %s108 = sphi 0, %s107
      %s122 = sphi 0, %s108
      %s126 = sphi 0, %s126
      %s128 = sphi 0, %s126
      %s129 = sphi 0, %s128
      %s143 = sphi 0, %s129
      %s147 = sphi 0, %s147
      %s149 = sphi 0, %s147
      %s150 = sphi 0, %s149
      %s164 = sphi 0, %s150
      %s168 = sphi 0, %s168
      %s170 = sphi 0, %s168
      %s171 = sphi 0, %s170
      %s185 = sphi 0, %s171
      %s189 = sphi 0, %s189
      %s191 = sphi 0, %s189
      %s192 = sphi 0, %s191
      %s206 = sphi 0, %s192
      %s210 = sphi 0, %s210
      %s212 = sphi 0, %s210
      %s213 = sphi 0, %s212
      %s227 = sphi 0, %s213
      %s233 = sphi 0, %s235
      %s236 = sphi 0, %s233
      %s237 = sphi 0, %s236
      %s253 = sphi 0, %s237
      %s259 = sphi 0, %s261
      %s262 = sphi 0, %s259
      %s263 = sphi 0, %s262
      %s279 = sphi 0, %s263
      %s285 = sphi 0, %s287
      %s288 = sphi 0, %s285
      %s289 = sphi 0, %s288
      %s305 = sphi 0, %s289
      %s311 = sphi 0, %s313
      %s314 = sphi 0, %s311
      %s315 = sphi 0, %s314
      %s331 = sphi 0, %s315
      %s337 = sphi 0, %s339
      %s340 = sphi 0, %s337
      %s341 = sphi 0, %s340
      %s357 = sphi 0, %s341
      %s363 = sphi 0, %s365
      %s366 = sphi 0, %s363
      %s367 = sphi 0, %s366
      %s383 = sphi 0, %s367
      %s389 = sphi 0, %s391
      %s392 = sphi 0, %s389
      %s393 = sphi 0, %s392
      %s409 = sphi 0, %s393
      %s415 = sphi 0, %s417
      %s418 = sphi 0, %s415
      %s419 = sphi 0, %s418
      %s435 = sphi 0, %s419
      %s441 = sphi 0, %s443
      %s444 = sphi 0, %s441
      %s445 = sphi 0, %s444
      %s461 = sphi 0, %s445
      %s467 = sphi 0, %s469
      %s470 = sphi 0, %s467
      %s471 = sphi 0, %s470
      %s487 = sphi 0, %s471
      %s493 = sphi 0, %s495
      %s496 = sphi 0, %s493
      %s497 = sphi 0, %s496
      %s513 = sphi 0, %s497
      %s519 = sphi 0, %s521
      %s522 = sphi 0, %s519
      %s523 = sphi 0, %s522
      %s539 = sphi 0, %s523
      %s545 = sphi 0, %s547
      %s548 = sphi 0, %s545
      %s549 = sphi 0, %s548
      %s565 = sphi 0, %s549
      %s571 = sphi 0, %s573
      %s574 = sphi 0, %s571
      %s575 = sphi 0, %s574
      %s591 = sphi 0, %s575
      %s597 = sphi 0, %s599
      %s600 = sphi 0, %s597
      %s601 = sphi 0, %s600
      %s617 = sphi 0, %s601
      %s623 = sphi 0, %s625
      %s626 = sphi 0, %s623
      %s627 = sphi 0, %s626
      %s643 = sphi 0, %s627
      %s647 = sphi 0, %s647
      %s649 = sphi 0, %s647
      %s650 = sphi 0, %s649
      %s664 = sphi 0, %s650
    $region4: #{ts_transformer_forward.1} parent=1 // loop_header_branch
      %37 = sbr.rel (%p35) target = $region8
    $region5: #{ts_transformer_forward.1} parent=1 // loop_body
      %s39 = ssub.s32 %s34, 1
      %s40 = ssub.s32 %s34, 2
      %s41 = sadd.s32 %s34, 1
      %s43 = sadd.s32 %s42, 1
      %p46 = scmp.eq.s32.totalorder %s34, 1
      %p47 = scmp.ne.s32.totalorder %s42, %s44
      %p48 = scmp.eq.s32.totalorder %s34, 0
      %p49 = por %p47, %p48
      %p50 = scmp.ne.s32.totalorder %s42, %s44
      %p51 = scmp.eq.s32.totalorder %s39, 1
      %p52 = por %p50, %p51
      %p53 = scmp.ne.s32.totalorder %s44, %s45
      %p54 = scmp.eq.s32.totalorder %s39, 0
      %p55 = por %p53, %p54
      %p56 = scmp.ne.s32.totalorder %s44, %s45
      %p57 = scmp.eq.s32.totalorder %s40, 1
      %p58 = por %p56, %p57
      %p60 = scmp.ne.s32.totalorder %s45, %s59
      %p61 = scmp.eq.s32.totalorder %s40, 0
      %p62 = por %p60, %p61
      %s64 = sadd.s32 %s63, 1
      %p67 = scmp.eq.s32.totalorder %s34, 1
      %p68 = scmp.ne.s32.totalorder %s63, %s65
      %p69 = scmp.eq.s32.totalorder %s34, 0
      %p70 = por %p68, %p69
      %p71 = scmp.ne.s32.totalorder %s63, %s65
      %p72 = scmp.eq.s32.totalorder %s39, 1
      %p73 = por %p71, %p72
      %p74 = scmp.ne.s32.totalorder %s65, %s66
      %p75 = scmp.eq.s32.totalorder %s39, 0
      %p76 = por %p74, %p75
      %p77 = scmp.ne.s32.totalorder %s65, %s66
      %p78 = scmp.eq.s32.totalorder %s40, 1
      %p79 = por %p77, %p78
      %p81 = scmp.ne.s32.totalorder %s66, %s80
      %p82 = scmp.eq.s32.totalorder %s40, 0
      %p83 = por %p81, %p82
      %s85 = sadd.s32 %s84, 1
      %p88 = scmp.eq.s32.totalorder %s34, 1
      %p89 = scmp.ne.s32.totalorder %s84, %s86
      %p90 = scmp.eq.s32.totalorder %s34, 0
      %p91 = por %p89, %p90
      %p92 = scmp.ne.s32.totalorder %s84, %s86
      %p93 = scmp.eq.s32.totalorder %s39, 1
      %p94 = por %p92, %p93
      %p95 = scmp.ne.s32.totalorder %s86, %s87
      %p96 = scmp.eq.s32.totalorder %s39, 0
      %p97 = por %p95, %p96
      %p98 = scmp.ne.s32.totalorder %s86, %s87
      %p99 = scmp.eq.s32.totalorder %s40, 1
      %p100 = por %p98, %p99
      %p102 = scmp.ne.s32.totalorder %s87, %s101
      %p103 = scmp.eq.s32.totalorder %s40, 0
      %p104 = por %p102, %p103
      %s106 = sadd.s32 %s105, 1
      %p109 = scmp.eq.s32.totalorder %s34, 1
      %p110 = scmp.ne.s32.totalorder %s105, %s107
      %p111 = scmp.eq.s32.totalorder %s34, 0
      %p112 = por %p110, %p111
      %p113 = scmp.ne.s32.totalorder %s105, %s107
      %p114 = scmp.eq.s32.totalorder %s39, 1
      %p115 = por %p113, %p114
      %p116 = scmp.ne.s32.totalorder %s107, %s108
      %p117 = scmp.eq.s32.totalorder %s39, 0
      %p118 = por %p116, %p117
      %p119 = scmp.ne.s32.totalorder %s107, %s108
      %p120 = scmp.eq.s32.totalorder %s40, 1
      %p121 = por %p119, %p120
      %p123 = scmp.ne.s32.totalorder %s108, %s122
      %p124 = scmp.eq.s32.totalorder %s40, 0
      %p125 = por %p123, %p124
      %s127 = sadd.s32 %s126, 1
      %p130 = scmp.eq.s32.totalorder %s34, 1
      %p131 = scmp.ne.s32.totalorder %s126, %s128
      %p132 = scmp.eq.s32.totalorder %s34, 0
      %p133 = por %p131, %p132
      %p134 = scmp.ne.s32.totalorder %s126, %s128
      %p135 = scmp.eq.s32.totalorder %s39, 1
      %p136 = por %p134, %p135
      %p137 = scmp.ne.s32.totalorder %s128, %s129
      %p138 = scmp.eq.s32.totalorder %s39, 0
      %p139 = por %p137, %p138
      %p140 = scmp.ne.s32.totalorder %s128, %s129
      %p141 = scmp.eq.s32.totalorder %s40, 1
      %p142 = por %p140, %p141
      %p144 = scmp.ne.s32.totalorder %s129, %s143
      %p145 = scmp.eq.s32.totalorder %s40, 0
      %p146 = por %p144, %p145
      %s148 = sadd.s32 %s147, 1
      %p151 = scmp.eq.s32.totalorder %s34, 1
      %p152 = scmp.ne.s32.totalorder %s147, %s149
      %p153 = scmp.eq.s32.totalorder %s34, 0
      %p154 = por %p152, %p153
      %p155 = scmp.ne.s32.totalorder %s147, %s149
      %p156 = scmp.eq.s32.totalorder %s39, 1
      %p157 = por %p155, %p156
      %p158 = scmp.ne.s32.totalorder %s149, %s150
      %p159 = scmp.eq.s32.totalorder %s39, 0
      %p160 = por %p158, %p159
      %p161 = scmp.ne.s32.totalorder %s149, %s150
      %p162 = scmp.eq.s32.totalorder %s40, 1
      %p163 = por %p161, %p162
      %p165 = scmp.ne.s32.totalorder %s150, %s164
      %p166 = scmp.eq.s32.totalorder %s40, 0
      %p167 = por %p165, %p166
      %s169 = sadd.s32 %s168, 1
      %p172 = scmp.eq.s32.totalorder %s34, 1
      %p173 = scmp.ne.s32.totalorder %s168, %s170
      %p174 = scmp.eq.s32.totalorder %s34, 0
      %p175 = por %p173, %p174
      %p176 = scmp.ne.s32.totalorder %s168, %s170
      %p177 = scmp.eq.s32.totalorder %s39, 1
      %p178 = por %p176, %p177
      %p179 = scmp.ne.s32.totalorder %s170, %s171
      %p180 = scmp.eq.s32.totalorder %s39, 0
      %p181 = por %p179, %p180
      %p182 = scmp.ne.s32.totalorder %s170, %s171
      %p183 = scmp.eq.s32.totalorder %s40, 1
      %p184 = por %p182, %p183
      %p186 = scmp.ne.s32.totalorder %s171, %s185
      %p187 = scmp.eq.s32.totalorder %s40, 0
      %p188 = por %p186, %p187
      %s190 = sadd.s32 %s189, 1
      %p193 = scmp.eq.s32.totalorder %s34, 1
      %p194 = scmp.ne.s32.totalorder %s189, %s191
      %p195 = scmp.eq.s32.totalorder %s34, 0
      %p196 = por %p194, %p195
      %p197 = scmp.ne.s32.totalorder %s189, %s191
      %p198 = scmp.eq.s32.totalorder %s39, 1
      %p199 = por %p197, %p198
      %p200 = scmp.ne.s32.totalorder %s191, %s192
      %p201 = scmp.eq.s32.totalorder %s39, 0
      %p202 = por %p200, %p201
      %p203 = scmp.ne.s32.totalorder %s191, %s192
      %p204 = scmp.eq.s32.totalorder %s40, 1
      %p205 = por %p203, %p204
      %p207 = scmp.ne.s32.totalorder %s192, %s206
      %p208 = scmp.eq.s32.totalorder %s40, 0
      %p209 = por %p207, %p208
      %s211 = sadd.s32 %s210, 1
      %p214 = scmp.eq.s32.totalorder %s34, 1
      %p215 = scmp.ne.s32.totalorder %s210, %s212
      %p216 = scmp.eq.s32.totalorder %s34, 0
      %p217 = por %p215, %p216
      %p218 = scmp.ne.s32.totalorder %s210, %s212
      %p219 = scmp.eq.s32.totalorder %s39, 1
      %p220 = por %p218, %p219
      %p221 = scmp.ne.s32.totalorder %s212, %s213
      %p222 = scmp.eq.s32.totalorder %s39, 0
      %p223 = por %p221, %p222
      %p224 = scmp.ne.s32.totalorder %s212, %s213
      %p225 = scmp.eq.s32.totalorder %s40, 1
      %p226 = por %p224, %p225
      %p228 = scmp.ne.s32.totalorder %s213, %s227
      %p229 = scmp.eq.s32.totalorder %s40, 0
      %p230 = por %p228, %p229
      %s231 = ssub.s32 %s34, %s41
      %p232 = scmp.eq.s32.totalorder %s231, 0
      %s234 = sadd.s32 %s233, 1
      %s235 = scalar_select %p232, %s233, %s234
      %p238 = pneg %p232
      %p239 = scmp.eq.s32.totalorder %s34, 1
      %p240 = por %p238, %p239
      %p241 = scmp.ne.s32.totalorder %s233, %s236
      %p242 = scmp.eq.s32.totalorder %s34, 0
      %p243 = por %p241, %p242
      %p244 = scmp.ne.s32.totalorder %s233, %s236
      %p245 = scmp.eq.s32.totalorder %s39, 1
      %p246 = por %p244, %p245
      %p247 = scmp.ne.s32.totalorder %s236, %s237
      %p248 = scmp.eq.s32.totalorder %s39, 0
      %p249 = por %p247, %p248
      %p250 = scmp.ne.s32.totalorder %s236, %s237
      %p251 = scmp.eq.s32.totalorder %s40, 1
      %p252 = por %p250, %p251
      %p254 = scmp.ne.s32.totalorder %s237, %s253
      %p255 = scmp.eq.s32.totalorder %s40, 0
      %p256 = por %p254, %p255
      %s257 = ssub.s32 %s34, %s41
      %p258 = scmp.eq.s32.totalorder %s257, 0
      %s260 = sadd.s32 %s259, 1
      %s261 = scalar_select %p258, %s259, %s260
      %p264 = pneg %p258
      %p265 = scmp.eq.s32.totalorder %s34, 1
      %p266 = por %p264, %p265
      %p267 = scmp.ne.s32.totalorder %s259, %s262
      %p268 = scmp.eq.s32.totalorder %s34, 0
      %p269 = por %p267, %p268
      %p270 = scmp.ne.s32.totalorder %s259, %s262
      %p271 = scmp.eq.s32.totalorder %s39, 1
      %p272 = por %p270, %p271
      %p273 = scmp.ne.s32.totalorder %s262, %s263
      %p274 = scmp.eq.s32.totalorder %s39, 0
      %p275 = por %p273, %p274
      %p276 = scmp.ne.s32.totalorder %s262, %s263
      %p277 = scmp.eq.s32.totalorder %s40, 1
      %p278 = por %p276, %p277
      %p280 = scmp.ne.s32.totalorder %s263, %s279
      %p281 = scmp.eq.s32.totalorder %s40, 0
      %p282 = por %p280, %p281
      %s283 = ssub.s32 %s34, %s41
      %p284 = scmp.eq.s32.totalorder %s283, 0
      %s286 = sadd.s32 %s285, 1
      %s287 = scalar_select %p284, %s285, %s286
      %p290 = pneg %p284
      %p291 = scmp.eq.s32.totalorder %s34, 1
      %p292 = por %p290, %p291
      %p293 = scmp.ne.s32.totalorder %s285, %s288
      %p294 = scmp.eq.s32.totalorder %s34, 0
      %p295 = por %p293, %p294
      %p296 = scmp.ne.s32.totalorder %s285, %s288
      %p297 = scmp.eq.s32.totalorder %s39, 1
      %p298 = por %p296, %p297
      %p299 = scmp.ne.s32.totalorder %s288, %s289
      %p300 = scmp.eq.s32.totalorder %s39, 0
      %p301 = por %p299, %p300
      %p302 = scmp.ne.s32.totalorder %s288, %s289
      %p303 = scmp.eq.s32.totalorder %s40, 1
      %p304 = por %p302, %p303
      %p306 = scmp.ne.s32.totalorder %s289, %s305
      %p307 = scmp.eq.s32.totalorder %s40, 0
      %p308 = por %p306, %p307
      %s309 = ssub.s32 %s34, %s41
      %p310 = scmp.eq.s32.totalorder %s309, 0
      %s312 = sadd.s32 %s311, 1
      %s313 = scalar_select %p310, %s311, %s312
      %p316 = pneg %p310
      %p317 = scmp.eq.s32.totalorder %s34, 1
      %p318 = por %p316, %p317
      %p319 = scmp.ne.s32.totalorder %s311, %s314
      %p320 = scmp.eq.s32.totalorder %s34, 0
      %p321 = por %p319, %p320
      %p322 = scmp.ne.s32.totalorder %s311, %s314
      %p323 = scmp.eq.s32.totalorder %s39, 1
      %p324 = por %p322, %p323
      %p325 = scmp.ne.s32.totalorder %s314, %s315
      %p326 = scmp.eq.s32.totalorder %s39, 0
      %p327 = por %p325, %p326
      %p328 = scmp.ne.s32.totalorder %s314, %s315
      %p329 = scmp.eq.s32.totalorder %s40, 1
      %p330 = por %p328, %p329
      %p332 = scmp.ne.s32.totalorder %s315, %s331
      %p333 = scmp.eq.s32.totalorder %s40, 0
      %p334 = por %p332, %p333
      %s335 = ssub.s32 %s34, %s41
      %p336 = scmp.eq.s32.totalorder %s335, 0
      %s338 = sadd.s32 %s337, 1
      %s339 = scalar_select %p336, %s337, %s338
      %p342 = pneg %p336
      %p343 = scmp.eq.s32.totalorder %s34, 1
      %p344 = por %p342, %p343
      %p345 = scmp.ne.s32.totalorder %s337, %s340
      %p346 = scmp.eq.s32.totalorder %s34, 0
      %p347 = por %p345, %p346
      %p348 = scmp.ne.s32.totalorder %s337, %s340
      %p349 = scmp.eq.s32.totalorder %s39, 1
      %p350 = por %p348, %p349
      %p351 = scmp.ne.s32.totalorder %s340, %s341
      %p352 = scmp.eq.s32.totalorder %s39, 0
      %p353 = por %p351, %p352
      %p354 = scmp.ne.s32.totalorder %s340, %s341
      %p355 = scmp.eq.s32.totalorder %s40, 1
      %p356 = por %p354, %p355
      %p358 = scmp.ne.s32.totalorder %s341, %s357
      %p359 = scmp.eq.s32.totalorder %s40, 0
      %p360 = por %p358, %p359
      %s361 = ssub.s32 %s34, %s41
      %p362 = scmp.eq.s32.totalorder %s361, 0
      %s364 = sadd.s32 %s363, 1
      %s365 = scalar_select %p362, %s363, %s364
      %p368 = pneg %p362
      %p369 = scmp.eq.s32.totalorder %s34, 1
      %p370 = por %p368, %p369
      %p371 = scmp.ne.s32.totalorder %s363, %s366
      %p372 = scmp.eq.s32.totalorder %s34, 0
      %p373 = por %p371, %p372
      %p374 = scmp.ne.s32.totalorder %s363, %s366
      %p375 = scmp.eq.s32.totalorder %s39, 1
      %p376 = por %p374, %p375
      %p377 = scmp.ne.s32.totalorder %s366, %s367
      %p378 = scmp.eq.s32.totalorder %s39, 0
      %p379 = por %p377, %p378
      %p380 = scmp.ne.s32.totalorder %s366, %s367
      %p381 = scmp.eq.s32.totalorder %s40, 1
      %p382 = por %p380, %p381
      %p384 = scmp.ne.s32.totalorder %s367, %s383
      %p385 = scmp.eq.s32.totalorder %s40, 0
      %p386 = por %p384, %p385
      %s387 = ssub.s32 %s34, %s41
      %p388 = scmp.eq.s32.totalorder %s387, 0
      %s390 = sadd.s32 %s389, 1
      %s391 = scalar_select %p388, %s389, %s390
      %p394 = pneg %p388
      %p395 = scmp.eq.s32.totalorder %s34, 1
      %p396 = por %p394, %p395
      %p397 = scmp.ne.s32.totalorder %s389, %s392
      %p398 = scmp.eq.s32.totalorder %s34, 0
      %p399 = por %p397, %p398
      %p400 = scmp.ne.s32.totalorder %s389, %s392
      %p401 = scmp.eq.s32.totalorder %s39, 1
      %p402 = por %p400, %p401
      %p403 = scmp.ne.s32.totalorder %s392, %s393
      %p404 = scmp.eq.s32.totalorder %s39, 0
      %p405 = por %p403, %p404
      %p406 = scmp.ne.s32.totalorder %s392, %s393
      %p407 = scmp.eq.s32.totalorder %s40, 1
      %p408 = por %p406, %p407
      %p410 = scmp.ne.s32.totalorder %s393, %s409
      %p411 = scmp.eq.s32.totalorder %s40, 0
      %p412 = por %p410, %p411
      %s413 = ssub.s32 %s34, %s41
      %p414 = scmp.eq.s32.totalorder %s413, 0
      %s416 = sadd.s32 %s415, 1
      %s417 = scalar_select %p414, %s415, %s416
      %p420 = pneg %p414
      %p421 = scmp.eq.s32.totalorder %s34, 1
      %p422 = por %p420, %p421
      %p423 = scmp.ne.s32.totalorder %s415, %s418
      %p424 = scmp.eq.s32.totalorder %s34, 0
      %p425 = por %p423, %p424
      %p426 = scmp.ne.s32.totalorder %s415, %s418
      %p427 = scmp.eq.s32.totalorder %s39, 1
      %p428 = por %p426, %p427
      %p429 = scmp.ne.s32.totalorder %s418, %s419
      %p430 = scmp.eq.s32.totalorder %s39, 0
      %p431 = por %p429, %p430
      %p432 = scmp.ne.s32.totalorder %s418, %s419
      %p433 = scmp.eq.s32.totalorder %s40, 1
      %p434 = por %p432, %p433
      %p436 = scmp.ne.s32.totalorder %s419, %s435
      %p437 = scmp.eq.s32.totalorder %s40, 0
      %p438 = por %p436, %p437
      %s439 = ssub.s32 %s34, %s41
      %p440 = scmp.eq.s32.totalorder %s439, 0
      %s442 = sadd.s32 %s441, 1
      %s443 = scalar_select %p440, %s441, %s442
      %p446 = pneg %p440
      %p447 = scmp.eq.s32.totalorder %s34, 1
      %p448 = por %p446, %p447
      %p449 = scmp.ne.s32.totalorder %s441, %s444
      %p450 = scmp.eq.s32.totalorder %s34, 0
      %p451 = por %p449, %p450
      %p452 = scmp.ne.s32.totalorder %s441, %s444
      %p453 = scmp.eq.s32.totalorder %s39, 1
      %p454 = por %p452, %p453
      %p455 = scmp.ne.s32.totalorder %s444, %s445
      %p456 = scmp.eq.s32.totalorder %s39, 0
      %p457 = por %p455, %p456
      %p458 = scmp.ne.s32.totalorder %s444, %s445
      %p459 = scmp.eq.s32.totalorder %s40, 1
      %p460 = por %p458, %p459
      %p462 = scmp.ne.s32.totalorder %s445, %s461
      %p463 = scmp.eq.s32.totalorder %s40, 0
      %p464 = por %p462, %p463
      %s465 = ssub.s32 %s34, %s41
      %p466 = scmp.eq.s32.totalorder %s465, 0
      %s468 = sadd.s32 %s467, 1
      %s469 = scalar_select %p466, %s467, %s468
      %p472 = pneg %p466
      %p473 = scmp.eq.s32.totalorder %s34, 1
      %p474 = por %p472, %p473
      %p475 = scmp.ne.s32.totalorder %s467, %s470
      %p476 = scmp.eq.s32.totalorder %s34, 0
      %p477 = por %p475, %p476
      %p478 = scmp.ne.s32.totalorder %s467, %s470
      %p479 = scmp.eq.s32.totalorder %s39, 1
      %p480 = por %p478, %p479
      %p481 = scmp.ne.s32.totalorder %s470, %s471
      %p482 = scmp.eq.s32.totalorder %s39, 0
      %p483 = por %p481, %p482
      %p484 = scmp.ne.s32.totalorder %s470, %s471
      %p485 = scmp.eq.s32.totalorder %s40, 1
      %p486 = por %p484, %p485
      %p488 = scmp.ne.s32.totalorder %s471, %s487
      %p489 = scmp.eq.s32.totalorder %s40, 0
      %p490 = por %p488, %p489
      %s491 = ssub.s32 %s34, %s41
      %p492 = scmp.eq.s32.totalorder %s491, 0
      %s494 = sadd.s32 %s493, 1
      %s495 = scalar_select %p492, %s493, %s494
      %p498 = pneg %p492
      %p499 = scmp.eq.s32.totalorder %s34, 1
      %p500 = por %p498, %p499
      %p501 = scmp.ne.s32.totalorder %s493, %s496
      %p502 = scmp.eq.s32.totalorder %s34, 0
      %p503 = por %p501, %p502
      %p504 = scmp.ne.s32.totalorder %s493, %s496
      %p505 = scmp.eq.s32.totalorder %s39, 1
      %p506 = por %p504, %p505
      %p507 = scmp.ne.s32.totalorder %s496, %s497
      %p508 = scmp.eq.s32.totalorder %s39, 0
      %p509 = por %p507, %p508
      %p510 = scmp.ne.s32.totalorder %s496, %s497
      %p511 = scmp.eq.s32.totalorder %s40, 1
      %p512 = por %p510, %p511
      %p514 = scmp.ne.s32.totalorder %s497, %s513
      %p515 = scmp.eq.s32.totalorder %s40, 0
      %p516 = por %p514, %p515
      %s517 = ssub.s32 %s34, %s41
      %p518 = scmp.eq.s32.totalorder %s517, 0
      %s520 = sadd.s32 %s519, 1
      %s521 = scalar_select %p518, %s519, %s520
      %p524 = pneg %p518
      %p525 = scmp.eq.s32.totalorder %s34, 1
      %p526 = por %p524, %p525
      %p527 = scmp.ne.s32.totalorder %s519, %s522
      %p528 = scmp.eq.s32.totalorder %s34, 0
      %p529 = por %p527, %p528
      %p530 = scmp.ne.s32.totalorder %s519, %s522
      %p531 = scmp.eq.s32.totalorder %s39, 1
      %p532 = por %p530, %p531
      %p533 = scmp.ne.s32.totalorder %s522, %s523
      %p534 = scmp.eq.s32.totalorder %s39, 0
      %p535 = por %p533, %p534
      %p536 = scmp.ne.s32.totalorder %s522, %s523
      %p537 = scmp.eq.s32.totalorder %s40, 1
      %p538 = por %p536, %p537
      %p540 = scmp.ne.s32.totalorder %s523, %s539
      %p541 = scmp.eq.s32.totalorder %s40, 0
      %p542 = por %p540, %p541
      %s543 = ssub.s32 %s34, %s41
      %p544 = scmp.eq.s32.totalorder %s543, 0
      %s546 = sadd.s32 %s545, 1
      %s547 = scalar_select %p544, %s545, %s546
      %p550 = pneg %p544
      %p551 = scmp.eq.s32.totalorder %s34, 1
      %p552 = por %p550, %p551
      %p553 = scmp.ne.s32.totalorder %s545, %s548
      %p554 = scmp.eq.s32.totalorder %s34, 0
      %p555 = por %p553, %p554
      %p556 = scmp.ne.s32.totalorder %s545, %s548
      %p557 = scmp.eq.s32.totalorder %s39, 1
      %p558 = por %p556, %p557
      %p559 = scmp.ne.s32.totalorder %s548, %s549
      %p560 = scmp.eq.s32.totalorder %s39, 0
      %p561 = por %p559, %p560
      %p562 = scmp.ne.s32.totalorder %s548, %s549
      %p563 = scmp.eq.s32.totalorder %s40, 1
      %p564 = por %p562, %p563
      %p566 = scmp.ne.s32.totalorder %s549, %s565
      %p567 = scmp.eq.s32.totalorder %s40, 0
      %p568 = por %p566, %p567
      %s569 = ssub.s32 %s34, %s41
      %p570 = scmp.eq.s32.totalorder %s569, 0
      %s572 = sadd.s32 %s571, 1
      %s573 = scalar_select %p570, %s571, %s572
      %p576 = pneg %p570
      %p577 = scmp.eq.s32.totalorder %s34, 1
      %p578 = por %p576, %p577
      %p579 = scmp.ne.s32.totalorder %s571, %s574
      %p580 = scmp.eq.s32.totalorder %s34, 0
      %p581 = por %p579, %p580
      %p582 = scmp.ne.s32.totalorder %s571, %s574
      %p583 = scmp.eq.s32.totalorder %s39, 1
      %p584 = por %p582, %p583
      %p585 = scmp.ne.s32.totalorder %s574, %s575
      %p586 = scmp.eq.s32.totalorder %s39, 0
      %p587 = por %p585, %p586
      %p588 = scmp.ne.s32.totalorder %s574, %s575
      %p589 = scmp.eq.s32.totalorder %s40, 1
      %p590 = por %p588, %p589
      %p592 = scmp.ne.s32.totalorder %s575, %s591
      %p593 = scmp.eq.s32.totalorder %s40, 0
      %p594 = por %p592, %p593
      %s595 = ssub.s32 %s34, %s41
      %p596 = scmp.eq.s32.totalorder %s595, 0
      %s598 = sadd.s32 %s597, 1
      %s599 = scalar_select %p596, %s597, %s598
      %p602 = pneg %p596
      %p603 = scmp.eq.s32.totalorder %s34, 1
      %p604 = por %p602, %p603
      %p605 = scmp.ne.s32.totalorder %s597, %s600
      %p606 = scmp.eq.s32.totalorder %s34, 0
      %p607 = por %p605, %p606
      %p608 = scmp.ne.s32.totalorder %s597, %s600
      %p609 = scmp.eq.s32.totalorder %s39, 1
      %p610 = por %p608, %p609
      %p611 = scmp.ne.s32.totalorder %s600, %s601
      %p612 = scmp.eq.s32.totalorder %s39, 0
      %p613 = por %p611, %p612
      %p614 = scmp.ne.s32.totalorder %s600, %s601
      %p615 = scmp.eq.s32.totalorder %s40, 1
      %p616 = por %p614, %p615
      %p618 = scmp.ne.s32.totalorder %s601, %s617
      %p619 = scmp.eq.s32.totalorder %s40, 0
      %p620 = por %p618, %p619
      %s621 = ssub.s32 %s34, %s41
      %p622 = scmp.eq.s32.totalorder %s621, 0
      %s624 = sadd.s32 %s623, 1
      %s625 = scalar_select %p622, %s623, %s624
      %p628 = pneg %p622
      %p629 = scmp.eq.s32.totalorder %s34, 1
      %p630 = por %p628, %p629
      %p631 = scmp.ne.s32.totalorder %s623, %s626
      %p632 = scmp.eq.s32.totalorder %s34, 0
      %p633 = por %p631, %p632
      %p634 = scmp.ne.s32.totalorder %s623, %s626
      %p635 = scmp.eq.s32.totalorder %s39, 1
      %p636 = por %p634, %p635
      %p637 = scmp.ne.s32.totalorder %s626, %s627
      %p638 = scmp.eq.s32.totalorder %s39, 0
      %p639 = por %p637, %p638
      %p640 = scmp.ne.s32.totalorder %s626, %s627
      %p641 = scmp.eq.s32.totalorder %s40, 1
      %p642 = por %p640, %p641
      %p644 = scmp.ne.s32.totalorder %s627, %s643
      %p645 = scmp.eq.s32.totalorder %s40, 0
      %p646 = por %p644, %p645
      %s648 = sadd.s32 %s647, 1
      %p651 = scmp.eq.s32.totalorder %s34, 1
      %p652 = scmp.ne.s32.totalorder %s647, %s649
      %p653 = scmp.eq.s32.totalorder %s34, 0
      %p654 = por %p652, %p653
      %p655 = scmp.ne.s32.totalorder %s647, %s649
      %p656 = scmp.eq.s32.totalorder %s39, 1
      %p657 = por %p655, %p656
      %p658 = scmp.ne.s32.totalorder %s649, %s650
      %p659 = scmp.eq.s32.totalorder %s39, 0
      %p660 = por %p658, %p659
      %p661 = scmp.ne.s32.totalorder %s649, %s650
      %p662 = scmp.eq.s32.totalorder %s40, 1
      %p663 = por %p661, %p662
      %p665 = scmp.ne.s32.totalorder %s650, %s664
      %p666 = scmp.eq.s32.totalorder %s40, 0
      %p667 = por %p665, %p666
      %p668 = scmp.le.s32.totalorder 1, %s34
      %p669 = scmp.lt.s32.totalorder %s34, 3
      %p670 = pnand %p668, %p669
      %p671 = pneg %p670
      // Predicated region
      $region9: #{ts_transformer_forward.1} parent=5 // pred_check
        _
      $region10: #{ts_transformer_forward.1} parent=5 // pred_check_branch
        %673 = sbr.rel (%p670) target = $region12
      $region11: #{ts_transformer_forward.1} parent=5 // pred_region
        %s674 = ssub.s32 %s34, 1
        // Predicated region
        $region13: #{ts_transformer_forward.1} parent=11 // pred_check
          %p675 = pneg %p55
        $region14: #{ts_transformer_forward.1} parent=11 // pred_check_branch
          %677 = sbr.rel (%p675) target = $region16
        $region15: #{ts_transformer_forward.1} parent=11 // pred_region
          _
        $region16: #{ts_transformer_forward.1} parent=11 // pred_fallthru
          _
        // Predicated region
        $region17: #{ts_transformer_forward.1} parent=11 // pred_check
          %p678 = pneg %p76
        $region18: #{ts_transformer_forward.1} parent=11 // pred_check_branch
          %680 = sbr.rel (%p678) target = $region20
        $region19: #{ts_transformer_forward.1} parent=11 // pred_region
          _
        $region20: #{ts_transformer_forward.1} parent=11 // pred_fallthru
          _
        // Predicated region
        $region21: #{ts_transformer_forward.1} parent=11 // pred_check
          %p681 = pneg %p97
        $region22: #{ts_transformer_forward.1} parent=11 // pred_check_branch
          %683 = sbr.rel (%p681) target = $region24
        $region23: #{ts_transformer_forward.1} parent=11 // pred_region
          _
        $region24: #{ts_transformer_forward.1} parent=11 // pred_fallthru
          _
        // Predicated region
        $region25: #{ts_transformer_forward.1} parent=11 // pred_check
          %p684 = pneg %p118
        $region26: #{ts_transformer_forward.1} parent=11 // pred_check_branch
          %686 = sbr.rel (%p684) target = $region28
        $region27: #{ts_transformer_forward.1} parent=11 // pred_region
          _
        $region28: #{ts_transformer_forward.1} parent=11 // pred_fallthru
          _
        // Predicated region
        $region29: #{ts_transformer_forward.1} parent=11 // pred_check
          %p687 = pneg %p139
        $region30: #{ts_transformer_forward.1} parent=11 // pred_check_branch
          %689 = sbr.rel (%p687) target = $region32
        $region31: #{ts_transformer_forward.1} parent=11 // pred_region
          _
        $region32: #{ts_transformer_forward.1} parent=11 // pred_fallthru
          _
        // Predicated region
        $region33: #{ts_transformer_forward.1} parent=11 // pred_check
          %p690 = pneg %p160
        $region34: #{ts_transformer_forward.1} parent=11 // pred_check_branch
          %692 = sbr.rel (%p690) target = $region36
        $region35: #{ts_transformer_forward.1} parent=11 // pred_region
          _
        $region36: #{ts_transformer_forward.1} parent=11 // pred_fallthru
          _
        // Predicated region
        $region37: #{ts_transformer_forward.1} parent=11 // pred_check
          %p693 = pneg %p181
        $region38: #{ts_transformer_forward.1} parent=11 // pred_check_branch
          %695 = sbr.rel (%p693) target = $region40
        $region39: #{ts_transformer_forward.1} parent=11 // pred_region
          _
        $region40: #{ts_transformer_forward.1} parent=11 // pred_fallthru
          _
        // Predicated region
        $region41: #{ts_transformer_forward.1} parent=11 // pred_check
          %p696 = pneg %p202
        $region42: #{ts_transformer_forward.1} parent=11 // pred_check_branch
          %698 = sbr.rel (%p696) target = $region44
        $region43: #{ts_transformer_forward.1} parent=11 // pred_region
          _
        $region44: #{ts_transformer_forward.1} parent=11 // pred_fallthru
          _
        // Predicated region
        $region45: #{ts_transformer_forward.1} parent=11 // pred_check
          %p699 = pneg %p223
        $region46: #{ts_transformer_forward.1} parent=11 // pred_check_branch
          %701 = sbr.rel (%p699) target = $region48
        $region47: #{ts_transformer_forward.1} parent=11 // pred_region
          _
        $region48: #{ts_transformer_forward.1} parent=11 // pred_fallthru
          _
      $region12: #{ts_transformer_forward.1} parent=5 // pred_fallthru
        _
      %p702 = scmp.lt.s32.totalorder %s34, 2
      // Predicated region
      $region49: #{ts_transformer_forward.1} parent=5 // pred_check
        %p703 = pneg %p702
      $region50: #{ts_transformer_forward.1} parent=5 // pred_check_branch
        %705 = sbr.rel (%p703) target = $region52
      $region51: #{ts_transformer_forward.1} parent=5 // pred_region
        // Predicated region
        $region53: #{ts_transformer_forward.1} parent=51 // pred_check
          %p706 = pneg %p243
        $region54: #{ts_transformer_forward.1} parent=51 // pred_check_branch
          %708 = sbr.rel (%p706) target = $region56
        $region55: #{ts_transformer_forward.1} parent=51 // pred_region
          %p709 = scmp.lt.s32.totalorder %s34, 1
          %s710 = scalar_select %p709, %s34, 1
          %s711 = smul.addr %s710, 4
          %s712 = smul.addr %s711, 8
          %s713 = scalar_lea.vmem %s9, %s712
        $region56: #{ts_transformer_forward.1} parent=51 // pred_fallthru
          _
        // Predicated region
        $region57: #{ts_transformer_forward.1} parent=51 // pred_check
          %p714 = pneg %p269
        $region58: #{ts_transformer_forward.1} parent=51 // pred_check_branch
          %716 = sbr.rel (%p714) target = $region60
        $region59: #{ts_transformer_forward.1} parent=51 // pred_region
          %p717 = scmp.lt.s32.totalorder %s34, 1
          %s718 = scalar_select %p717, %s34, 1
          %s719 = scalar_lea.vmem %s10, %s718
        $region60: #{ts_transformer_forward.1} parent=51 // pred_fallthru
          _
        // Predicated region
        $region61: #{ts_transformer_forward.1} parent=51 // pred_check
          %p720 = pneg %p295
        $region62: #{ts_transformer_forward.1} parent=51 // pred_check_branch
          %722 = sbr.rel (%p720) target = $region64
        $region63: #{ts_transformer_forward.1} parent=51 // pred_region
          %p723 = scmp.lt.s32.totalorder %s34, 1
          %s724 = scalar_select %p723, %s34, 1
          %s725 = smul.addr %s724, 4
          %s726 = smul.addr %s725, 8
          %s727 = scalar_lea.vmem %s11, %s726
        $region64: #{ts_transformer_forward.1} parent=51 // pred_fallthru
          _
        // Predicated region
        $region65: #{ts_transformer_forward.1} parent=51 // pred_check
          %p728 = pneg %p321
        $region66: #{ts_transformer_forward.1} parent=51 // pred_check_branch
          %730 = sbr.rel (%p728) target = $region68
        $region67: #{ts_transformer_forward.1} parent=51 // pred_region
          %p731 = scmp.lt.s32.totalorder %s34, 1
          %s732 = scalar_select %p731, %s34, 1
          %s733 = scalar_lea.vmem %s12, %s732
        $region68: #{ts_transformer_forward.1} parent=51 // pred_fallthru
          _
        // Predicated region
        $region69: #{ts_transformer_forward.1} parent=51 // pred_check
          %p734 = pneg %p347
        $region70: #{ts_transformer_forward.1} parent=51 // pred_check_branch
          %736 = sbr.rel (%p734) target = $region72
        $region71: #{ts_transformer_forward.1} parent=51 // pred_region
          %p737 = scmp.lt.s32.totalorder %s34, 1
          %s738 = scalar_select %p737, %s34, 1
          %s739 = smul.addr %s738, 4
          %s740 = smul.addr %s739, 8
          %s741 = scalar_lea.vmem %s13, %s740
        $region72: #{ts_transformer_forward.1} parent=51 // pred_fallthru
          _
        // Predicated region
        $region73: #{ts_transformer_forward.1} parent=51 // pred_check
          %p742 = pneg %p373
        $region74: #{ts_transformer_forward.1} parent=51 // pred_check_branch
          %744 = sbr.rel (%p742) target = $region76
        $region75: #{ts_transformer_forward.1} parent=51 // pred_region
          %p745 = scmp.lt.s32.totalorder %s34, 1
          %s746 = scalar_select %p745, %s34, 1
          %s747 = scalar_lea.vmem %s14, %s746
        $region76: #{ts_transformer_forward.1} parent=51 // pred_fallthru
          _
        // Predicated region
        $region77: #{ts_transformer_forward.1} parent=51 // pred_check
          %p748 = pneg %p399
        $region78: #{ts_transformer_forward.1} parent=51 // pred_check_branch
          %750 = sbr.rel (%p748) target = $region80
        $region79: #{ts_transformer_forward.1} parent=51 // pred_region
          %p751 = scmp.lt.s32.totalorder %s34, 1
          %s752 = scalar_select %p751, %s34, 1
          %s753 = smul.addr %s752, 4
          %s754 = smul.addr %s753, 8
          %s755 = scalar_lea.vmem %s15, %s754
        $region80: #{ts_transformer_forward.1} parent=51 // pred_fallthru
          _
        // Predicated region
        $region81: #{ts_transformer_forward.1} parent=51 // pred_check
          %p756 = pneg %p425
        $region82: #{ts_transformer_forward.1} parent=51 // pred_check_branch
          %758 = sbr.rel (%p756) target = $region84
        $region83: #{ts_transformer_forward.1} parent=51 // pred_region
          %p759 = scmp.lt.s32.totalorder %s34, 1
          %s760 = scalar_select %p759, %s34, 1
          %s761 = scalar_lea.vmem %s16, %s760
        $region84: #{ts_transformer_forward.1} parent=51 // pred_fallthru
          _
        // Predicated region
        $region85: #{ts_transformer_forward.1} parent=51 // pred_check
          %p762 = pneg %p451
        $region86: #{ts_transformer_forward.1} parent=51 // pred_check_branch
          %764 = sbr.rel (%p762) target = $region88
        $region87: #{ts_transformer_forward.1} parent=51 // pred_region
          %p765 = scmp.lt.s32.totalorder %s34, 1
          %s766 = scalar_select %p765, %s34, 1
          %s767 = scalar_lea.vmem %s17, %s766
        $region88: #{ts_transformer_forward.1} parent=51 // pred_fallthru
          _
        // Predicated region
        $region89: #{ts_transformer_forward.1} parent=51 // pred_check
          %p768 = pneg %p477
        $region90: #{ts_transformer_forward.1} parent=51 // pred_check_branch
          %770 = sbr.rel (%p768) target = $region92
        $region91: #{ts_transformer_forward.1} parent=51 // pred_region
          %p771 = scmp.lt.s32.totalorder %s34, 1
          %s772 = scalar_select %p771, %s34, 1
          %s773 = scalar_lea.vmem %s18, %s772
        $region92: #{ts_transformer_forward.1} parent=51 // pred_fallthru
          _
        // Predicated region
        $region93: #{ts_transformer_forward.1} parent=51 // pred_check
          %p774 = pneg %p503
        $region94: #{ts_transformer_forward.1} parent=51 // pred_check_branch
          %776 = sbr.rel (%p774) target = $region96
        $region95: #{ts_transformer_forward.1} parent=51 // pred_region
          %p777 = scmp.lt.s32.totalorder %s34, 1
          %s778 = scalar_select %p777, %s34, 1
          %s779 = smul.addr %s778, 64
          %s780 = smul.addr %s779, 8
          %s781 = scalar_lea.vmem %s19, %s780
        $region96: #{ts_transformer_forward.1} parent=51 // pred_fallthru
          _
        // Predicated region
        $region97: #{ts_transformer_forward.1} parent=51 // pred_check
          %p782 = pneg %p529
        $region98: #{ts_transformer_forward.1} parent=51 // pred_check_branch
          %784 = sbr.rel (%p782) target = $region100
        $region99: #{ts_transformer_forward.1} parent=51 // pred_region
          %p785 = scmp.lt.s32.totalorder %s34, 1
          %s786 = scalar_select %p785, %s34, 1
          %s787 = smul.addr %s786, 16
          %s788 = scalar_lea.vmem %s20, %s787
        $region100: #{ts_transformer_forward.1} parent=51 // pred_fallthru
          _
        // Predicated region
        $region101: #{ts_transformer_forward.1} parent=51 // pred_check
          %p789 = pneg %p555
        $region102: #{ts_transformer_forward.1} parent=51 // pred_check_branch
          %791 = sbr.rel (%p789) target = $region104
        $region103: #{ts_transformer_forward.1} parent=51 // pred_region
          %p792 = scmp.lt.s32.totalorder %s34, 1
          %s793 = scalar_select %p792, %s34, 1
          %s794 = smul.addr %s793, 256
          %s795 = smul.addr %s794, 8
          %s796 = scalar_lea.vmem %s21, %s795
        $region104: #{ts_transformer_forward.1} parent=51 // pred_fallthru
          _
        // Predicated region
        $region105: #{ts_transformer_forward.1} parent=51 // pred_check
          %p797 = pneg %p581
        $region106: #{ts_transformer_forward.1} parent=51 // pred_check_branch
          %799 = sbr.rel (%p797) target = $region108
        $region107: #{ts_transformer_forward.1} parent=51 // pred_region
          %p800 = scmp.lt.s32.totalorder %s34, 1
          %s801 = scalar_select %p800, %s34, 1
          %s802 = scalar_lea.vmem %s22, %s801
        $region108: #{ts_transformer_forward.1} parent=51 // pred_fallthru
          _
        // Predicated region
        $region109: #{ts_transformer_forward.1} parent=51 // pred_check
          %p803 = pneg %p607
        $region110: #{ts_transformer_forward.1} parent=51 // pred_check_branch
          %805 = sbr.rel (%p803) target = $region112
        $region111: #{ts_transformer_forward.1} parent=51 // pred_region
          %p806 = scmp.lt.s32.totalorder %s34, 1
          %s807 = scalar_select %p806, %s34, 1
          %s808 = scalar_lea.vmem %s23, %s807
        $region112: #{ts_transformer_forward.1} parent=51 // pred_fallthru
          _
        // Predicated region
        $region113: #{ts_transformer_forward.1} parent=51 // pred_check
          %p809 = pneg %p633
        $region114: #{ts_transformer_forward.1} parent=51 // pred_check_branch
          %811 = sbr.rel (%p809) target = $region116
        $region115: #{ts_transformer_forward.1} parent=51 // pred_region
          %p812 = scmp.lt.s32.totalorder %s34, 1
          %s813 = scalar_select %p812, %s34, 1
          %s814 = scalar_lea.vmem %s24, %s813
        $region116: #{ts_transformer_forward.1} parent=51 // pred_fallthru
          _
      $region52: #{ts_transformer_forward.1} parent=5 // pred_fallthru
        _
      %p815 = scmp.le.s32.totalorder 1, %s34
      %p816 = scmp.lt.s32.totalorder %s34, 3
      %p817 = pnand %p815, %p816
      %p818 = pneg %p817
      // Predicated region
      $region117: #{ts_transformer_forward.1} parent=5 // pred_check
        _
      $region118: #{ts_transformer_forward.1} parent=5 // pred_check_branch
        %820 = sbr.rel (%p817) target = $region120
      $region119: #{ts_transformer_forward.1} parent=5 // pred_region
        %s821 = ssub.s32 %s34, 1
        %p822 = pneg %p55
        %p823 = pneg %p52
        %p824 = pneg %p76
        %p825 = pneg %p73
        %p826 = pneg %p97
        %p827 = pneg %p94
        %p828 = pneg %p118
        %p829 = pneg %p115
        %p830 = pneg %p139
        %p831 = pneg %p136
        %p832 = pneg %p160
        %p833 = pneg %p157
        %p834 = pneg %p181
        %p835 = pneg %p178
        %p836 = pneg %p202
        %p837 = pneg %p199
        %p838 = pneg %p223
        %p839 = pneg %p220
        %p840 = scmp.lt.s32.totalorder %s39, 1
        %s841 = scalar_select %p840, %s39, 1
        %s842 = smul.addr %s841, 4
        %s843 = smul.addr %s842, 8
        %s844 = scalar_lea.vmem %s9, %s843
        %p845 = pneg %p249
        %p846 = pneg %p246
        %p847 = scmp.lt.s32.totalorder %s39, 1
        %s848 = scalar_select %p847, %s39, 1
        %s849 = scalar_lea.vmem %s10, %s848
        %p850 = pneg %p275
        %p851 = pneg %p272
        %p852 = scmp.lt.s32.totalorder %s39, 1
        %s853 = scalar_select %p852, %s39, 1
        %s854 = smul.addr %s853, 4
        %s855 = smul.addr %s854, 8
        %s856 = scalar_lea.vmem %s11, %s855
        %p857 = pneg %p301
        %p858 = pneg %p298
        %p859 = scmp.lt.s32.totalorder %s39, 1
        %s860 = scalar_select %p859, %s39, 1
        %s861 = scalar_lea.vmem %s12, %s860
        %p862 = pneg %p327
        %p863 = pneg %p324
        %p864 = scmp.lt.s32.totalorder %s39, 1
        %s865 = scalar_select %p864, %s39, 1
        %s866 = smul.addr %s865, 4
        %s867 = smul.addr %s866, 8
        %s868 = scalar_lea.vmem %s13, %s867
        %p869 = pneg %p353
        %p870 = pneg %p350
        %p871 = scmp.lt.s32.totalorder %s39, 1
        %s872 = scalar_select %p871, %s39, 1
        %s873 = scalar_lea.vmem %s14, %s872
        %p874 = pneg %p379
        %p875 = pneg %p376
        %p876 = scmp.lt.s32.totalorder %s39, 1
        %s877 = scalar_select %p876, %s39, 1
        %s878 = smul.addr %s877, 4
        %s879 = smul.addr %s878, 8
        %s880 = scalar_lea.vmem %s15, %s879
        %p881 = pneg %p405
        %p882 = pneg %p402
        %p883 = scmp.lt.s32.totalorder %s39, 1
        %s884 = scalar_select %p883, %s39, 1
        %s885 = scalar_lea.vmem %s16, %s884
        %p886 = pneg %p431
        %p887 = pneg %p428
        %p888 = scmp.lt.s32.totalorder %s39, 1
        %s889 = scalar_select %p888, %s39, 1
        %s890 = scalar_lea.vmem %s17, %s889
        %p891 = pneg %p457
        %p892 = pneg %p454
        %p893 = scmp.lt.s32.totalorder %s39, 1
        %s894 = scalar_select %p893, %s39, 1
        %s895 = scalar_lea.vmem %s18, %s894
        %p896 = pneg %p483
        %p897 = pneg %p480
        %p898 = scmp.lt.s32.totalorder %s39, 1
        %s899 = scalar_select %p898, %s39, 1
        %s900 = smul.addr %s899, 64
        %s901 = smul.addr %s900, 8
        %s902 = scalar_lea.vmem %s19, %s901
        %p903 = pneg %p509
        %p904 = pneg %p506
        %p905 = scmp.lt.s32.totalorder %s39, 1
        %s906 = scalar_select %p905, %s39, 1
        %s907 = smul.addr %s906, 16
        %s908 = scalar_lea.vmem %s20, %s907
        %p909 = pneg %p535
        %p910 = pneg %p532
        %p911 = scmp.lt.s32.totalorder %s39, 1
        %s912 = scalar_select %p911, %s39, 1
        %s913 = smul.addr %s912, 256
        %s914 = smul.addr %s913, 8
        %s915 = scalar_lea.vmem %s21, %s914
        %p916 = pneg %p561
        %p917 = pneg %p558
        %p918 = scmp.lt.s32.totalorder %s39, 1
        %s919 = scalar_select %p918, %s39, 1
        %s920 = scalar_lea.vmem %s22, %s919
        %p921 = pneg %p587
        %p922 = pneg %p584
        %p923 = scmp.lt.s32.totalorder %s39, 1
        %s924 = scalar_select %p923, %s39, 1
        %s925 = scalar_lea.vmem %s23, %s924
        %p926 = pneg %p613
        %p927 = pneg %p610
        %p928 = scmp.lt.s32.totalorder %s39, 1
        %s929 = scalar_select %p928, %s39, 1
        %s930 = scalar_lea.vmem %s24, %s929
        %p931 = pneg %p639
        %p932 = pneg %p636
        %p933 = pneg %p660
        %p934 = pneg %p657
        %p935 = scmp.lt.s32.totalorder %s39, 1
        %s936 = scalar_select %p935, %s39, 1
        %s937 = smul.addr %s936, 4
        %s938 = smul.addr %s937, 8
        %s939 = scalar_lea.vmem %s9, %s938
        %p940 = scmp.lt.s32.totalorder %s39, 1
        %s941 = scalar_select %p940, %s39, 1
        %s942 = scalar_lea.vmem %s10, %s941
        %p943 = scmp.lt.s32.totalorder %s39, 1
        %s944 = scalar_select %p943, %s39, 1
        %s945 = smul.addr %s944, 4
        %s946 = smul.addr %s945, 8
        %s947 = scalar_lea.vmem %s11, %s946
        %p948 = scmp.lt.s32.totalorder %s39, 1
        %s949 = scalar_select %p948, %s39, 1
        %s950 = scalar_lea.vmem %s12, %s949
        %p951 = scmp.lt.s32.totalorder %s39, 1
        %s952 = scalar_select %p951, %s39, 1
        %s953 = smul.addr %s952, 4
        %s954 = smul.addr %s953, 8
        %s955 = scalar_lea.vmem %s13, %s954
        %p956 = scmp.lt.s32.totalorder %s39, 1
        %s957 = scalar_select %p956, %s39, 1
        %s958 = scalar_lea.vmem %s14, %s957
        %p959 = scmp.lt.s32.totalorder %s39, 1
        %s960 = scalar_select %p959, %s39, 1
        %s961 = smul.addr %s960, 4
        %s962 = smul.addr %s961, 8
        %s963 = scalar_lea.vmem %s15, %s962
        %p964 = scmp.lt.s32.totalorder %s39, 1
        %s965 = scalar_select %p964, %s39, 1
        %s966 = scalar_lea.vmem %s16, %s965
        %p967 = scmp.lt.s32.totalorder %s39, 1
        %s968 = scalar_select %p967, %s39, 1
        %s969 = scalar_lea.vmem %s17, %s968
        %p970 = scmp.lt.s32.totalorder %s39, 1
        %s971 = scalar_select %p970, %s39, 1
        %s972 = scalar_lea.vmem %s18, %s971
        %p973 = scmp.lt.s32.totalorder %s39, 1
        %s974 = scalar_select %p973, %s39, 1
        %s975 = smul.addr %s974, 64
        %s976 = smul.addr %s975, 8
        %s977 = scalar_lea.vmem %s19, %s976
        %p978 = scmp.lt.s32.totalorder %s39, 1
        %s979 = scalar_select %p978, %s39, 1
        %s980 = smul.addr %s979, 16
        %s981 = scalar_lea.vmem %s20, %s980
        %p982 = scmp.lt.s32.totalorder %s39, 1
        %s983 = scalar_select %p982, %s39, 1
        %s984 = smul.addr %s983, 256
        %s985 = smul.addr %s984, 8
        %s986 = scalar_lea.vmem %s21, %s985
        %p987 = scmp.lt.s32.totalorder %s39, 1
        %s988 = scalar_select %p987, %s39, 1
        %s989 = scalar_lea.vmem %s22, %s988
        %p990 = scmp.lt.s32.totalorder %s39, 1
        %s991 = scalar_select %p990, %s39, 1
        %s992 = scalar_lea.vmem %s23, %s991
        %p993 = scmp.lt.s32.totalorder %s39, 1
        %s994 = scalar_select %p993, %s39, 1
        %s995 = scalar_lea.vmem %s24, %s994
        %p996 = scmp.eq.s32.totalorder %s39, 0
        // Predicated region
        $region121: #{ts_transformer_forward.1} parent=119 // pred_check
          %p997 = pneg %p996
        $region122: #{ts_transformer_forward.1} parent=119 // pred_check_branch
          %999 = sbr.rel (%p997) target = $region124
        $region123: #{ts_transformer_forward.1} parent=119 // pred_region
          %v1000 = vld [vmem:[%s0] sm:$0xff]
          %v1001 = vld [vmem:[%s0 + $0x8] sm:$0xff]
          %v1002 = vld [vmem:[%s2] sm:$0x1]
          %1004 = vset.pattern.permute.xlu0 0
          %1005 = vperm.xlu0 %1004, %v1000
          %v1006 = vpop.permute.xlu0 %1005
          %1009 = vset.pattern.permute.xlu0 0
          %1010 = vperm.xlu0 %1009, %v1001
          %v1011 = vpop.permute.xlu0 %1010
          %v1014 = vlaneseq
          %v1015 = vshrl.u32 %v1014, 7
          %v1016 = vsub.s32 0, %v1015
          %v1017 = vrot.slane %v1002, %v1016
          %v1019 = vmul.f32 %v1006, %v1017
          %v1020 = vmul.f32 %v1011, %v1017
          %v1021 = vld [vmem:[%s3] sm:$0x1]
          %v1023 = vlaneseq
          %v1024 = vshrl.u32 %v1023, 7
          %v1025 = vsub.s32 0, %v1024
          %v1026 = vrot.slane %v1021, %v1025
          %v1028 = vadd.f32 %v1019, %v1026
          %v1029 = vadd.f32 %v1020, %v1026
          %v1030 = vld [vmem:[%s1] sm:$0xff]
          %v1031 = vadd.f32 %v1028, %v1030
          %v1032 = vadd.f32 %v1029, %v1030
          %vm1033 = vcmask 261120
          %1034 = vst.msk [vmem:[#allocation2] sm:$0xff] %vm1033, %v1031
          %1035 = vst.msk [vmem:[#allocation2 + $0x8] sm:$0xff] %vm1033, %v1032
        $region124: #{ts_transformer_forward.1} parent=119 // pred_fallthru
          _
        %v1036 = vld [vmem:[#allocation2] sm:$0xff]
        %v1037 = vld [vmem:[#allocation2 + $0x8] sm:$0xff]
        %v1038 = vld [vmem:[%s939] sm:$0xff]
        %v1039 = vld [vmem:[%s939 + $0x8] sm:$0xff]
        %v1040 = vld [vmem:[%s939 + $0x10] sm:$0xff]
        %v1041 = vld [vmem:[%s939 + $0x18] sm:$0xff]
        %v1042 = vld [vmem:[%s942] sm:$0x1]
        %v1044 = vlaneseq
        %v1045 = vshrl.u32 %v1044, 7
        %v1046 = vsub.s32 0, %v1045
        %v1047 = vrot.slane %v1042, %v1046
        %vm1049 = vcmask 261120
        %v1051 = vsel %vm1049, %v1036, 0
        %v1054 = vsel %vm1049, %v1037, 0
        %1056 = vmatprep.subr.mxu0 0.0
        %1057 = vmatpush1.msra.mxu0 %v1038
        %1058 = vmatprep.subr.mxu0 0.0
        %1059 = vmatpush1.msra.mxu0 %v1039
        %1060 = vmatprep.subr.mxu0 0.0
        %1061 = vmatpush1.msra.mxu0 %v1040
        %1062 = vmatprep.subr.mxu0 0.0
        %1063 = vmatpush1.msra.mxu0 %v1041
        %1064 = vmatprep.subr.mxu0 0.0
        %1065 = vmatpush1.msra.mxu0 0.0
        %1066 = vmatprep.subr.mxu0 0.0
        %1067 = vmatpush1.msra.mxu0 0.0
        %1068 = vmatprep.subr.mxu0 0.0
        %1069 = vmatpush1.msra.mxu0 0.0
        %1070 = vmatprep.subr.mxu0 0.0
        %1071 = vmatpush1.msra.mxu0 0.0
        %1072 = vmatprep.subr.mxu0 0.0
        %1073 = vmatpush1.msra.mxu0 0.0
        %1074 = vmatprep.subr.mxu0 0.0
        %1075 = vmatpush1.msra.mxu0 0.0
        %1076 = vmatprep.subr.mxu0 0.0
        %1077 = vmatpush1.msra.mxu0 0.0
        %1078 = vmatprep.subr.mxu0 0.0
        %1079 = vmatpush1.msra.mxu0 0.0
        %1080 = vmatprep.subr.mxu0 0.0
        %1081 = vmatpush1.msra.mxu0 0.0
        %1082 = vmatprep.subr.mxu0 0.0
        %1083 = vmatpush1.msra.mxu0 0.0
        %1084 = vmatprep.subr.mxu0 0.0
        %1085 = vmatpush1.msra.mxu0 0.0
        %1086 = vmatprep.subr.mxu0 0.0
        %1087 = vmatpush1.msra.mxu0 0.0
        %1088 = vmatprep.subr.mxu0 0.0
        %1089 = vmatpush1.msra.mxu0 0.0
        %1090 = vmatprep.subr.mxu0 0.0
        %1091 = vmatpush1.msra.mxu0 0.0
        %1092 = vmatprep.subr.mxu0 0.0
        %1093 = vmatpush1.msra.mxu0 0.0
        %1094 = vmatprep.subr.mxu0 0.0
        %1095 = vmatpush1.msra.mxu0 0.0
        %1096 = vmatprep.subr.mxu0 0.0
        %1097 = vmatpush1.msra.mxu0 0.0
        %1098 = vmatprep.subr.mxu0 0.0
        %1099 = vmatpush1.msra.mxu0 0.0
        %1100 = vmatprep.subr.mxu0 0.0
        %1101 = vmatpush1.msra.mxu0 0.0
        %1102 = vmatprep.subr.mxu0 0.0
        %1103 = vmatpush1.msra.mxu0 0.0
        %1104 = vmatprep.subr.mxu0 0.0
        %1105 = vmatpush1.msra.mxu0 0.0
        %1106 = vmatprep.subr.mxu0 0.0
        %1107 = vmatpush1.msra.mxu0 0.0
        %1108 = vmatprep.subr.mxu0 0.0
        %1109 = vmatpush1.msra.mxu0 0.0
        %1110 = vmatprep.subr.mxu0 0.0
        %1111 = vmatpush1.msra.mxu0 0.0
        %1112 = vmatprep.subr.mxu0 0.0
        %1113 = vmatpush1.msra.mxu0 0.0
        %1114 = vmatprep.subr.mxu0 0.0
        %1115 = vmatpush1.msra.mxu0 0.0
        %1116 = vmatprep.subr.mxu0 0.0
        %1117 = vmatpush1.msra.mxu0 0.0
        %1118 = vmatprep.subr.mxu0 0.0
        %1119 = vmatpush1.msra.mxu0 0.0
        %1120 = vmatprep.mubr.f32.mxu0 0.0
        %1121 = vmatmul.mubr.f32.gmra.mrb[0].mxu0 %v1051
        %v1122 = vpop.f32.mrb[0].mxu0
        %v1123 = vadd.f32 %v1047, %v1122
        %v1124 = vpop.f32.mrb[0].mxu0
        %1125 = vmatprep.mubr.f32.mxu0 0.0
        %1126 = vmatmul.mubr.f32.gmra.mrb[0].mxu0 %v1054
        %v1127 = vpop.f32.mrb[0].mxu0
        %v1128 = vadd.f32 %v1047, %v1127
        %v1129 = vpop.f32.mrb[0].mxu0
        %1130 = vdwg.mxu0
        %v1131 = vmul.f32 %v1123, 0.35355338
        %v1132 = vmul.f32 %v1128, 0.35355338
        %v1133 = vld [vmem:[%s947] sm:$0xff]
        %v1134 = vld [vmem:[%s947 + $0x8] sm:$0xff]
        %v1135 = vld [vmem:[%s947 + $0x10] sm:$0xff]
        %v1136 = vld [vmem:[%s947 + $0x18] sm:$0xff]
        %v1137 = vld [vmem:[%s950] sm:$0x1]
        %v1139 = vlaneseq
        %v1140 = vshrl.u32 %v1139, 7
        %v1141 = vsub.s32 0, %v1140
        %v1142 = vrot.slane %v1137, %v1141
        %1144 = vmatprep.subr.mxu0 0.0
        %1145 = vmatpush1.msra.mxu0 %v1133
        %1146 = vmatprep.subr.mxu0 0.0
        %1147 = vmatpush1.msra.mxu0 %v1134
        %1148 = vmatprep.subr.mxu0 0.0
        %1149 = vmatpush1.msra.mxu0 %v1135
        %1150 = vmatprep.subr.mxu0 0.0
        %1151 = vmatpush1.msra.mxu0 %v1136
        %1152 = vmatprep.subr.mxu0 0.0
        %1153 = vmatpush1.msra.mxu0 0.0
        %1154 = vmatprep.subr.mxu0 0.0
        %1155 = vmatpush1.msra.mxu0 0.0
        %1156 = vmatprep.subr.mxu0 0.0
        %1157 = vmatpush1.msra.mxu0 0.0
        %1158 = vmatprep.subr.mxu0 0.0
        %1159 = vmatpush1.msra.mxu0 0.0
        %1160 = vmatprep.subr.mxu0 0.0
        %1161 = vmatpush1.msra.mxu0 0.0
        %1162 = vmatprep.subr.mxu0 0.0
        %1163 = vmatpush1.msra.mxu0 0.0
        %1164 = vmatprep.subr.mxu0 0.0
        %1165 = vmatpush1.msra.mxu0 0.0
        %1166 = vmatprep.subr.mxu0 0.0
        %1167 = vmatpush1.msra.mxu0 0.0
        %1168 = vmatprep.subr.mxu0 0.0
        %1169 = vmatpush1.msra.mxu0 0.0
        %1170 = vmatprep.subr.mxu0 0.0
        %1171 = vmatpush1.msra.mxu0 0.0
        %1172 = vmatprep.subr.mxu0 0.0
        %1173 = vmatpush1.msra.mxu0 0.0
        %1174 = vmatprep.subr.mxu0 0.0
        %1175 = vmatpush1.msra.mxu0 0.0
        %1176 = vmatprep.subr.mxu0 0.0
        %1177 = vmatpush1.msra.mxu0 0.0
        %1178 = vmatprep.subr.mxu0 0.0
        %1179 = vmatpush1.msra.mxu0 0.0
        %1180 = vmatprep.subr.mxu0 0.0
        %1181 = vmatpush1.msra.mxu0 0.0
        %1182 = vmatprep.subr.mxu0 0.0
        %1183 = vmatpush1.msra.mxu0 0.0
        %1184 = vmatprep.subr.mxu0 0.0
        %1185 = vmatpush1.msra.mxu0 0.0
        %1186 = vmatprep.subr.mxu0 0.0
        %1187 = vmatpush1.msra.mxu0 0.0
        %1188 = vmatprep.subr.mxu0 0.0
        %1189 = vmatpush1.msra.mxu0 0.0
        %1190 = vmatprep.subr.mxu0 0.0
        %1191 = vmatpush1.msra.mxu0 0.0
        %1192 = vmatprep.subr.mxu0 0.0
        %1193 = vmatpush1.msra.mxu0 0.0
        %1194 = vmatprep.subr.mxu0 0.0
        %1195 = vmatpush1.msra.mxu0 0.0
        %1196 = vmatprep.subr.mxu0 0.0
        %1197 = vmatpush1.msra.mxu0 0.0
        %1198 = vmatprep.subr.mxu0 0.0
        %1199 = vmatpush1.msra.mxu0 0.0
        %1200 = vmatprep.subr.mxu0 0.0
        %1201 = vmatpush1.msra.mxu0 0.0
        %1202 = vmatprep.subr.mxu0 0.0
        %1203 = vmatpush1.msra.mxu0 0.0
        %1204 = vmatprep.subr.mxu0 0.0
        %1205 = vmatpush1.msra.mxu0 0.0
        %1206 = vmatprep.subr.mxu0 0.0
        %1207 = vmatpush1.msra.mxu0 0.0
        %1208 = vmatprep.mubr.f32.mxu0 0.0
        %1209 = vmatmul.mubr.f32.gmra.mrb[0].mxu0 %v1051
        %v1210 = vpop.f32.mrb[0].mxu0
        %v1211 = vadd.f32 %v1142, %v1210
        %v1212 = vpop.f32.mrb[0].mxu0
        %1213 = vmatprep.mubr.f32.mxu0 0.0
        %1214 = vmatmul.mubr.f32.gmra.mrb[0].mxu0 %v1054
        %v1215 = vpop.f32.mrb[0].mxu0
        %v1216 = vadd.f32 %v1142, %v1215
        %v1217 = vpop.f32.mrb[0].mxu0
        %1218 = vdwg.mxu0
        %v1219 = vld [vmem:[%s955] sm:$0xff]
        %v1220 = vld [vmem:[%s955 + $0x8] sm:$0xff]
        %v1221 = vld [vmem:[%s955 + $0x10] sm:$0xff]
        %v1222 = vld [vmem:[%s955 + $0x18] sm:$0xff]
        %v1223 = vld [vmem:[%s958] sm:$0x1]
        %v1225 = vlaneseq
        %v1226 = vshrl.u32 %v1225, 7
        %v1227 = vsub.s32 0, %v1226
        %v1228 = vrot.slane %v1223, %v1227
        %1230 = vmatprep.subr.mxu0 0.0
        %1231 = vmatpush1.msra.mxu0 %v1219
        %1232 = vmatprep.subr.mxu0 0.0
        %1233 = vmatpush1.msra.mxu0 %v1220
        %1234 = vmatprep.subr.mxu0 0.0
        %1235 = vmatpush1.msra.mxu0 %v1221
        %1236 = vmatprep.subr.mxu0 0.0
        %1237 = vmatpush1.msra.mxu0 %v1222
        %1238 = vmatprep.subr.mxu0 0.0
        %1239 = vmatpush1.msra.mxu0 0.0
        %1240 = vmatprep.subr.mxu0 0.0
        %1241 = vmatpush1.msra.mxu0 0.0
        %1242 = vmatprep.subr.mxu0 0.0
        %1243 = vmatpush1.msra.mxu0 0.0
        %1244 = vmatprep.subr.mxu0 0.0
        %1245 = vmatpush1.msra.mxu0 0.0
        %1246 = vmatprep.subr.mxu0 0.0
        %1247 = vmatpush1.msra.mxu0 0.0
        %1248 = vmatprep.subr.mxu0 0.0
        %1249 = vmatpush1.msra.mxu0 0.0
        %1250 = vmatprep.subr.mxu0 0.0
        %1251 = vmatpush1.msra.mxu0 0.0
        %1252 = vmatprep.subr.mxu0 0.0
        %1253 = vmatpush1.msra.mxu0 0.0
        %1254 = vmatprep.subr.mxu0 0.0
        %1255 = vmatpush1.msra.mxu0 0.0
        %1256 = vmatprep.subr.mxu0 0.0
        %1257 = vmatpush1.msra.mxu0 0.0
        %1258 = vmatprep.subr.mxu0 0.0
        %1259 = vmatpush1.msra.mxu0 0.0
        %1260 = vmatprep.subr.mxu0 0.0
        %1261 = vmatpush1.msra.mxu0 0.0
        %1262 = vmatprep.subr.mxu0 0.0
        %1263 = vmatpush1.msra.mxu0 0.0
        %1264 = vmatprep.subr.mxu0 0.0
        %1265 = vmatpush1.msra.mxu0 0.0
        %1266 = vmatprep.subr.mxu0 0.0
        %1267 = vmatpush1.msra.mxu0 0.0
        %1268 = vmatprep.subr.mxu0 0.0
        %1269 = vmatpush1.msra.mxu0 0.0
        %1270 = vmatprep.subr.mxu0 0.0
        %1271 = vmatpush1.msra.mxu0 0.0
        %1272 = vmatprep.subr.mxu0 0.0
        %1273 = vmatpush1.msra.mxu0 0.0
        %1274 = vmatprep.subr.mxu0 0.0
        %1275 = vmatpush1.msra.mxu0 0.0
        %1276 = vmatprep.subr.mxu0 0.0
        %1277 = vmatpush1.msra.mxu0 0.0
        %1278 = vmatprep.subr.mxu0 0.0
        %1279 = vmatpush1.msra.mxu0 0.0
        %1280 = vmatprep.subr.mxu0 0.0
        %1281 = vmatpush1.msra.mxu0 0.0
        %1282 = vmatprep.subr.mxu0 0.0
        %1283 = vmatpush1.msra.mxu0 0.0
        %1284 = vmatprep.subr.mxu0 0.0
        %1285 = vmatpush1.msra.mxu0 0.0
        %1286 = vmatprep.subr.mxu0 0.0
        %1287 = vmatpush1.msra.mxu0 0.0
        %1288 = vmatprep.subr.mxu0 0.0
        %1289 = vmatpush1.msra.mxu0 0.0
        %1290 = vmatprep.subr.mxu0 0.0
        %1291 = vmatpush1.msra.mxu0 0.0
        %1292 = vmatprep.subr.mxu0 0.0
        %1293 = vmatpush1.msra.mxu0 0.0
        %1294 = vmatprep.mubr.f32.mxu0 0.0
        %1295 = vmatmul.mubr.f32.gmra.mrb[0].mxu0 %v1051
        %v1296 = vpop.f32.mrb[0].mxu0
        %v1297 = vadd.f32 %v1228, %v1296
        %v1298 = vpop.f32.mrb[0].mxu0
        %1299 = vmatprep.mubr.f32.mxu0 0.0
        %1300 = vmatmul.mubr.f32.gmra.mrb[0].mxu0 %v1054
        %v1301 = vpop.f32.mrb[0].mxu0
        %v1302 = vadd.f32 %v1228, %v1301
        %v1303 = vpop.f32.mrb[0].mxu0
        %1304 = vdwg.mxu0
        %vm1305 = vcmask 64512
        %v1307 = vsel %vm1305, %v1131, 0
        %v1310 = vsel %vm1305, %v1211, 0
        %1312 = vmatprep.subr.mxu0 0.0
        %1313 = vmatpush1.xpose.msra.mxu0 %v1310
        %1314 = vmatprep.subr.mxu0 0.0
        %1315 = vmatpush1.xpose.msra.mxu0 0.0
        %1316 = vmatprep.subr.mxu0 0.0
        %1317 = vmatpush1.xpose.msra.mxu0 0.0
        %1318 = vmatprep.subr.mxu0 0.0
        %1319 = vmatpush1.xpose.msra.mxu0 0.0
        %1320 = vmatprep.subr.mxu0 0.0
        %1321 = vmatpush1.xpose.msra.mxu0 0.0
        %1322 = vmatprep.subr.mxu0 0.0
        %1323 = vmatpush1.xpose.msra.mxu0 0.0
        %1324 = vmatprep.subr.mxu0 0.0
        %1325 = vmatpush1.xpose.msra.mxu0 0.0
        %1326 = vmatprep.subr.mxu0 0.0
        %1327 = vmatpush1.xpose.msra.mxu0 0.0
        %1328 = vmatprep.subr.mxu0 0.0
        %1329 = vmatpush1.xpose.msra.mxu0 0.0
        %1330 = vmatprep.subr.mxu0 0.0
        %1331 = vmatpush1.xpose.msra.mxu0 0.0
        %1332 = vmatprep.subr.mxu0 0.0
        %1333 = vmatpush1.xpose.msra.mxu0 0.0
        %1334 = vmatprep.subr.mxu0 0.0
        %1335 = vmatpush1.xpose.msra.mxu0 0.0
        %1336 = vmatprep.subr.mxu0 0.0
        %1337 = vmatpush1.xpose.msra.mxu0 0.0
        %1338 = vmatprep.subr.mxu0 0.0
        %1339 = vmatpush1.xpose.msra.mxu0 0.0
        %1340 = vmatprep.subr.mxu0 0.0
        %1341 = vmatpush1.xpose.msra.mxu0 0.0
        %1342 = vmatprep.subr.mxu0 0.0
        %1343 = vmatpush1.xpose.msra.mxu0 0.0
        %1344 = vmatprep.subr.mxu0 0.0
        %1345 = vmatpush1.xpose.msra.mxu0 0.0
        %1346 = vmatprep.subr.mxu0 0.0
        %1347 = vmatpush1.xpose.msra.mxu0 0.0
        %1348 = vmatprep.subr.mxu0 0.0
        %1349 = vmatpush1.xpose.msra.mxu0 0.0
        %1350 = vmatprep.subr.mxu0 0.0
        %1351 = vmatpush1.xpose.msra.mxu0 0.0
        %1352 = vmatprep.subr.mxu0 0.0
        %1353 = vmatpush1.xpose.msra.mxu0 0.0
        %1354 = vmatprep.subr.mxu0 0.0
        %1355 = vmatpush1.xpose.msra.mxu0 0.0
        %1356 = vmatprep.subr.mxu0 0.0
        %1357 = vmatpush1.xpose.msra.mxu0 0.0
        %1358 = vmatprep.subr.mxu0 0.0
        %1359 = vmatpush1.xpose.msra.mxu0 0.0
        %1360 = vmatprep.subr.mxu0 0.0
        %1361 = vmatpush1.xpose.msra.mxu0 0.0
        %1362 = vmatprep.subr.mxu0 0.0
        %1363 = vmatpush1.xpose.msra.mxu0 0.0
        %1364 = vmatprep.subr.mxu0 0.0
        %1365 = vmatpush1.xpose.msra.mxu0 0.0
        %1366 = vmatprep.subr.mxu0 0.0
        %1367 = vmatpush1.xpose.msra.mxu0 0.0
        %1368 = vmatprep.subr.mxu0 0.0
        %1369 = vmatpush1.xpose.msra.mxu0 0.0
        %1370 = vmatprep.subr.mxu0 0.0
        %1371 = vmatpush1.xpose.msra.mxu0 0.0
        %1372 = vmatprep.subr.mxu0 0.0
        %1373 = vmatpush1.xpose.msra.mxu0 0.0
        %1374 = vmatprep.subr.mxu0 0.0
        %1375 = vmatpush1.xpose.msra.mxu0 0.0
        %1376 = vmatprep.mubr.f32.mxu0 0.0
        %1377 = vmatmul.mubr.f32.gmra.mrb[0].mxu0 %v1307
        %v1378 = vpop.f32.mrb[0].mxu0
        %v1379 = vadd.f32 0.0, %v1378
        %v1380 = vpop.f32.mrb[0].mxu0
        %1381 = vdwg.mxu0
        %v1383 = vsel %vm1305, %v1132, 0
        %v1386 = vsel %vm1305, %v1216, 0
        %1388 = vmatprep.subr.mxu0 0.0
        %1389 = vmatpush1.xpose.msra.mxu0 %v1386
        %1390 = vmatprep.subr.mxu0 0.0
        %1391 = vmatpush1.xpose.msra.mxu0 0.0
        %1392 = vmatprep.subr.mxu0 0.0
        %1393 = vmatpush1.xpose.msra.mxu0 0.0
        %1394 = vmatprep.subr.mxu0 0.0
        %1395 = vmatpush1.xpose.msra.mxu0 0.0
        %1396 = vmatprep.subr.mxu0 0.0
        %1397 = vmatpush1.xpose.msra.mxu0 0.0
        %1398 = vmatprep.subr.mxu0 0.0
        %1399 = vmatpush1.xpose.msra.mxu0 0.0
        %1400 = vmatprep.subr.mxu0 0.0
        %1401 = vmatpush1.xpose.msra.mxu0 0.0
        %1402 = vmatprep.subr.mxu0 0.0
        %1403 = vmatpush1.xpose.msra.mxu0 0.0
        %1404 = vmatprep.subr.mxu0 0.0
        %1405 = vmatpush1.xpose.msra.mxu0 0.0
        %1406 = vmatprep.subr.mxu0 0.0
        %1407 = vmatpush1.xpose.msra.mxu0 0.0
        %1408 = vmatprep.subr.mxu0 0.0
        %1409 = vmatpush1.xpose.msra.mxu0 0.0
        %1410 = vmatprep.subr.mxu0 0.0
        %1411 = vmatpush1.xpose.msra.mxu0 0.0
        %1412 = vmatprep.subr.mxu0 0.0
        %1413 = vmatpush1.xpose.msra.mxu0 0.0
        %1414 = vmatprep.subr.mxu0 0.0
        %1415 = vmatpush1.xpose.msra.mxu0 0.0
        %1416 = vmatprep.subr.mxu0 0.0
        %1417 = vmatpush1.xpose.msra.mxu0 0.0
        %1418 = vmatprep.subr.mxu0 0.0
        %1419 = vmatpush1.xpose.msra.mxu0 0.0
        %1420 = vmatprep.subr.mxu0 0.0
        %1421 = vmatpush1.xpose.msra.mxu0 0.0
        %1422 = vmatprep.subr.mxu0 0.0
        %1423 = vmatpush1.xpose.msra.mxu0 0.0
        %1424 = vmatprep.subr.mxu0 0.0
        %1425 = vmatpush1.xpose.msra.mxu0 0.0
        %1426 = vmatprep.subr.mxu0 0.0
        %1427 = vmatpush1.xpose.msra.mxu0 0.0
        %1428 = vmatprep.subr.mxu0 0.0
        %1429 = vmatpush1.xpose.msra.mxu0 0.0
        %1430 = vmatprep.subr.mxu0 0.0
        %1431 = vmatpush1.xpose.msra.mxu0 0.0
        %1432 = vmatprep.subr.mxu0 0.0
        %1433 = vmatpush1.xpose.msra.mxu0 0.0
        %1434 = vmatprep.subr.mxu0 0.0
        %1435 = vmatpush1.xpose.msra.mxu0 0.0
        %1436 = vmatprep.subr.mxu0 0.0
        %1437 = vmatpush1.xpose.msra.mxu0 0.0
        %1438 = vmatprep.subr.mxu0 0.0
        %1439 = vmatpush1.xpose.msra.mxu0 0.0
        %1440 = vmatprep.subr.mxu0 0.0
        %1441 = vmatpush1.xpose.msra.mxu0 0.0
        %1442 = vmatprep.subr.mxu0 0.0
        %1443 = vmatpush1.xpose.msra.mxu0 0.0
        %1444 = vmatprep.subr.mxu0 0.0
        %1445 = vmatpush1.xpose.msra.mxu0 0.0
        %1446 = vmatprep.subr.mxu0 0.0
        %1447 = vmatpush1.xpose.msra.mxu0 0.0
        %1448 = vmatprep.subr.mxu0 0.0
        %1449 = vmatpush1.xpose.msra.mxu0 0.0
        %1450 = vmatprep.subr.mxu0 0.0
        %1451 = vmatpush1.xpose.msra.mxu0 0.0
        %1452 = vmatprep.mubr.f32.mxu0 0.0
        %1453 = vmatmul.mubr.f32.gmra.mrb[0].mxu0 %v1383
        %v1454 = vpop.f32.mrb[0].mxu0
        %v1455 = vadd.f32 0.0, %v1454
        %v1456 = vpop.f32.mrb[0].mxu0
        %1457 = vdwg.mxu0
        %v1458 = vsel %vm1305, %v1379, -inf
        %1459 = vmax.xlane.f32.xlu0 %v1458
        %v1460 = vpop.xlane.xlu0 %1459
        %v1461 = vsel %vm1305, %v1455, -inf
        %1462 = vmax.xlane.f32.xlu0 %v1461
        %v1463 = vpop.xlane.xlu0 %1462
        %v1464 = vsub.f32 %v1379, %v1460
        %v1465 = vsub.f32 %v1455, %v1463
        %v1466 = vmul.f32 %v1464, 1.442695
        %v1467 = vpow.pop %v1466
        %v1468 = vmul.f32 %v1465, 1.442695
        %v1469 = vpow.pop %v1468
        %v1470 = vsel %vm1305, %v1467, 0.0
        %1471 = vadd.xlane.f32.xlu0 %v1470
        %v1472 = vpop.xlane.xlu0 %1471
        %v1473 = vsel %vm1305, %v1469, 0.0
        %1474 = vadd.xlane.f32.xlu0 %v1473
        %v1475 = vpop.xlane.xlu0 %1474
        %v1477 = vsel %vm1305, %v1467, 0
        %1479 = vmatprep.subr.mxu0 0.0
        %1480 = vmatpush1.msra.mxu0 %v1297
        %1481 = vmatprep.subr.mxu0 0.0
        %1482 = vmatpush1.msra.mxu0 0.0
        %1483 = vmatprep.subr.mxu0 0.0
        %1484 = vmatpush1.msra.mxu0 0.0
        %1485 = vmatprep.subr.mxu0 0.0
        %1486 = vmatpush1.msra.mxu0 0.0
        %1487 = vmatprep.subr.mxu0 0.0
        %1488 = vmatpush1.msra.mxu0 0.0
        %1489 = vmatprep.subr.mxu0 0.0
        %1490 = vmatpush1.msra.mxu0 0.0
        %1491 = vmatprep.subr.mxu0 0.0
        %1492 = vmatpush1.msra.mxu0 0.0
        %1493 = vmatprep.subr.mxu0 0.0
        %1494 = vmatpush1.msra.mxu0 0.0
        %1495 = vmatprep.subr.mxu0 0.0
        %1496 = vmatpush1.msra.mxu0 0.0
        %1497 = vmatprep.subr.mxu0 0.0
        %1498 = vmatpush1.msra.mxu0 0.0
        %1499 = vmatprep.subr.mxu0 0.0
        %1500 = vmatpush1.msra.mxu0 0.0
        %1501 = vmatprep.subr.mxu0 0.0
        %1502 = vmatpush1.msra.mxu0 0.0
        %1503 = vmatprep.subr.mxu0 0.0
        %1504 = vmatpush1.msra.mxu0 0.0
        %1505 = vmatprep.subr.mxu0 0.0
        %1506 = vmatpush1.msra.mxu0 0.0
        %1507 = vmatprep.subr.mxu0 0.0
        %1508 = vmatpush1.msra.mxu0 0.0
        %1509 = vmatprep.subr.mxu0 0.0
        %1510 = vmatpush1.msra.mxu0 0.0
        %1511 = vmatprep.subr.mxu0 0.0
        %1512 = vmatpush1.msra.mxu0 0.0
        %1513 = vmatprep.subr.mxu0 0.0
        %1514 = vmatpush1.msra.mxu0 0.0
        %1515 = vmatprep.subr.mxu0 0.0
        %1516 = vmatpush1.msra.mxu0 0.0
        %1517 = vmatprep.subr.mxu0 0.0
        %1518 = vmatpush1.msra.mxu0 0.0
        %1519 = vmatprep.subr.mxu0 0.0
        %1520 = vmatpush1.msra.mxu0 0.0
        %1521 = vmatprep.subr.mxu0 0.0
        %1522 = vmatpush1.msra.mxu0 0.0
        %1523 = vmatprep.subr.mxu0 0.0
        %1524 = vmatpush1.msra.mxu0 0.0
        %1525 = vmatprep.subr.mxu0 0.0
        %1526 = vmatpush1.msra.mxu0 0.0
        %1527 = vmatprep.subr.mxu0 0.0
        %1528 = vmatpush1.msra.mxu0 0.0
        %1529 = vmatprep.subr.mxu0 0.0
        %1530 = vmatpush1.msra.mxu0 0.0
        %1531 = vmatprep.subr.mxu0 0.0
        %1532 = vmatpush1.msra.mxu0 0.0
        %1533 = vmatprep.subr.mxu0 0.0
        %1534 = vmatpush1.msra.mxu0 0.0
        %1535 = vmatprep.subr.mxu0 0.0
        %1536 = vmatpush1.msra.mxu0 0.0
        %1537 = vmatprep.subr.mxu0 0.0
        %1538 = vmatpush1.msra.mxu0 0.0
        %1539 = vmatprep.subr.mxu0 0.0
        %1540 = vmatpush1.msra.mxu0 0.0
        %1541 = vmatprep.subr.mxu0 0.0
        %1542 = vmatpush1.msra.mxu0 0.0
        %1543 = vmatprep.mubr.f32.mxu0 0.0
        %1544 = vmatmul.mubr.f32.gmra.mrb[0].mxu0 %v1477
        %v1545 = vpop.f32.mrb[0].mxu0
        %v1546 = vadd.f32 0.0, %v1545
        %v1547 = vpop.f32.mrb[0].mxu0
        %1548 = vdwg.mxu0
        %v1550 = vsel %vm1305, %v1469, 0
        %1552 = vmatprep.subr.mxu0 0.0
        %1553 = vmatpush1.msra.mxu0 %v1302
        %1554 = vmatprep.subr.mxu0 0.0
        %1555 = vmatpush1.msra.mxu0 0.0
        %1556 = vmatprep.subr.mxu0 0.0
        %1557 = vmatpush1.msra.mxu0 0.0
        %1558 = vmatprep.subr.mxu0 0.0
        %1559 = vmatpush1.msra.mxu0 0.0
        %1560 = vmatprep.subr.mxu0 0.0
        %1561 = vmatpush1.msra.mxu0 0.0
        %1562 = vmatprep.subr.mxu0 0.0
        %1563 = vmatpush1.msra.mxu0 0.0
        %1564 = vmatprep.subr.mxu0 0.0
        %1565 = vmatpush1.msra.mxu0 0.0
        %1566 = vmatprep.subr.mxu0 0.0
        %1567 = vmatpush1.msra.mxu0 0.0
        %1568 = vmatprep.subr.mxu0 0.0
        %1569 = vmatpush1.msra.mxu0 0.0
        %1570 = vmatprep.subr.mxu0 0.0
        %1571 = vmatpush1.msra.mxu0 0.0
        %1572 = vmatprep.subr.mxu0 0.0
        %1573 = vmatpush1.msra.mxu0 0.0
        %1574 = vmatprep.subr.mxu0 0.0
        %1575 = vmatpush1.msra.mxu0 0.0
        %1576 = vmatprep.subr.mxu0 0.0
        %1577 = vmatpush1.msra.mxu0 0.0
        %1578 = vmatprep.subr.mxu0 0.0
        %1579 = vmatpush1.msra.mxu0 0.0
        %1580 = vmatprep.subr.mxu0 0.0
        %1581 = vmatpush1.msra.mxu0 0.0
        %1582 = vmatprep.subr.mxu0 0.0
        %1583 = vmatpush1.msra.mxu0 0.0
        %1584 = vmatprep.subr.mxu0 0.0
        %1585 = vmatpush1.msra.mxu0 0.0
        %1586 = vmatprep.subr.mxu0 0.0
        %1587 = vmatpush1.msra.mxu0 0.0
        %1588 = vmatprep.subr.mxu0 0.0
        %1589 = vmatpush1.msra.mxu0 0.0
        %1590 = vmatprep.subr.mxu0 0.0
        %1591 = vmatpush1.msra.mxu0 0.0
        %1592 = vmatprep.subr.mxu0 0.0
        %1593 = vmatpush1.msra.mxu0 0.0
        %1594 = vmatprep.subr.mxu0 0.0
        %1595 = vmatpush1.msra.mxu0 0.0
        %1596 = vmatprep.subr.mxu0 0.0
        %1597 = vmatpush1.msra.mxu0 0.0
        %1598 = vmatprep.subr.mxu0 0.0
        %1599 = vmatpush1.msra.mxu0 0.0
        %1600 = vmatprep.subr.mxu0 0.0
        %1601 = vmatpush1.msra.mxu0 0.0
        %1602 = vmatprep.subr.mxu0 0.0
        %1603 = vmatpush1.msra.mxu0 0.0
        %1604 = vmatprep.subr.mxu0 0.0
        %1605 = vmatpush1.msra.mxu0 0.0
        %1606 = vmatprep.subr.mxu0 0.0
        %1607 = vmatpush1.msra.mxu0 0.0
        %1608 = vmatprep.subr.mxu0 0.0
        %1609 = vmatpush1.msra.mxu0 0.0
        %1610 = vmatprep.subr.mxu0 0.0
        %1611 = vmatpush1.msra.mxu0 0.0
        %1612 = vmatprep.subr.mxu0 0.0
        %1613 = vmatpush1.msra.mxu0 0.0
        %1614 = vmatprep.subr.mxu0 0.0
        %1615 = vmatpush1.msra.mxu0 0.0
        %1616 = vmatprep.mubr.f32.mxu0 0.0
        %1617 = vmatmul.mubr.f32.gmra.mrb[0].mxu0 %v1550
        %v1618 = vpop.f32.mrb[0].mxu0
        %v1619 = vadd.f32 0.0, %v1618
        %v1620 = vpop.f32.mrb[0].mxu0
        %1621 = vdwg.mxu0
        %v1622 = vrcp.pop %v1472
        %v1623 = vrcp.pop %v1475
        %v1624 = vmul.f32 %v1546, %v1622
        %v1625 = vmul.f32 %v1619, %v1623
        %1626 = vrot.lane.b32.xlu0 %v1131, 120
        %v1627 = vpop.permute.xlu0 %1626
        %1628 = vrot.lane.b32.xlu0 %v1211, 120
        %v1629 = vpop.permute.xlu0 %1628
        %v1630 = vsel %vm1305, %v1627, 0
        %v1632 = vsel %vm1305, %v1629, 0
        %1634 = vmatprep.subr.mxu0 0.0
        %1635 = vmatpush1.xpose.msra.mxu0 %v1632
        %1636 = vmatprep.subr.mxu0 0.0
        %1637 = vmatpush1.xpose.msra.mxu0 0.0
        %1638 = vmatprep.subr.mxu0 0.0
        %1639 = vmatpush1.xpose.msra.mxu0 0.0
        %1640 = vmatprep.subr.mxu0 0.0
        %1641 = vmatpush1.xpose.msra.mxu0 0.0
        %1642 = vmatprep.subr.mxu0 0.0
        %1643 = vmatpush1.xpose.msra.mxu0 0.0
        %1644 = vmatprep.subr.mxu0 0.0
        %1645 = vmatpush1.xpose.msra.mxu0 0.0
        %1646 = vmatprep.subr.mxu0 0.0
        %1647 = vmatpush1.xpose.msra.mxu0 0.0
        %1648 = vmatprep.subr.mxu0 0.0
        %1649 = vmatpush1.xpose.msra.mxu0 0.0
        %1650 = vmatprep.subr.mxu0 0.0
        %1651 = vmatpush1.xpose.msra.mxu0 0.0
        %1652 = vmatprep.subr.mxu0 0.0
        %1653 = vmatpush1.xpose.msra.mxu0 0.0
        %1654 = vmatprep.subr.mxu0 0.0
        %1655 = vmatpush1.xpose.msra.mxu0 0.0
        %1656 = vmatprep.subr.mxu0 0.0
        %1657 = vmatpush1.xpose.msra.mxu0 0.0
        %1658 = vmatprep.subr.mxu0 0.0
        %1659 = vmatpush1.xpose.msra.mxu0 0.0
        %1660 = vmatprep.subr.mxu0 0.0
        %1661 = vmatpush1.xpose.msra.mxu0 0.0
        %1662 = vmatprep.subr.mxu0 0.0
        %1663 = vmatpush1.xpose.msra.mxu0 0.0
        %1664 = vmatprep.subr.mxu0 0.0
        %1665 = vmatpush1.xpose.msra.mxu0 0.0
        %1666 = vmatprep.subr.mxu0 0.0
        %1667 = vmatpush1.xpose.msra.mxu0 0.0
        %1668 = vmatprep.subr.mxu0 0.0
        %1669 = vmatpush1.xpose.msra.mxu0 0.0
        %1670 = vmatprep.subr.mxu0 0.0
        %1671 = vmatpush1.xpose.msra.mxu0 0.0
        %1672 = vmatprep.subr.mxu0 0.0
        %1673 = vmatpush1.xpose.msra.mxu0 0.0
        %1674 = vmatprep.subr.mxu0 0.0
        %1675 = vmatpush1.xpose.msra.mxu0 0.0
        %1676 = vmatprep.subr.mxu0 0.0
        %1677 = vmatpush1.xpose.msra.mxu0 0.0
        %1678 = vmatprep.subr.mxu0 0.0
        %1679 = vmatpush1.xpose.msra.mxu0 0.0
        %1680 = vmatprep.subr.mxu0 0.0
        %1681 = vmatpush1.xpose.msra.mxu0 0.0
        %1682 = vmatprep.subr.mxu0 0.0
        %1683 = vmatpush1.xpose.msra.mxu0 0.0
        %1684 = vmatprep.subr.mxu0 0.0
        %1685 = vmatpush1.xpose.msra.mxu0 0.0
        %1686 = vmatprep.subr.mxu0 0.0
        %1687 = vmatpush1.xpose.msra.mxu0 0.0
        %1688 = vmatprep.subr.mxu0 0.0
        %1689 = vmatpush1.xpose.msra.mxu0 0.0
        %1690 = vmatprep.subr.mxu0 0.0
        %1691 = vmatpush1.xpose.msra.mxu0 0.0
        %1692 = vmatprep.subr.mxu0 0.0
        %1693 = vmatpush1.xpose.msra.mxu0 0.0
        %1694 = vmatprep.subr.mxu0 0.0
        %1695 = vmatpush1.xpose.msra.mxu0 0.0
        %1696 = vmatprep.subr.mxu0 0.0
        %1697 = vmatpush1.xpose.msra.mxu0 0.0
        %1698 = vmatprep.mubr.f32.mxu0 0.0
        %1699 = vmatmul.mubr.f32.gmra.mrb[0].mxu0 %v1630
        %v1700 = vpop.f32.mrb[0].mxu0
        %v1701 = vadd.f32 0.0, %v1700
        %v1702 = vpop.f32.mrb[0].mxu0
        %1703 = vdwg.mxu0
        %1704 = vrot.lane.b32.xlu0 %v1132, 120
        %v1705 = vpop.permute.xlu0 %1704
        %1706 = vrot.lane.b32.xlu0 %v1216, 120
        %v1707 = vpop.permute.xlu0 %1706
        %v1708 = vsel %vm1305, %v1705, 0
        %v1710 = vsel %vm1305, %v1707, 0
        %1712 = vmatprep.subr.mxu0 0.0
        %1713 = vmatpush1.xpose.msra.mxu0 %v1710
        %1714 = vmatprep.subr.mxu0 0.0
        %1715 = vmatpush1.xpose.msra.mxu0 0.0
        %1716 = vmatprep.subr.mxu0 0.0
        %1717 = vmatpush1.xpose.msra.mxu0 0.0
        %1718 = vmatprep.subr.mxu0 0.0
        %1719 = vmatpush1.xpose.msra.mxu0 0.0
        %1720 = vmatprep.subr.mxu0 0.0
        %1721 = vmatpush1.xpose.msra.mxu0 0.0
        %1722 = vmatprep.subr.mxu0 0.0
        %1723 = vmatpush1.xpose.msra.mxu0 0.0
        %1724 = vmatprep.subr.mxu0 0.0
        %1725 = vmatpush1.xpose.msra.mxu0 0.0
        %1726 = vmatprep.subr.mxu0 0.0
        %1727 = vmatpush1.xpose.msra.mxu0 0.0
        %1728 = vmatprep.subr.mxu0 0.0
        %1729 = vmatpush1.xpose.msra.mxu0 0.0
        %1730 = vmatprep.subr.mxu0 0.0
        %1731 = vmatpush1.xpose.msra.mxu0 0.0
        %1732 = vmatprep.subr.mxu0 0.0
        %1733 = vmatpush1.xpose.msra.mxu0 0.0
        %1734 = vmatprep.subr.mxu0 0.0
        %1735 = vmatpush1.xpose.msra.mxu0 0.0
        %1736 = vmatprep.subr.mxu0 0.0
        %1737 = vmatpush1.xpose.msra.mxu0 0.0
        %1738 = vmatprep.subr.mxu0 0.0
        %1739 = vmatpush1.xpose.msra.mxu0 0.0
        %1740 = vmatprep.subr.mxu0 0.0
        %1741 = vmatpush1.xpose.msra.mxu0 0.0
        %1742 = vmatprep.subr.mxu0 0.0
        %1743 = vmatpush1.xpose.msra.mxu0 0.0
        %1744 = vmatprep.subr.mxu0 0.0
        %1745 = vmatpush1.xpose.msra.mxu0 0.0
        %1746 = vmatprep.subr.mxu0 0.0
        %1747 = vmatpush1.xpose.msra.mxu0 0.0
        %1748 = vmatprep.subr.mxu0 0.0
        %1749 = vmatpush1.xpose.msra.mxu0 0.0
        %1750 = vmatprep.subr.mxu0 0.0
        %1751 = vmatpush1.xpose.msra.mxu0 0.0
        %1752 = vmatprep.subr.mxu0 0.0
        %1753 = vmatpush1.xpose.msra.mxu0 0.0
        %1754 = vmatprep.subr.mxu0 0.0
        %1755 = vmatpush1.xpose.msra.mxu0 0.0
        %1756 = vmatprep.subr.mxu0 0.0
        %1757 = vmatpush1.xpose.msra.mxu0 0.0
        %1758 = vmatprep.subr.mxu0 0.0
        %1759 = vmatpush1.xpose.msra.mxu0 0.0
        %1760 = vmatprep.subr.mxu0 0.0
        %1761 = vmatpush1.xpose.msra.mxu0 0.0
        %1762 = vmatprep.subr.mxu0 0.0
        %1763 = vmatpush1.xpose.msra.mxu0 0.0
        %1764 = vmatprep.subr.mxu0 0.0
        %1765 = vmatpush1.xpose.msra.mxu0 0.0
        %1766 = vmatprep.subr.mxu0 0.0
        %1767 = vmatpush1.xpose.msra.mxu0 0.0
        %1768 = vmatprep.subr.mxu0 0.0
        %1769 = vmatpush1.xpose.msra.mxu0 0.0
        %1770 = vmatprep.subr.mxu0 0.0
        %1771 = vmatpush1.xpose.msra.mxu0 0.0
        %1772 = vmatprep.subr.mxu0 0.0
        %1773 = vmatpush1.xpose.msra.mxu0 0.0
        %1774 = vmatprep.subr.mxu0 0.0
        %1775 = vmatpush1.xpose.msra.mxu0 0.0
        %1776 = vmatprep.mubr.f32.mxu0 0.0
        %1777 = vmatmul.mubr.f32.gmra.mrb[0].mxu0 %v1708
        %v1778 = vpop.f32.mrb[0].mxu0
        %v1779 = vadd.f32 0.0, %v1778
        %v1780 = vpop.f32.mrb[0].mxu0
        %1781 = vdwg.mxu0
        %v1782 = vsel %vm1305, %v1701, -inf
        %1783 = vmax.xlane.f32.xlu0 %v1782
        %v1784 = vpop.xlane.xlu0 %1783
        %v1785 = vsel %vm1305, %v1779, -inf
        %1786 = vmax.xlane.f32.xlu0 %v1785
        %v1787 = vpop.xlane.xlu0 %1786
        %v1788 = vsub.f32 %v1701, %v1784
        %v1789 = vsub.f32 %v1779, %v1787
        %v1790 = vmul.f32 %v1788, 1.442695
        %v1791 = vpow.pop %v1790
        %v1792 = vmul.f32 %v1789, 1.442695
        %v1793 = vpow.pop %v1792
        %v1794 = vsel %vm1305, %v1791, 0.0
        %1795 = vadd.xlane.f32.xlu0 %v1794
        %v1796 = vpop.xlane.xlu0 %1795
        %v1797 = vsel %vm1305, %v1793, 0.0
        %1798 = vadd.xlane.f32.xlu0 %v1797
        %v1799 = vpop.xlane.xlu0 %1798
        %1801 = vrot.lane.b32.xlu0 %v1297, 120
        %v1802 = vpop.permute.xlu0 %1801
        %v1805 = vsel %vm1305, %v1791, 0
        %1807 = vmatprep.subr.mxu0 0.0
        %1808 = vmatpush1.msra.mxu0 %v1802
        %1809 = vmatprep.subr.mxu0 0.0
        %1810 = vmatpush1.msra.mxu0 0.0
        %1811 = vmatprep.subr.mxu0 0.0
        %1812 = vmatpush1.msra.mxu0 0.0
        %1813 = vmatprep.subr.mxu0 0.0
        %1814 = vmatpush1.msra.mxu0 0.0
        %1815 = vmatprep.subr.mxu0 0.0
        %1816 = vmatpush1.msra.mxu0 0.0
        %1817 = vmatprep.subr.mxu0 0.0
        %1818 = vmatpush1.msra.mxu0 0.0
        %1819 = vmatprep.subr.mxu0 0.0
        %1820 = vmatpush1.msra.mxu0 0.0
        %1821 = vmatprep.subr.mxu0 0.0
        %1822 = vmatpush1.msra.mxu0 0.0
        %1823 = vmatprep.subr.mxu0 0.0
        %1824 = vmatpush1.msra.mxu0 0.0
        %1825 = vmatprep.subr.mxu0 0.0
        %1826 = vmatpush1.msra.mxu0 0.0
        %1827 = vmatprep.subr.mxu0 0.0
        %1828 = vmatpush1.msra.mxu0 0.0
        %1829 = vmatprep.subr.mxu0 0.0
        %1830 = vmatpush1.msra.mxu0 0.0
        %1831 = vmatprep.subr.mxu0 0.0
        %1832 = vmatpush1.msra.mxu0 0.0
        %1833 = vmatprep.subr.mxu0 0.0
        %1834 = vmatpush1.msra.mxu0 0.0
        %1835 = vmatprep.subr.mxu0 0.0
        %1836 = vmatpush1.msra.mxu0 0.0
        %1837 = vmatprep.subr.mxu0 0.0
        %1838 = vmatpush1.msra.mxu0 0.0
        %1839 = vmatprep.subr.mxu0 0.0
        %1840 = vmatpush1.msra.mxu0 0.0
        %1841 = vmatprep.subr.mxu0 0.0
        %1842 = vmatpush1.msra.mxu0 0.0
        %1843 = vmatprep.subr.mxu0 0.0
        %1844 = vmatpush1.msra.mxu0 0.0
        %1845 = vmatprep.subr.mxu0 0.0
        %1846 = vmatpush1.msra.mxu0 0.0
        %1847 = vmatprep.subr.mxu0 0.0
        %1848 = vmatpush1.msra.mxu0 0.0
        %1849 = vmatprep.subr.mxu0 0.0
        %1850 = vmatpush1.msra.mxu0 0.0
        %1851 = vmatprep.subr.mxu0 0.0
        %1852 = vmatpush1.msra.mxu0 0.0
        %1853 = vmatprep.subr.mxu0 0.0
        %1854 = vmatpush1.msra.mxu0 0.0
        %1855 = vmatprep.subr.mxu0 0.0
        %1856 = vmatpush1.msra.mxu0 0.0
        %1857 = vmatprep.subr.mxu0 0.0
        %1858 = vmatpush1.msra.mxu0 0.0
        %1859 = vmatprep.subr.mxu0 0.0
        %1860 = vmatpush1.msra.mxu0 0.0
        %1861 = vmatprep.subr.mxu0 0.0
        %1862 = vmatpush1.msra.mxu0 0.0
        %1863 = vmatprep.subr.mxu0 0.0
        %1864 = vmatpush1.msra.mxu0 0.0
        %1865 = vmatprep.subr.mxu0 0.0
        %1866 = vmatpush1.msra.mxu0 0.0
        %1867 = vmatprep.subr.mxu0 0.0
        %1868 = vmatpush1.msra.mxu0 0.0
        %1869 = vmatprep.subr.mxu0 0.0
        %1870 = vmatpush1.msra.mxu0 0.0
        %1871 = vmatprep.mubr.f32.mxu0 0.0
        %1872 = vmatmul.mubr.f32.gmra.mrb[0].mxu0 %v1805
        %v1873 = vpop.f32.mrb[0].mxu0
        %v1874 = vadd.f32 0.0, %v1873
        %v1875 = vpop.f32.mrb[0].mxu0
        %1876 = vdwg.mxu0
        %1878 = vrot.lane.b32.xlu0 %v1302, 120
        %v1879 = vpop.permute.xlu0 %1878
        %v1882 = vsel %vm1305, %v1793, 0
        %1884 = vmatprep.subr.mxu0 0.0
        %1885 = vmatpush1.msra.mxu0 %v1879
        %1886 = vmatprep.subr.mxu0 0.0
        %1887 = vmatpush1.msra.mxu0 0.0
        %1888 = vmatprep.subr.mxu0 0.0
        %1889 = vmatpush1.msra.mxu0 0.0
        %1890 = vmatprep.subr.mxu0 0.0
        %1891 = vmatpush1.msra.mxu0 0.0
        %1892 = vmatprep.subr.mxu0 0.0
        %1893 = vmatpush1.msra.mxu0 0.0
        %1894 = vmatprep.subr.mxu0 0.0
        %1895 = vmatpush1.msra.mxu0 0.0
        %1896 = vmatprep.subr.mxu0 0.0
        %1897 = vmatpush1.msra.mxu0 0.0
        %1898 = vmatprep.subr.mxu0 0.0
        %1899 = vmatpush1.msra.mxu0 0.0
        %1900 = vmatprep.subr.mxu0 0.0
        %1901 = vmatpush1.msra.mxu0 0.0
        %1902 = vmatprep.subr.mxu0 0.0
        %1903 = vmatpush1.msra.mxu0 0.0
        %1904 = vmatprep.subr.mxu0 0.0
        %1905 = vmatpush1.msra.mxu0 0.0
        %1906 = vmatprep.subr.mxu0 0.0
        %1907 = vmatpush1.msra.mxu0 0.0
        %1908 = vmatprep.subr.mxu0 0.0
        %1909 = vmatpush1.msra.mxu0 0.0
        %1910 = vmatprep.subr.mxu0 0.0
        %1911 = vmatpush1.msra.mxu0 0.0
        %1912 = vmatprep.subr.mxu0 0.0
        %1913 = vmatpush1.msra.mxu0 0.0
        %1914 = vmatprep.subr.mxu0 0.0
        %1915 = vmatpush1.msra.mxu0 0.0
        %1916 = vmatprep.subr.mxu0 0.0
        %1917 = vmatpush1.msra.mxu0 0.0
        %1918 = vmatprep.subr.mxu0 0.0
        %1919 = vmatpush1.msra.mxu0 0.0
        %1920 = vmatprep.subr.mxu0 0.0
        %1921 = vmatpush1.msra.mxu0 0.0
        %1922 = vmatprep.subr.mxu0 0.0
        %1923 = vmatpush1.msra.mxu0 0.0
        %1924 = vmatprep.subr.mxu0 0.0
        %1925 = vmatpush1.msra.mxu0 0.0
        %1926 = vmatprep.subr.mxu0 0.0
        %1927 = vmatpush1.msra.mxu0 0.0
        %1928 = vmatprep.subr.mxu0 0.0
        %1929 = vmatpush1.msra.mxu0 0.0
        %1930 = vmatprep.subr.mxu0 0.0
        %1931 = vmatpush1.msra.mxu0 0.0
        %1932 = vmatprep.subr.mxu0 0.0
        %1933 = vmatpush1.msra.mxu0 0.0
        %1934 = vmatprep.subr.mxu0 0.0
        %1935 = vmatpush1.msra.mxu0 0.0
        %1936 = vmatprep.subr.mxu0 0.0
        %1937 = vmatpush1.msra.mxu0 0.0
        %1938 = vmatprep.subr.mxu0 0.0
        %1939 = vmatpush1.msra.mxu0 0.0
        %1940 = vmatprep.subr.mxu0 0.0
        %1941 = vmatpush1.msra.mxu0 0.0
        %1942 = vmatprep.subr.mxu0 0.0
        %1943 = vmatpush1.msra.mxu0 0.0
        %1944 = vmatprep.subr.mxu0 0.0
        %1945 = vmatpush1.msra.mxu0 0.0
        %1946 = vmatprep.subr.mxu0 0.0
        %1947 = vmatpush1.msra.mxu0 0.0
        %1948 = vmatprep.mubr.f32.mxu0 0.0
        %1949 = vmatmul.mubr.f32.gmra.mrb[0].mxu0 %v1882
        %v1950 = vpop.f32.mrb[0].mxu0
        %v1951 = vadd.f32 0.0, %v1950
        %v1952 = vpop.f32.mrb[0].mxu0
        %1953 = vdwg.mxu0
        %v1954 = vrcp.pop %v1796
        %v1955 = vrcp.pop %v1799
        %v1956 = vmul.f32 %v1874, %v1954
        %v1957 = vmul.f32 %v1951, %v1955
        %1958 = vrot.lane.b32.xlu0 %v1131, 112
        %v1959 = vpop.permute.xlu0 %1958
        %1960 = vrot.lane.b32.xlu0 %v1211, 112
        %v1961 = vpop.permute.xlu0 %1960
        %v1962 = vsel %vm1305, %v1959, 0
        %v1964 = vsel %vm1305, %v1961, 0
        %1966 = vmatprep.subr.mxu0 0.0
        %1967 = vmatpush1.xpose.msra.mxu0 %v1964
        %1968 = vmatprep.subr.mxu0 0.0
        %1969 = vmatpush1.xpose.msra.mxu0 0.0
        %1970 = vmatprep.subr.mxu0 0.0
        %1971 = vmatpush1.xpose.msra.mxu0 0.0
        %1972 = vmatprep.subr.mxu0 0.0
        %1973 = vmatpush1.xpose.msra.mxu0 0.0
        %1974 = vmatprep.subr.mxu0 0.0
        %1975 = vmatpush1.xpose.msra.mxu0 0.0
        %1976 = vmatprep.subr.mxu0 0.0
        %1977 = vmatpush1.xpose.msra.mxu0 0.0
        %1978 = vmatprep.subr.mxu0 0.0
        %1979 = vmatpush1.xpose.msra.mxu0 0.0
        %1980 = vmatprep.subr.mxu0 0.0
        %1981 = vmatpush1.xpose.msra.mxu0 0.0
        %1982 = vmatprep.subr.mxu0 0.0
        %1983 = vmatpush1.xpose.msra.mxu0 0.0
        %1984 = vmatprep.subr.mxu0 0.0
        %1985 = vmatpush1.xpose.msra.mxu0 0.0
        %1986 = vmatprep.subr.mxu0 0.0
        %1987 = vmatpush1.xpose.msra.mxu0 0.0
        %1988 = vmatprep.subr.mxu0 0.0
        %1989 = vmatpush1.xpose.msra.mxu0 0.0
        %1990 = vmatprep.subr.mxu0 0.0
        %1991 = vmatpush1.xpose.msra.mxu0 0.0
        %1992 = vmatprep.subr.mxu0 0.0
        %1993 = vmatpush1.xpose.msra.mxu0 0.0
        %1994 = vmatprep.subr.mxu0 0.0
        %1995 = vmatpush1.xpose.msra.mxu0 0.0
        %1996 = vmatprep.subr.mxu0 0.0
        %1997 = vmatpush1.xpose.msra.mxu0 0.0
        %1998 = vmatprep.subr.mxu0 0.0
        %1999 = vmatpush1.xpose.msra.mxu0 0.0
        %2000 = vmatprep.subr.mxu0 0.0
        %2001 = vmatpush1.xpose.msra.mxu0 0.0
        %2002 = vmatprep.subr.mxu0 0.0
        %2003 = vmatpush1.xpose.msra.mxu0 0.0
        %2004 = vmatprep.subr.mxu0 0.0
        %2005 = vmatpush1.xpose.msra.mxu0 0.0
        %2006 = vmatprep.subr.mxu0 0.0
        %2007 = vmatpush1.xpose.msra.mxu0 0.0
        %2008 = vmatprep.subr.mxu0 0.0
        %2009 = vmatpush1.xpose.msra.mxu0 0.0
        %2010 = vmatprep.subr.mxu0 0.0
        %2011 = vmatpush1.xpose.msra.mxu0 0.0
        %2012 = vmatprep.subr.mxu0 0.0
        %2013 = vmatpush1.xpose.msra.mxu0 0.0
        %2014 = vmatprep.subr.mxu0 0.0
        %2015 = vmatpush1.xpose.msra.mxu0 0.0
        %2016 = vmatprep.subr.mxu0 0.0
        %2017 = vmatpush1.xpose.msra.mxu0 0.0
        %2018 = vmatprep.subr.mxu0 0.0
        %2019 = vmatpush1.xpose.msra.mxu0 0.0
        %2020 = vmatprep.subr.mxu0 0.0
        %2021 = vmatpush1.xpose.msra.mxu0 0.0
        %2022 = vmatprep.subr.mxu0 0.0
        %2023 = vmatpush1.xpose.msra.mxu0 0.0
        %2024 = vmatprep.subr.mxu0 0.0
        %2025 = vmatpush1.xpose.msra.mxu0 0.0
        %2026 = vmatprep.subr.mxu0 0.0
        %2027 = vmatpush1.xpose.msra.mxu0 0.0
        %2028 = vmatprep.subr.mxu0 0.0
        %2029 = vmatpush1.xpose.msra.mxu0 0.0
        %2030 = vmatprep.mubr.f32.mxu0 0.0
        %2031 = vmatmul.mubr.f32.gmra.mrb[0].mxu0 %v1962
        %v2032 = vpop.f32.mrb[0].mxu0
        %v2033 = vadd.f32 0.0, %v2032
        %v2034 = vpop.f32.mrb[0].mxu0
        %2035 = vdwg.mxu0
        %2036 = vrot.lane.b32.xlu0 %v1132, 112
        %v2037 = vpop.permute.xlu0 %2036
        %2038 = vrot.lane.b32.xlu0 %v1216, 112
        %v2039 = vpop.permute.xlu0 %2038
        %v2040 = vsel %vm1305, %v2037, 0
        %v2042 = vsel %vm1305, %v2039, 0
        %2044 = vmatprep.subr.mxu0 0.0
        %2045 = vmatpush1.xpose.msra.mxu0 %v2042
        %2046 = vmatprep.subr.mxu0 0.0
        %2047 = vmatpush1.xpose.msra.mxu0 0.0
        %2048 = vmatprep.subr.mxu0 0.0
        %2049 = vmatpush1.xpose.msra.mxu0 0.0
        %2050 = vmatprep.subr.mxu0 0.0
        %2051 = vmatpush1.xpose.msra.mxu0 0.0
        %2052 = vmatprep.subr.mxu0 0.0
        %2053 = vmatpush1.xpose.msra.mxu0 0.0
        %2054 = vmatprep.subr.mxu0 0.0
        %2055 = vmatpush1.xpose.msra.mxu0 0.0
        %2056 = vmatprep.subr.mxu0 0.0
        %2057 = vmatpush1.xpose.msra.mxu0 0.0
        %2058 = vmatprep.subr.mxu0 0.0
        %2059 = vmatpush1.xpose.msra.mxu0 0.0
        %2060 = vmatprep.subr.mxu0 0.0
        %2061 = vmatpush1.xpose.msra.mxu0 0.0
        %2062 = vmatprep.subr.mxu0 0.0
        %2063 = vmatpush1.xpose.msra.mxu0 0.0
        %2064 = vmatprep.subr.mxu0 0.0
        %2065 = vmatpush1.xpose.msra.mxu0 0.0
        %2066 = vmatprep.subr.mxu0 0.0
        %2067 = vmatpush1.xpose.msra.mxu0 0.0
        %2068 = vmatprep.subr.mxu0 0.0
        %2069 = vmatpush1.xpose.msra.mxu0 0.0
        %2070 = vmatprep.subr.mxu0 0.0
        %2071 = vmatpush1.xpose.msra.mxu0 0.0
        %2072 = vmatprep.subr.mxu0 0.0
        %2073 = vmatpush1.xpose.msra.mxu0 0.0
        %2074 = vmatprep.subr.mxu0 0.0
        %2075 = vmatpush1.xpose.msra.mxu0 0.0
        %2076 = vmatprep.subr.mxu0 0.0
        %2077 = vmatpush1.xpose.msra.mxu0 0.0
        %2078 = vmatprep.subr.mxu0 0.0
        %2079 = vmatpush1.xpose.msra.mxu0 0.0
        %2080 = vmatprep.subr.mxu0 0.0
        %2081 = vmatpush1.xpose.msra.mxu0 0.0
        %2082 = vmatprep.subr.mxu0 0.0
        %2083 = vmatpush1.xpose.msra.mxu0 0.0
        %2084 = vmatprep.subr.mxu0 0.0
        %2085 = vmatpush1.xpose.msra.mxu0 0.0
        %2086 = vmatprep.subr.mxu0 0.0
        %2087 = vmatpush1.xpose.msra.mxu0 0.0
        %2088 = vmatprep.subr.mxu0 0.0
        %2089 = vmatpush1.xpose.msra.mxu0 0.0
        %2090 = vmatprep.subr.mxu0 0.0
        %2091 = vmatpush1.xpose.msra.mxu0 0.0
        %2092 = vmatprep.subr.mxu0 0.0
        %2093 = vmatpush1.xpose.msra.mxu0 0.0
        %2094 = vmatprep.subr.mxu0 0.0
        %2095 = vmatpush1.xpose.msra.mxu0 0.0
        %2096 = vmatprep.subr.mxu0 0.0
        %2097 = vmatpush1.xpose.msra.mxu0 0.0
        %2098 = vmatprep.subr.mxu0 0.0
        %2099 = vmatpush1.xpose.msra.mxu0 0.0
        %2100 = vmatprep.subr.mxu0 0.0
        %2101 = vmatpush1.xpose.msra.mxu0 0.0
        %2102 = vmatprep.subr.mxu0 0.0
        %2103 = vmatpush1.xpose.msra.mxu0 0.0
        %2104 = vmatprep.subr.mxu0 0.0
        %2105 = vmatpush1.xpose.msra.mxu0 0.0
        %2106 = vmatprep.subr.mxu0 0.0
        %2107 = vmatpush1.xpose.msra.mxu0 0.0
        %2108 = vmatprep.mubr.f32.mxu0 0.0
        %2109 = vmatmul.mubr.f32.gmra.mrb[0].mxu0 %v2040
        %v2110 = vpop.f32.mrb[0].mxu0
        %v2111 = vadd.f32 0.0, %v2110
        %v2112 = vpop.f32.mrb[0].mxu0
        %2113 = vdwg.mxu0
        %v2114 = vsel %vm1305, %v2033, -inf
        %2115 = vmax.xlane.f32.xlu0 %v2114
        %v2116 = vpop.xlane.xlu0 %2115
        %v2117 = vsel %vm1305, %v2111, -inf
        %2118 = vmax.xlane.f32.xlu0 %v2117
        %v2119 = vpop.xlane.xlu0 %2118
        %v2120 = vsub.f32 %v2033, %v2116
        %v2121 = vsub.f32 %v2111, %v2119
        %v2122 = vmul.f32 %v2120, 1.442695
        %v2123 = vpow.pop %v2122
        %v2124 = vmul.f32 %v2121, 1.442695
        %v2125 = vpow.pop %v2124
        %v2126 = vsel %vm1305, %v2123, 0.0
        %2127 = vadd.xlane.f32.xlu0 %v2126
        %v2128 = vpop.xlane.xlu0 %2127
        %v2129 = vsel %vm1305, %v2125, 0.0
        %2130 = vadd.xlane.f32.xlu0 %v2129
        %v2131 = vpop.xlane.xlu0 %2130
        %2132 = vrot.lane.b32.xlu0 %v1297, 112
        %v2133 = vpop.permute.xlu0 %2132
        %v2136 = vsel %vm1305, %v2123, 0
        %2138 = vmatprep.subr.mxu0 0.0
        %2139 = vmatpush1.msra.mxu0 %v2133
        %2140 = vmatprep.subr.mxu0 0.0
        %2141 = vmatpush1.msra.mxu0 0.0
        %2142 = vmatprep.subr.mxu0 0.0
        %2143 = vmatpush1.msra.mxu0 0.0
        %2144 = vmatprep.subr.mxu0 0.0
        %2145 = vmatpush1.msra.mxu0 0.0
        %2146 = vmatprep.subr.mxu0 0.0
        %2147 = vmatpush1.msra.mxu0 0.0
        %2148 = vmatprep.subr.mxu0 0.0
        %2149 = vmatpush1.msra.mxu0 0.0
        %2150 = vmatprep.subr.mxu0 0.0
        %2151 = vmatpush1.msra.mxu0 0.0
        %2152 = vmatprep.subr.mxu0 0.0
        %2153 = vmatpush1.msra.mxu0 0.0
        %2154 = vmatprep.subr.mxu0 0.0
        %2155 = vmatpush1.msra.mxu0 0.0
        %2156 = vmatprep.subr.mxu0 0.0
        %2157 = vmatpush1.msra.mxu0 0.0
        %2158 = vmatprep.subr.mxu0 0.0
        %2159 = vmatpush1.msra.mxu0 0.0
        %2160 = vmatprep.subr.mxu0 0.0
        %2161 = vmatpush1.msra.mxu0 0.0
        %2162 = vmatprep.subr.mxu0 0.0
        %2163 = vmatpush1.msra.mxu0 0.0
        %2164 = vmatprep.subr.mxu0 0.0
        %2165 = vmatpush1.msra.mxu0 0.0
        %2166 = vmatprep.subr.mxu0 0.0
        %2167 = vmatpush1.msra.mxu0 0.0
        %2168 = vmatprep.subr.mxu0 0.0
        %2169 = vmatpush1.msra.mxu0 0.0
        %2170 = vmatprep.subr.mxu0 0.0
        %2171 = vmatpush1.msra.mxu0 0.0
        %2172 = vmatprep.subr.mxu0 0.0
        %2173 = vmatpush1.msra.mxu0 0.0
        %2174 = vmatprep.subr.mxu0 0.0
        %2175 = vmatpush1.msra.mxu0 0.0
        %2176 = vmatprep.subr.mxu0 0.0
        %2177 = vmatpush1.msra.mxu0 0.0
        %2178 = vmatprep.subr.mxu0 0.0
        %2179 = vmatpush1.msra.mxu0 0.0
        %2180 = vmatprep.subr.mxu0 0.0
        %2181 = vmatpush1.msra.mxu0 0.0
        %2182 = vmatprep.subr.mxu0 0.0
        %2183 = vmatpush1.msra.mxu0 0.0
        %2184 = vmatprep.subr.mxu0 0.0
        %2185 = vmatpush1.msra.mxu0 0.0
        %2186 = vmatprep.subr.mxu0 0.0
        %2187 = vmatpush1.msra.mxu0 0.0
        %2188 = vmatprep.subr.mxu0 0.0
        %2189 = vmatpush1.msra.mxu0 0.0
        %2190 = vmatprep.subr.mxu0 0.0
        %2191 = vmatpush1.msra.mxu0 0.0
        %2192 = vmatprep.subr.mxu0 0.0
        %2193 = vmatpush1.msra.mxu0 0.0
        %2194 = vmatprep.subr.mxu0 0.0
        %2195 = vmatpush1.msra.mxu0 0.0
        %2196 = vmatprep.subr.mxu0 0.0
        %2197 = vmatpush1.msra.mxu0 0.0
        %2198 = vmatprep.subr.mxu0 0.0
        %2199 = vmatpush1.msra.mxu0 0.0
        %2200 = vmatprep.subr.mxu0 0.0
        %2201 = vmatpush1.msra.mxu0 0.0
        %2202 = vmatprep.mubr.f32.mxu0 0.0
        %2203 = vmatmul.mubr.f32.gmra.mrb[0].mxu0 %v2136
        %v2204 = vpop.f32.mrb[0].mxu0
        %v2205 = vadd.f32 0.0, %v2204
        %v2206 = vpop.f32.mrb[0].mxu0
        %2207 = vdwg.mxu0
        %2208 = vrot.lane.b32.xlu0 %v1302, 112
        %v2209 = vpop.permute.xlu0 %2208
        %v2212 = vsel %vm1305, %v2125, 0
        %2214 = vmatprep.subr.mxu0 0.0
        %2215 = vmatpush1.msra.mxu0 %v2209
        %2216 = vmatprep.subr.mxu0 0.0
        %2217 = vmatpush1.msra.mxu0 0.0
        %2218 = vmatprep.subr.mxu0 0.0
        %2219 = vmatpush1.msra.mxu0 0.0
        %2220 = vmatprep.subr.mxu0 0.0
        %2221 = vmatpush1.msra.mxu0 0.0
        %2222 = vmatprep.subr.mxu0 0.0
        %2223 = vmatpush1.msra.mxu0 0.0
        %2224 = vmatprep.subr.mxu0 0.0
        %2225 = vmatpush1.msra.mxu0 0.0
        %2226 = vmatprep.subr.mxu0 0.0
        %2227 = vmatpush1.msra.mxu0 0.0
        %2228 = vmatprep.subr.mxu0 0.0
        %2229 = vmatpush1.msra.mxu0 0.0
        %2230 = vmatprep.subr.mxu0 0.0
        %2231 = vmatpush1.msra.mxu0 0.0
        %2232 = vmatprep.subr.mxu0 0.0
        %2233 = vmatpush1.msra.mxu0 0.0
        %2234 = vmatprep.subr.mxu0 0.0
        %2235 = vmatpush1.msra.mxu0 0.0
        %2236 = vmatprep.subr.mxu0 0.0
        %2237 = vmatpush1.msra.mxu0 0.0
        %2238 = vmatprep.subr.mxu0 0.0
        %2239 = vmatpush1.msra.mxu0 0.0
        %2240 = vmatprep.subr.mxu0 0.0
        %2241 = vmatpush1.msra.mxu0 0.0
        %2242 = vmatprep.subr.mxu0 0.0
        %2243 = vmatpush1.msra.mxu0 0.0
        %2244 = vmatprep.subr.mxu0 0.0
        %2245 = vmatpush1.msra.mxu0 0.0
        %2246 = vmatprep.subr.mxu0 0.0
        %2247 = vmatpush1.msra.mxu0 0.0
        %2248 = vmatprep.subr.mxu0 0.0
        %2249 = vmatpush1.msra.mxu0 0.0
        %2250 = vmatprep.subr.mxu0 0.0
        %2251 = vmatpush1.msra.mxu0 0.0
        %2252 = vmatprep.subr.mxu0 0.0
        %2253 = vmatpush1.msra.mxu0 0.0
        %2254 = vmatprep.subr.mxu0 0.0
        %2255 = vmatpush1.msra.mxu0 0.0
        %2256 = vmatprep.subr.mxu0 0.0
        %2257 = vmatpush1.msra.mxu0 0.0
        %2258 = vmatprep.subr.mxu0 0.0
        %2259 = vmatpush1.msra.mxu0 0.0
        %2260 = vmatprep.subr.mxu0 0.0
        %2261 = vmatpush1.msra.mxu0 0.0
        %2262 = vmatprep.subr.mxu0 0.0
        %2263 = vmatpush1.msra.mxu0 0.0
        %2264 = vmatprep.subr.mxu0 0.0
        %2265 = vmatpush1.msra.mxu0 0.0
        %2266 = vmatprep.subr.mxu0 0.0
        %2267 = vmatpush1.msra.mxu0 0.0
        %2268 = vmatprep.subr.mxu0 0.0
        %2269 = vmatpush1.msra.mxu0 0.0
        %2270 = vmatprep.subr.mxu0 0.0
        %2271 = vmatpush1.msra.mxu0 0.0
        %2272 = vmatprep.subr.mxu0 0.0
        %2273 = vmatpush1.msra.mxu0 0.0
        %2274 = vmatprep.subr.mxu0 0.0
        %2275 = vmatpush1.msra.mxu0 0.0
        %2276 = vmatprep.subr.mxu0 0.0
        %2277 = vmatpush1.msra.mxu0 0.0
        %2278 = vmatprep.mubr.f32.mxu0 0.0
        %2279 = vmatmul.mubr.f32.gmra.mrb[0].mxu0 %v2212
        %v2280 = vpop.f32.mrb[0].mxu0
        %v2281 = vadd.f32 0.0, %v2280
        %v2282 = vpop.f32.mrb[0].mxu0
        %2283 = vdwg.mxu0
        %v2284 = vrcp.pop %v2128
        %v2285 = vrcp.pop %v2131
        %v2286 = vmul.f32 %v2205, %v2284
        %v2287 = vmul.f32 %v2281, %v2285
        %2288 = vrot.lane.b32.xlu0 %v1131, 104
        %v2289 = vpop.permute.xlu0 %2288
        %2290 = vrot.lane.b32.xlu0 %v1211, 104
        %v2291 = vpop.permute.xlu0 %2290
        %v2292 = vsel %vm1305, %v2289, 0
        %v2294 = vsel %vm1305, %v2291, 0
        %2296 = vmatprep.subr.mxu0 0.0
        %2297 = vmatpush1.xpose.msra.mxu0 %v2294
        %2298 = vmatprep.subr.mxu0 0.0
        %2299 = vmatpush1.xpose.msra.mxu0 0.0
        %2300 = vmatprep.subr.mxu0 0.0
        %2301 = vmatpush1.xpose.msra.mxu0 0.0
        %2302 = vmatprep.subr.mxu0 0.0
        %2303 = vmatpush1.xpose.msra.mxu0 0.0
        %2304 = vmatprep.subr.mxu0 0.0
        %2305 = vmatpush1.xpose.msra.mxu0 0.0
        %2306 = vmatprep.subr.mxu0 0.0
        %2307 = vmatpush1.xpose.msra.mxu0 0.0
        %2308 = vmatprep.subr.mxu0 0.0
        %2309 = vmatpush1.xpose.msra.mxu0 0.0
        %2310 = vmatprep.subr.mxu0 0.0
        %2311 = vmatpush1.xpose.msra.mxu0 0.0
        %2312 = vmatprep.subr.mxu0 0.0
        %2313 = vmatpush1.xpose.msra.mxu0 0.0
        %2314 = vmatprep.subr.mxu0 0.0
        %2315 = vmatpush1.xpose.msra.mxu0 0.0
        %2316 = vmatprep.subr.mxu0 0.0
        %2317 = vmatpush1.xpose.msra.mxu0 0.0
        %2318 = vmatprep.subr.mxu0 0.0
        %2319 = vmatpush1.xpose.msra.mxu0 0.0
        %2320 = vmatprep.subr.mxu0 0.0
        %2321 = vmatpush1.xpose.msra.mxu0 0.0
        %2322 = vmatprep.subr.mxu0 0.0
        %2323 = vmatpush1.xpose.msra.mxu0 0.0
        %2324 = vmatprep.subr.mxu0 0.0
        %2325 = vmatpush1.xpose.msra.mxu0 0.0
        %2326 = vmatprep.subr.mxu0 0.0
        %2327 = vmatpush1.xpose.msra.mxu0 0.0
        %2328 = vmatprep.subr.mxu0 0.0
        %2329 = vmatpush1.xpose.msra.mxu0 0.0
        %2330 = vmatprep.subr.mxu0 0.0
        %2331 = vmatpush1.xpose.msra.mxu0 0.0
        %2332 = vmatprep.subr.mxu0 0.0
        %2333 = vmatpush1.xpose.msra.mxu0 0.0
        %2334 = vmatprep.subr.mxu0 0.0
        %2335 = vmatpush1.xpose.msra.mxu0 0.0
        %2336 = vmatprep.subr.mxu0 0.0
        %2337 = vmatpush1.xpose.msra.mxu0 0.0
        %2338 = vmatprep.subr.mxu0 0.0
        %2339 = vmatpush1.xpose.msra.mxu0 0.0
        %2340 = vmatprep.subr.mxu0 0.0
        %2341 = vmatpush1.xpose.msra.mxu0 0.0
        %2342 = vmatprep.subr.mxu0 0.0
        %2343 = vmatpush1.xpose.msra.mxu0 0.0
        %2344 = vmatprep.subr.mxu0 0.0
        %2345 = vmatpush1.xpose.msra.mxu0 0.0
        %2346 = vmatprep.subr.mxu0 0.0
        %2347 = vmatpush1.xpose.msra.mxu0 0.0
        %2348 = vmatprep.subr.mxu0 0.0
        %2349 = vmatpush1.xpose.msra.mxu0 0.0
        %2350 = vmatprep.subr.mxu0 0.0
        %2351 = vmatpush1.xpose.msra.mxu0 0.0
        %2352 = vmatprep.subr.mxu0 0.0
        %2353 = vmatpush1.xpose.msra.mxu0 0.0
        %2354 = vmatprep.subr.mxu0 0.0
        %2355 = vmatpush1.xpose.msra.mxu0 0.0
        %2356 = vmatprep.subr.mxu0 0.0
        %2357 = vmatpush1.xpose.msra.mxu0 0.0
        %2358 = vmatprep.subr.mxu0 0.0
        %2359 = vmatpush1.xpose.msra.mxu0 0.0
        %2360 = vmatprep.mubr.f32.mxu0 0.0
        %2361 = vmatmul.mubr.f32.gmra.mrb[0].mxu0 %v2292
        %v2362 = vpop.f32.mrb[0].mxu0
        %v2363 = vadd.f32 0.0, %v2362
        %v2364 = vpop.f32.mrb[0].mxu0
        %2365 = vdwg.mxu0
        %2366 = vrot.lane.b32.xlu0 %v1132, 104
        %v2367 = vpop.permute.xlu0 %2366
        %2368 = vrot.lane.b32.xlu0 %v1216, 104
        %v2369 = vpop.permute.xlu0 %2368
        %v2370 = vsel %vm1305, %v2367, 0
        %v2372 = vsel %vm1305, %v2369, 0
        %2374 = vmatprep.subr.mxu0 0.0
        %2375 = vmatpush1.xpose.msra.mxu0 %v2372
        %2376 = vmatprep.subr.mxu0 0.0
        %2377 = vmatpush1.xpose.msra.mxu0 0.0
        %2378 = vmatprep.subr.mxu0 0.0
        %2379 = vmatpush1.xpose.msra.mxu0 0.0
        %2380 = vmatprep.subr.mxu0 0.0
        %2381 = vmatpush1.xpose.msra.mxu0 0.0
        %2382 = vmatprep.subr.mxu0 0.0
        %2383 = vmatpush1.xpose.msra.mxu0 0.0
        %2384 = vmatprep.subr.mxu0 0.0
        %2385 = vmatpush1.xpose.msra.mxu0 0.0
        %2386 = vmatprep.subr.mxu0 0.0
        %2387 = vmatpush1.xpose.msra.mxu0 0.0
        %2388 = vmatprep.subr.mxu0 0.0
        %2389 = vmatpush1.xpose.msra.mxu0 0.0
        %2390 = vmatprep.subr.mxu0 0.0
        %2391 = vmatpush1.xpose.msra.mxu0 0.0
        %2392 = vmatprep.subr.mxu0 0.0
        %2393 = vmatpush1.xpose.msra.mxu0 0.0
        %2394 = vmatprep.subr.mxu0 0.0
        %2395 = vmatpush1.xpose.msra.mxu0 0.0
        %2396 = vmatprep.subr.mxu0 0.0
        %2397 = vmatpush1.xpose.msra.mxu0 0.0
        %2398 = vmatprep.subr.mxu0 0.0
        %2399 = vmatpush1.xpose.msra.mxu0 0.0
        %2400 = vmatprep.subr.mxu0 0.0
        %2401 = vmatpush1.xpose.msra.mxu0 0.0
        %2402 = vmatprep.subr.mxu0 0.0
        %2403 = vmatpush1.xpose.msra.mxu0 0.0
        %2404 = vmatprep.subr.mxu0 0.0
        %2405 = vmatpush1.xpose.msra.mxu0 0.0
        %2406 = vmatprep.subr.mxu0 0.0
        %2407 = vmatpush1.xpose.msra.mxu0 0.0
        %2408 = vmatprep.subr.mxu0 0.0
        %2409 = vmatpush1.xpose.msra.mxu0 0.0
        %2410 = vmatprep.subr.mxu0 0.0
        %2411 = vmatpush1.xpose.msra.mxu0 0.0
        %2412 = vmatprep.subr.mxu0 0.0
        %2413 = vmatpush1.xpose.msra.mxu0 0.0
        %2414 = vmatprep.subr.mxu0 0.0
        %2415 = vmatpush1.xpose.msra.mxu0 0.0
        %2416 = vmatprep.subr.mxu0 0.0
        %2417 = vmatpush1.xpose.msra.mxu0 0.0
        %2418 = vmatprep.subr.mxu0 0.0
        %2419 = vmatpush1.xpose.msra.mxu0 0.0
        %2420 = vmatprep.subr.mxu0 0.0
        %2421 = vmatpush1.xpose.msra.mxu0 0.0
        %2422 = vmatprep.subr.mxu0 0.0
        %2423 = vmatpush1.xpose.msra.mxu0 0.0
        %2424 = vmatprep.subr.mxu0 0.0
        %2425 = vmatpush1.xpose.msra.mxu0 0.0
        %2426 = vmatprep.subr.mxu0 0.0
        %2427 = vmatpush1.xpose.msra.mxu0 0.0
        %2428 = vmatprep.subr.mxu0 0.0
        %2429 = vmatpush1.xpose.msra.mxu0 0.0
        %2430 = vmatprep.subr.mxu0 0.0
        %2431 = vmatpush1.xpose.msra.mxu0 0.0
        %2432 = vmatprep.subr.mxu0 0.0
        %2433 = vmatpush1.xpose.msra.mxu0 0.0
        %2434 = vmatprep.subr.mxu0 0.0
        %2435 = vmatpush1.xpose.msra.mxu0 0.0
        %2436 = vmatprep.subr.mxu0 0.0
        %2437 = vmatpush1.xpose.msra.mxu0 0.0
        %2438 = vmatprep.mubr.f32.mxu0 0.0
        %2439 = vmatmul.mubr.f32.gmra.mrb[0].mxu0 %v2370
        %v2440 = vpop.f32.mrb[0].mxu0
        %v2441 = vadd.f32 0.0, %v2440
        %v2442 = vpop.f32.mrb[0].mxu0
        %2443 = vdwg.mxu0
        %v2444 = vsel %vm1305, %v2363, -inf
        %2445 = vmax.xlane.f32.xlu0 %v2444
        %v2446 = vpop.xlane.xlu0 %2445
        %v2447 = vsel %vm1305, %v2441, -inf
        %2448 = vmax.xlane.f32.xlu0 %v2447
        %v2449 = vpop.xlane.xlu0 %2448
        %v2450 = vsub.f32 %v2363, %v2446
        %v2451 = vsub.f32 %v2441, %v2449
        %v2452 = vmul.f32 %v2450, 1.442695
        %v2453 = vpow.pop %v2452
        %v2454 = vmul.f32 %v2451, 1.442695
        %v2455 = vpow.pop %v2454
        %v2456 = vsel %vm1305, %v2453, 0.0
        %2457 = vadd.xlane.f32.xlu0 %v2456
        %v2458 = vpop.xlane.xlu0 %2457
        %v2459 = vsel %vm1305, %v2455, 0.0
        %2460 = vadd.xlane.f32.xlu0 %v2459
        %v2461 = vpop.xlane.xlu0 %2460
        %2462 = vrot.lane.b32.xlu0 %v1297, 104
        %v2463 = vpop.permute.xlu0 %2462
        %v2466 = vsel %vm1305, %v2453, 0
        %2468 = vmatprep.subr.mxu0 0.0
        %2469 = vmatpush1.msra.mxu0 %v2463
        %2470 = vmatprep.subr.mxu0 0.0
        %2471 = vmatpush1.msra.mxu0 0.0
        %2472 = vmatprep.subr.mxu0 0.0
        %2473 = vmatpush1.msra.mxu0 0.0
        %2474 = vmatprep.subr.mxu0 0.0
        %2475 = vmatpush1.msra.mxu0 0.0
        %2476 = vmatprep.subr.mxu0 0.0
        %2477 = vmatpush1.msra.mxu0 0.0
        %2478 = vmatprep.subr.mxu0 0.0
        %2479 = vmatpush1.msra.mxu0 0.0
        %2480 = vmatprep.subr.mxu0 0.0
        %2481 = vmatpush1.msra.mxu0 0.0
        %2482 = vmatprep.subr.mxu0 0.0
        %2483 = vmatpush1.msra.mxu0 0.0
        %2484 = vmatprep.subr.mxu0 0.0
        %2485 = vmatpush1.msra.mxu0 0.0
        %2486 = vmatprep.subr.mxu0 0.0
        %2487 = vmatpush1.msra.mxu0 0.0
        %2488 = vmatprep.subr.mxu0 0.0
        %2489 = vmatpush1.msra.mxu0 0.0
        %2490 = vmatprep.subr.mxu0 0.0
        %2491 = vmatpush1.msra.mxu0 0.0
        %2492 = vmatprep.subr.mxu0 0.0
        %2493 = vmatpush1.msra.mxu0 0.0
        %2494 = vmatprep.subr.mxu0 0.0
        %2495 = vmatpush1.msra.mxu0 0.0
        %2496 = vmatprep.subr.mxu0 0.0
        %2497 = vmatpush1.msra.mxu0 0.0
        %2498 = vmatprep.subr.mxu0 0.0
        %2499 = vmatpush1.msra.mxu0 0.0
        %2500 = vmatprep.subr.mxu0 0.0
        %2501 = vmatpush1.msra.mxu0 0.0
        %2502 = vmatprep.subr.mxu0 0.0
        %2503 = vmatpush1.msra.mxu0 0.0
        %2504 = vmatprep.subr.mxu0 0.0
        %2505 = vmatpush1.msra.mxu0 0.0
        %2506 = vmatprep.subr.mxu0 0.0
        %2507 = vmatpush1.msra.mxu0 0.0
        %2508 = vmatprep.subr.mxu0 0.0
        %2509 = vmatpush1.msra.mxu0 0.0
        %2510 = vmatprep.subr.mxu0 0.0
        %2511 = vmatpush1.msra.mxu0 0.0
        %2512 = vmatprep.subr.mxu0 0.0
        %2513 = vmatpush1.msra.mxu0 0.0
        %2514 = vmatprep.subr.mxu0 0.0
        %2515 = vmatpush1.msra.mxu0 0.0
        %2516 = vmatprep.subr.mxu0 0.0
        %2517 = vmatpush1.msra.mxu0 0.0
        %2518 = vmatprep.subr.mxu0 0.0
        %2519 = vmatpush1.msra.mxu0 0.0
        %2520 = vmatprep.subr.mxu0 0.0
        %2521 = vmatpush1.msra.mxu0 0.0
        %2522 = vmatprep.subr.mxu0 0.0
        %2523 = vmatpush1.msra.mxu0 0.0
        %2524 = vmatprep.subr.mxu0 0.0
        %2525 = vmatpush1.msra.mxu0 0.0
        %2526 = vmatprep.subr.mxu0 0.0
        %2527 = vmatpush1.msra.mxu0 0.0
        %2528 = vmatprep.subr.mxu0 0.0
        %2529 = vmatpush1.msra.mxu0 0.0
        %2530 = vmatprep.subr.mxu0 0.0
        %2531 = vmatpush1.msra.mxu0 0.0
        %2532 = vmatprep.mubr.f32.mxu0 0.0
        %2533 = vmatmul.mubr.f32.gmra.mrb[0].mxu0 %v2466
        %v2534 = vpop.f32.mrb[0].mxu0
        %v2535 = vadd.f32 0.0, %v2534
        %v2536 = vpop.f32.mrb[0].mxu0
        %2537 = vdwg.mxu0
        %2538 = vrot.lane.b32.xlu0 %v1302, 104
        %v2539 = vpop.permute.xlu0 %2538
        %v2542 = vsel %vm1305, %v2455, 0
        %2544 = vmatprep.subr.mxu0 0.0
        %2545 = vmatpush1.msra.mxu0 %v2539
        %2546 = vmatprep.subr.mxu0 0.0
        %2547 = vmatpush1.msra.mxu0 0.0
        %2548 = vmatprep.subr.mxu0 0.0
        %2549 = vmatpush1.msra.mxu0 0.0
        %2550 = vmatprep.subr.mxu0 0.0
        %2551 = vmatpush1.msra.mxu0 0.0
        %2552 = vmatprep.subr.mxu0 0.0
        %2553 = vmatpush1.msra.mxu0 0.0
        %2554 = vmatprep.subr.mxu0 0.0
        %2555 = vmatpush1.msra.mxu0 0.0
        %2556 = vmatprep.subr.mxu0 0.0
        %2557 = vmatpush1.msra.mxu0 0.0
        %2558 = vmatprep.subr.mxu0 0.0
        %2559 = vmatpush1.msra.mxu0 0.0
        %2560 = vmatprep.subr.mxu0 0.0
        %2561 = vmatpush1.msra.mxu0 0.0
        %2562 = vmatprep.subr.mxu0 0.0
        %2563 = vmatpush1.msra.mxu0 0.0
        %2564 = vmatprep.subr.mxu0 0.0
        %2565 = vmatpush1.msra.mxu0 0.0
        %2566 = vmatprep.subr.mxu0 0.0
        %2567 = vmatpush1.msra.mxu0 0.0
        %2568 = vmatprep.subr.mxu0 0.0
        %2569 = vmatpush1.msra.mxu0 0.0
        %2570 = vmatprep.subr.mxu0 0.0
        %2571 = vmatpush1.msra.mxu0 0.0
        %2572 = vmatprep.subr.mxu0 0.0
        %2573 = vmatpush1.msra.mxu0 0.0
        %2574 = vmatprep.subr.mxu0 0.0
        %2575 = vmatpush1.msra.mxu0 0.0
        %2576 = vmatprep.subr.mxu0 0.0
        %2577 = vmatpush1.msra.mxu0 0.0
        %2578 = vmatprep.subr.mxu0 0.0
        %2579 = vmatpush1.msra.mxu0 0.0
        %2580 = vmatprep.subr.mxu0 0.0
        %2581 = vmatpush1.msra.mxu0 0.0
        %2582 = vmatprep.subr.mxu0 0.0
        %2583 = vmatpush1.msra.mxu0 0.0
        %2584 = vmatprep.subr.mxu0 0.0
        %2585 = vmatpush1.msra.mxu0 0.0
        %2586 = vmatprep.subr.mxu0 0.0
        %2587 = vmatpush1.msra.mxu0 0.0
        %2588 = vmatprep.subr.mxu0 0.0
        %2589 = vmatpush1.msra.mxu0 0.0
        %2590 = vmatprep.subr.mxu0 0.0
        %2591 = vmatpush1.msra.mxu0 0.0
        %2592 = vmatprep.subr.mxu0 0.0
        %2593 = vmatpush1.msra.mxu0 0.0
        %2594 = vmatprep.subr.mxu0 0.0
        %2595 = vmatpush1.msra.mxu0 0.0
        %2596 = vmatprep.subr.mxu0 0.0
        %2597 = vmatpush1.msra.mxu0 0.0
        %2598 = vmatprep.subr.mxu0 0.0
        %2599 = vmatpush1.msra.mxu0 0.0
        %2600 = vmatprep.subr.mxu0 0.0
        %2601 = vmatpush1.msra.mxu0 0.0
        %2602 = vmatprep.subr.mxu0 0.0
        %2603 = vmatpush1.msra.mxu0 0.0
        %2604 = vmatprep.subr.mxu0 0.0
        %2605 = vmatpush1.msra.mxu0 0.0
        %2606 = vmatprep.subr.mxu0 0.0
        %2607 = vmatpush1.msra.mxu0 0.0
        %2608 = vmatprep.mubr.f32.mxu0 0.0
        %2609 = vmatmul.mubr.f32.gmra.mrb[0].mxu0 %v2542
        %v2610 = vpop.f32.mrb[0].mxu0
        %v2611 = vadd.f32 0.0, %v2610
        %v2612 = vpop.f32.mrb[0].mxu0
        %2613 = vdwg.mxu0
        %v2614 = vrcp.pop %v2458
        %v2615 = vrcp.pop %v2461
        %v2616 = vmul.f32 %v2535, %v2614
        %v2617 = vmul.f32 %v2611, %v2615
        %2620 = vrot.lane.b32.xlu0 %v1956, 8
        %v2621 = vpop.permute.xlu0 %2620
        %2622 = vrot.lane.b32.xlu0 %v1957, 8
        %v2623 = vpop.permute.xlu0 %2622
        %2628 = vrot.lane.b32.xlu0 %v2286, 16
        %v2629 = vpop.permute.xlu0 %2628
        %2630 = vrot.lane.b32.xlu0 %v2287, 16
        %v2631 = vpop.permute.xlu0 %2630
        %2636 = vrot.lane.b32.xlu0 %v2616, 24
        %v2637 = vpop.permute.xlu0 %2636
        %2638 = vrot.lane.b32.xlu0 %v2617, 24
        %v2639 = vpop.permute.xlu0 %2638
        %v2642 = vsel %vm1305, %v1624, %v2621
        %v2643 = vsel %vm1305, %v1625, %v2623
        %vm2644 = vcmask 130048
        %v2645 = vsel %vm2644, %v2642, %v2629
        %v2646 = vsel %vm2644, %v2643, %v2631
        %vm2647 = vcmask 195584
        %v2648 = vsel %vm2647, %v2645, %v2637
        %v2649 = vsel %vm2647, %v2646, %v2639
        %v2650 = vld [vmem:[%s963] sm:$0xff]
        %v2651 = vld [vmem:[%s963 + $0x8] sm:$0xff]
        %v2652 = vld [vmem:[%s963 + $0x10] sm:$0xff]
        %v2653 = vld [vmem:[%s963 + $0x18] sm:$0xff]
        %v2654 = vld [vmem:[%s966] sm:$0x1]
        %v2656 = vlaneseq
        %v2657 = vshrl.u32 %v2656, 7
        %v2658 = vsub.s32 0, %v2657
        %v2659 = vrot.slane %v2654, %v2658
        %v2662 = vsel %vm1049, %v2648, 0
        %v2665 = vsel %vm1049, %v2649, 0
        %2667 = vmatprep.subr.mxu0 0.0
        %2668 = vmatpush1.msra.mxu0 %v2650
        %2669 = vmatprep.subr.mxu0 0.0
        %2670 = vmatpush1.msra.mxu0 %v2651
        %2671 = vmatprep.subr.mxu0 0.0
        %2672 = vmatpush1.msra.mxu0 %v2652
        %2673 = vmatprep.subr.mxu0 0.0
        %2674 = vmatpush1.msra.mxu0 %v2653
        %2675 = vmatprep.subr.mxu0 0.0
        %2676 = vmatpush1.msra.mxu0 0.0
        %2677 = vmatprep.subr.mxu0 0.0
        %2678 = vmatpush1.msra.mxu0 0.0
        %2679 = vmatprep.subr.mxu0 0.0
        %2680 = vmatpush1.msra.mxu0 0.0
        %2681 = vmatprep.subr.mxu0 0.0
        %2682 = vmatpush1.msra.mxu0 0.0
        %2683 = vmatprep.subr.mxu0 0.0
        %2684 = vmatpush1.msra.mxu0 0.0
        %2685 = vmatprep.subr.mxu0 0.0
        %2686 = vmatpush1.msra.mxu0 0.0
        %2687 = vmatprep.subr.mxu0 0.0
        %2688 = vmatpush1.msra.mxu0 0.0
        %2689 = vmatprep.subr.mxu0 0.0
        %2690 = vmatpush1.msra.mxu0 0.0
        %2691 = vmatprep.subr.mxu0 0.0
        %2692 = vmatpush1.msra.mxu0 0.0
        %2693 = vmatprep.subr.mxu0 0.0
        %2694 = vmatpush1.msra.mxu0 0.0
        %2695 = vmatprep.subr.mxu0 0.0
        %2696 = vmatpush1.msra.mxu0 0.0
        %2697 = vmatprep.subr.mxu0 0.0
        %2698 = vmatpush1.msra.mxu0 0.0
        %2699 = vmatprep.subr.mxu0 0.0
        %2700 = vmatpush1.msra.mxu0 0.0
        %2701 = vmatprep.subr.mxu0 0.0
        %2702 = vmatpush1.msra.mxu0 0.0
        %2703 = vmatprep.subr.mxu0 0.0
        %2704 = vmatpush1.msra.mxu0 0.0
        %2705 = vmatprep.subr.mxu0 0.0
        %2706 = vmatpush1.msra.mxu0 0.0
        %2707 = vmatprep.subr.mxu0 0.0
        %2708 = vmatpush1.msra.mxu0 0.0
        %2709 = vmatprep.subr.mxu0 0.0
        %2710 = vmatpush1.msra.mxu0 0.0
        %2711 = vmatprep.subr.mxu0 0.0
        %2712 = vmatpush1.msra.mxu0 0.0
        %2713 = vmatprep.subr.mxu0 0.0
        %2714 = vmatpush1.msra.mxu0 0.0
        %2715 = vmatprep.subr.mxu0 0.0
        %2716 = vmatpush1.msra.mxu0 0.0
        %2717 = vmatprep.subr.mxu0 0.0
        %2718 = vmatpush1.msra.mxu0 0.0
        %2719 = vmatprep.subr.mxu0 0.0
        %2720 = vmatpush1.msra.mxu0 0.0
        %2721 = vmatprep.subr.mxu0 0.0
        %2722 = vmatpush1.msra.mxu0 0.0
        %2723 = vmatprep.subr.mxu0 0.0
        %2724 = vmatpush1.msra.mxu0 0.0
        %2725 = vmatprep.subr.mxu0 0.0
        %2726 = vmatpush1.msra.mxu0 0.0
        %2727 = vmatprep.subr.mxu0 0.0
        %2728 = vmatpush1.msra.mxu0 0.0
        %2729 = vmatprep.subr.mxu0 0.0
        %2730 = vmatpush1.msra.mxu0 0.0
        %2731 = vmatprep.mubr.f32.mxu0 0.0
        %2732 = vmatmul.mubr.f32.gmra.mrb[0].mxu0 %v2662
        %v2733 = vpop.f32.mrb[0].mxu0
        %v2734 = vadd.f32 %v2659, %v2733
        %v2735 = vpop.f32.mrb[0].mxu0
        %2736 = vmatprep.mubr.f32.mxu0 0.0
        %2737 = vmatmul.mubr.f32.gmra.mrb[0].mxu0 %v2665
        %v2738 = vpop.f32.mrb[0].mxu0
        %v2739 = vadd.f32 %v2659, %v2738
        %v2740 = vpop.f32.mrb[0].mxu0
        %2741 = vdwg.mxu0
        %v2742 = vadd.f32 %v1036, %v2734
        %v2743 = vadd.f32 %v1037, %v2739
        %v2744 = vld [vmem:[%s969] sm:$0x1]
        %v2745 = vld [vmem:[%s972] sm:$0x1]
        %v2746 = vsel %vm1049, %v2742, 0.0
        %2747 = vadd.xlane.f32.xlu0 %v2746
        %v2748 = vpop.xlane.xlu0 %2747
        %v2749 = vsel %vm1049, %v2743, 0.0
        %2750 = vadd.xlane.f32.xlu0 %v2749
        %v2751 = vpop.xlane.xlu0 %2750
        %v2752 = vrcp.pop 32.0
        %v2753 = vmul.f32 %v2748, %v2752
        %v2754 = vmul.f32 %v2751, %v2752
        %v2755 = vsub.f32 %v2742, %v2753
        %v2756 = vsub.f32 %v2743, %v2754
        %v2757 = vmul.f32 %v2755, %v2755
        %v2758 = vmul.f32 %v2756, %v2756
        %v2759 = vsel %vm1049, %v2757, 0.0
        %2760 = vadd.xlane.f32.xlu0 %v2759
        %v2761 = vpop.xlane.xlu0 %2760
        %v2762 = vsel %vm1049, %v2758, 0.0
        %2763 = vadd.xlane.f32.xlu0 %v2762
        %v2764 = vpop.xlane.xlu0 %2763
        %v2765 = vmul.f32 %v2761, %v2752
        %v2766 = vmul.f32 %v2764, %v2752
        %v2767 = vadd.f32 %v2765, 1e-05
        %v2768 = vadd.f32 %v2766, 1e-05
        %v2769 = vrsqrt.pop %v2767
        %v2770 = vrsqrt.pop %v2768
        %v2771 = vmul.f32 %v2755, %v2769
        %v2772 = vmul.f32 %v2756, %v2770
        %v2774 = vlaneseq
        %v2775 = vshrl.u32 %v2774, 7
        %v2776 = vsub.s32 0, %v2775
        %v2777 = vrot.slane %v2744, %v2776
        %v2779 = vmul.f32 %v2771, %v2777
        %v2780 = vmul.f32 %v2772, %v2777
        %v2782 = vlaneseq
        %v2783 = vshrl.u32 %v2782, 7
        %v2784 = vsub.s32 0, %v2783
        %v2785 = vrot.slane %v2745, %v2784
        %v2787 = vadd.f32 %v2779, %v2785
        %v2788 = vadd.f32 %v2780, %v2785
        %v2789 = vld [vmem:[%s977] sm:$0xff]
        %v2790 = vld [vmem:[%s977 + $0x8] sm:$0xff]
        %v2791 = vld [vmem:[%s977 + $0x10] sm:$0xff]
        %v2792 = vld [vmem:[%s977 + $0x18] sm:$0xff]
        %v2793 = vld [vmem:[%s977 + $0x20] sm:$0xff]
        %v2794 = vld [vmem:[%s977 + $0x28] sm:$0xff]
        %v2795 = vld [vmem:[%s977 + $0x30] sm:$0xff]
        %v2796 = vld [vmem:[%s977 + $0x38] sm:$0xff]
        %v2797 = vld [vmem:[%s977 + $0x40] sm:$0xff]
        %v2798 = vld [vmem:[%s977 + $0x48] sm:$0xff]
        %v2799 = vld [vmem:[%s977 + $0x50] sm:$0xff]
        %v2800 = vld [vmem:[%s977 + $0x58] sm:$0xff]
        %v2801 = vld [vmem:[%s977 + $0x60] sm:$0xff]
        %v2802 = vld [vmem:[%s977 + $0x68] sm:$0xff]
        %v2803 = vld [vmem:[%s977 + $0x70] sm:$0xff]
        %v2804 = vld [vmem:[%s977 + $0x78] sm:$0xff]
        %v2805 = vld [vmem:[%s977 + $0x80] sm:$0xff]
        %v2806 = vld [vmem:[%s977 + $0x88] sm:$0xff]
        %v2807 = vld [vmem:[%s977 + $0x90] sm:$0xff]
        %v2808 = vld [vmem:[%s977 + $0x98] sm:$0xff]
        %v2809 = vld [vmem:[%s977 + $0xa0] sm:$0xff]
        %v2810 = vld [vmem:[%s977 + $0xa8] sm:$0xff]
        %v2811 = vld [vmem:[%s977 + $0xb0] sm:$0xff]
        %v2812 = vld [vmem:[%s977 + $0xb8] sm:$0xff]
        %v2813 = vld [vmem:[%s977 + $0xc0] sm:$0xff]
        %v2814 = vld [vmem:[%s977 + $0xc8] sm:$0xff]
        %v2815 = vld [vmem:[%s977 + $0xd0] sm:$0xff]
        %v2816 = vld [vmem:[%s977 + $0xd8] sm:$0xff]
        %v2817 = vld [vmem:[%s977 + $0xe0] sm:$0xff]
        %v2818 = vld [vmem:[%s977 + $0xe8] sm:$0xff]
        %v2819 = vld [vmem:[%s977 + $0xf0] sm:$0xff]
        %v2820 = vld [vmem:[%s977 + $0xf8] sm:$0xff]
        %v2821 = vld [vmem:[%s977 + $0x100] sm:$0xff]
        %v2822 = vld [vmem:[%s977 + $0x108] sm:$0xff]
        %v2823 = vld [vmem:[%s977 + $0x110] sm:$0xff]
        %v2824 = vld [vmem:[%s977 + $0x118] sm:$0xff]
        %v2825 = vld [vmem:[%s977 + $0x120] sm:$0xff]
        %v2826 = vld [vmem:[%s977 + $0x128] sm:$0xff]
        %v2827 = vld [vmem:[%s977 + $0x130] sm:$0xff]
        %v2828 = vld [vmem:[%s977 + $0x138] sm:$0xff]
        %v2829 = vld [vmem:[%s977 + $0x140] sm:$0xff]
        %v2830 = vld [vmem:[%s977 + $0x148] sm:$0xff]
        %v2831 = vld [vmem:[%s977 + $0x150] sm:$0xff]
        %v2832 = vld [vmem:[%s977 + $0x158] sm:$0xff]
        %v2833 = vld [vmem:[%s977 + $0x160] sm:$0xff]
        %v2834 = vld [vmem:[%s977 + $0x168] sm:$0xff]
        %v2835 = vld [vmem:[%s977 + $0x170] sm:$0xff]
        %v2836 = vld [vmem:[%s977 + $0x178] sm:$0xff]
        %v2837 = vld [vmem:[%s977 + $0x180] sm:$0xff]
        %v2838 = vld [vmem:[%s977 + $0x188] sm:$0xff]
        %v2839 = vld [vmem:[%s977 + $0x190] sm:$0xff]
        %v2840 = vld [vmem:[%s977 + $0x198] sm:$0xff]
        %v2841 = vld [vmem:[%s977 + $0x1a0] sm:$0xff]
        %v2842 = vld [vmem:[%s977 + $0x1a8] sm:$0xff]
        %v2843 = vld [vmem:[%s977 + $0x1b0] sm:$0xff]
        %v2844 = vld [vmem:[%s977 + $0x1b8] sm:$0xff]
        %v2845 = vld [vmem:[%s977 + $0x1c0] sm:$0xff]
        %v2846 = vld [vmem:[%s977 + $0x1c8] sm:$0xff]
        %v2847 = vld [vmem:[%s977 + $0x1d0] sm:$0xff]
        %v2848 = vld [vmem:[%s977 + $0x1d8] sm:$0xff]
        %v2849 = vld [vmem:[%s977 + $0x1e0] sm:$0xff]
        %v2850 = vld [vmem:[%s977 + $0x1e8] sm:$0xff]
        %v2851 = vld [vmem:[%s977 + $0x1f0] sm:$0xff]
        %v2852 = vld [vmem:[%s977 + $0x1f8] sm:$0xff]
        %v2853 = vld [vmem:[%s981] sm:$0xff]
        %v2854 = vld [vmem:[%s981 + $0x8] sm:$0xff]
        %v2857 = vlaneseq
        %v2858 = vshrl.u32 %v2857, 7
        %v2859 = vsub.s32 0, %v2858
        %v2860 = vrot.slane %v2853, %v2859
        %v2861 = vlaneseq
        %v2862 = vshrl.u32 %v2861, 7
        %v2863 = vsub.s32 1, %v2862
        %v2864 = vrot.slane %v2853, %v2863
        %v2865 = vlaneseq
        %v2866 = vshrl.u32 %v2865, 7
        %v2867 = vsub.s32 2, %v2866
        %v2868 = vrot.slane %v2853, %v2867
        %v2869 = vlaneseq
        %v2870 = vshrl.u32 %v2869, 7
        %v2871 = vsub.s32 3, %v2870
        %v2872 = vrot.slane %v2853, %v2871
        %v2873 = vlaneseq
        %v2874 = vshrl.u32 %v2873, 7
        %v2875 = vsub.s32 4, %v2874
        %v2876 = vrot.slane %v2853, %v2875
        %v2877 = vlaneseq
        %v2878 = vshrl.u32 %v2877, 7
        %v2879 = vsub.s32 5, %v2878
        %v2880 = vrot.slane %v2853, %v2879
        %v2881 = vlaneseq
        %v2882 = vshrl.u32 %v2881, 7
        %v2883 = vsub.s32 6, %v2882
        %v2884 = vrot.slane %v2853, %v2883
        %v2885 = vlaneseq
        %v2886 = vshrl.u32 %v2885, 7
        %v2887 = vsub.s32 7, %v2886
        %v2888 = vrot.slane %v2853, %v2887
        %v2889 = vlaneseq
        %v2890 = vshrl.u32 %v2889, 7
        %v2891 = vsub.s32 0, %v2890
        %v2892 = vrot.slane %v2854, %v2891
        %v2893 = vlaneseq
        %v2894 = vshrl.u32 %v2893, 7
        %v2895 = vsub.s32 1, %v2894
        %v2896 = vrot.slane %v2854, %v2895
        %v2897 = vlaneseq
        %v2898 = vshrl.u32 %v2897, 7
        %v2899 = vsub.s32 2, %v2898
        %v2900 = vrot.slane %v2854, %v2899
        %v2901 = vlaneseq
        %v2902 = vshrl.u32 %v2901, 7
        %v2903 = vsub.s32 3, %v2902
        %v2904 = vrot.slane %v2854, %v2903
        %v2905 = vlaneseq
        %v2906 = vshrl.u32 %v2905, 7
        %v2907 = vsub.s32 4, %v2906
        %v2908 = vrot.slane %v2854, %v2907
        %v2909 = vlaneseq
        %v2910 = vshrl.u32 %v2909, 7
        %v2911 = vsub.s32 5, %v2910
        %v2912 = vrot.slane %v2854, %v2911
        %v2913 = vlaneseq
        %v2914 = vshrl.u32 %v2913, 7
        %v2915 = vsub.s32 6, %v2914
        %v2916 = vrot.slane %v2854, %v2915
        %v2917 = vlaneseq
        %v2918 = vshrl.u32 %v2917, 7
        %v2919 = vsub.s32 7, %v2918
        %v2920 = vrot.slane %v2854, %v2919
        %v2938 = vsel %vm1049, %v2787, 0
        %v2941 = vsel %vm1049, %v2788, 0
        %2943 = vmatprep.subr.mxu0 %v2790
        %2944 = vmatpush1.msra.mxu0 %v2789
        %2945 = vmatprep.subr.mxu0 %v2806
        %2946 = vmatpush1.msra.mxu0 %v2805
        %2947 = vmatprep.subr.mxu0 %v2822
        %2948 = vmatpush1.msra.mxu0 %v2821
        %2949 = vmatprep.subr.mxu0 %v2838
        %2950 = vmatpush1.msra.mxu0 %v2837
        %2951 = vmatprep.subr.mxu0 0.0
        %2952 = vmatpush1.msra.mxu0 0.0
        %2953 = vmatprep.subr.mxu0 0.0
        %2954 = vmatpush1.msra.mxu0 0.0
        %2955 = vmatprep.subr.mxu0 0.0
        %2956 = vmatpush1.msra.mxu0 0.0
        %2957 = vmatprep.subr.mxu0 0.0
        %2958 = vmatpush1.msra.mxu0 0.0
        %2959 = vmatprep.subr.mxu0 0.0
        %2960 = vmatpush1.msra.mxu0 0.0
        %2961 = vmatprep.subr.mxu0 0.0
        %2962 = vmatpush1.msra.mxu0 0.0
        %2963 = vmatprep.subr.mxu0 0.0
        %2964 = vmatpush1.msra.mxu0 0.0
        %2965 = vmatprep.subr.mxu0 0.0
        %2966 = vmatpush1.msra.mxu0 0.0
        %2967 = vmatprep.subr.mxu0 0.0
        %2968 = vmatpush1.msra.mxu0 0.0
        %2969 = vmatprep.subr.mxu0 0.0
        %2970 = vmatpush1.msra.mxu0 0.0
        %2971 = vmatprep.subr.mxu0 0.0
        %2972 = vmatpush1.msra.mxu0 0.0
        %2973 = vmatprep.subr.mxu0 0.0
        %2974 = vmatpush1.msra.mxu0 0.0
        %2975 = vmatprep.subr.mxu0 0.0
        %2976 = vmatpush1.msra.mxu0 0.0
        %2977 = vmatprep.subr.mxu0 0.0
        %2978 = vmatpush1.msra.mxu0 0.0
        %2979 = vmatprep.subr.mxu0 0.0
        %2980 = vmatpush1.msra.mxu0 0.0
        %2981 = vmatprep.subr.mxu0 0.0
        %2982 = vmatpush1.msra.mxu0 0.0
        %2983 = vmatprep.subr.mxu0 0.0
        %2984 = vmatpush1.msra.mxu0 0.0
        %2985 = vmatprep.subr.mxu0 0.0
        %2986 = vmatpush1.msra.mxu0 0.0
        %2987 = vmatprep.subr.mxu0 0.0
        %2988 = vmatpush1.msra.mxu0 0.0
        %2989 = vmatprep.subr.mxu0 0.0
        %2990 = vmatpush1.msra.mxu0 0.0
        %2991 = vmatprep.subr.mxu0 0.0
        %2992 = vmatpush1.msra.mxu0 0.0
        %2993 = vmatprep.subr.mxu0 0.0
        %2994 = vmatpush1.msra.mxu0 0.0
        %2995 = vmatprep.subr.mxu0 0.0
        %2996 = vmatpush1.msra.mxu0 0.0
        %2997 = vmatprep.subr.mxu0 0.0
        %2998 = vmatpush1.msra.mxu0 0.0
        %2999 = vmatprep.subr.mxu0 0.0
        %3000 = vmatpush1.msra.mxu0 0.0
        %3001 = vmatprep.subr.mxu0 0.0
        %3002 = vmatpush1.msra.mxu0 0.0
        %3003 = vmatprep.subr.mxu0 0.0
        %3004 = vmatpush1.msra.mxu0 0.0
        %3005 = vmatprep.subr.mxu0 0.0
        %3006 = vmatpush1.msra.mxu0 0.0
        %3007 = vmatprep.mubr.f32.mxu0 0.0
        %3008 = vmatmul.mubr.f32.gmra.mrb[0].mxu0 %v2938
        %v3009 = vpop.f32.mrb[0].mxu0
        %v3010 = vadd.f32 %v2860, %v3009
        %v3011 = vpop.f32.mrb[0].mxu0
        %v3012 = vadd.f32 %v2864, %v3011
        %3013 = vmatprep.mubr.f32.mxu0 0.0
        %3014 = vmatmul.mubr.f32.gmra.mrb[0].mxu0 %v2941
        %v3015 = vpop.f32.mrb[0].mxu0
        %v3016 = vadd.f32 %v2860, %v3015
        %v3017 = vpop.f32.mrb[0].mxu0
        %v3018 = vadd.f32 %v2864, %v3017
        %3019 = vdwg.mxu0
        %3020 = vmatprep.subr.mxu0 %v2792
        %3021 = vmatpush1.msra.mxu0 %v2791
        %3022 = vmatprep.subr.mxu0 %v2808
        %3023 = vmatpush1.msra.mxu0 %v2807
        %3024 = vmatprep.subr.mxu0 %v2824
        %3025 = vmatpush1.msra.mxu0 %v2823
        %3026 = vmatprep.subr.mxu0 %v2840
        %3027 = vmatpush1.msra.mxu0 %v2839
        %3028 = vmatprep.subr.mxu0 0.0
        %3029 = vmatpush1.msra.mxu0 0.0
        %3030 = vmatprep.subr.mxu0 0.0
        %3031 = vmatpush1.msra.mxu0 0.0
        %3032 = vmatprep.subr.mxu0 0.0
        %3033 = vmatpush1.msra.mxu0 0.0
        %3034 = vmatprep.subr.mxu0 0.0
        %3035 = vmatpush1.msra.mxu0 0.0
        %3036 = vmatprep.subr.mxu0 0.0
        %3037 = vmatpush1.msra.mxu0 0.0
        %3038 = vmatprep.subr.mxu0 0.0
        %3039 = vmatpush1.msra.mxu0 0.0
        %3040 = vmatprep.subr.mxu0 0.0
        %3041 = vmatpush1.msra.mxu0 0.0
        %3042 = vmatprep.subr.mxu0 0.0
        %3043 = vmatpush1.msra.mxu0 0.0
        %3044 = vmatprep.subr.mxu0 0.0
        %3045 = vmatpush1.msra.mxu0 0.0
        %3046 = vmatprep.subr.mxu0 0.0
        %3047 = vmatpush1.msra.mxu0 0.0
        %3048 = vmatprep.subr.mxu0 0.0
        %3049 = vmatpush1.msra.mxu0 0.0
        %3050 = vmatprep.subr.mxu0 0.0
        %3051 = vmatpush1.msra.mxu0 0.0
        %3052 = vmatprep.subr.mxu0 0.0
        %3053 = vmatpush1.msra.mxu0 0.0
        %3054 = vmatprep.subr.mxu0 0.0
        %3055 = vmatpush1.msra.mxu0 0.0
        %3056 = vmatprep.subr.mxu0 0.0
        %3057 = vmatpush1.msra.mxu0 0.0
        %3058 = vmatprep.subr.mxu0 0.0
        %3059 = vmatpush1.msra.mxu0 0.0
        %3060 = vmatprep.subr.mxu0 0.0
        %3061 = vmatpush1.msra.mxu0 0.0
        %3062 = vmatprep.subr.mxu0 0.0
        %3063 = vmatpush1.msra.mxu0 0.0
        %3064 = vmatprep.subr.mxu0 0.0
        %3065 = vmatpush1.msra.mxu0 0.0
        %3066 = vmatprep.subr.mxu0 0.0
        %3067 = vmatpush1.msra.mxu0 0.0
        %3068 = vmatprep.subr.mxu0 0.0
        %3069 = vmatpush1.msra.mxu0 0.0
        %3070 = vmatprep.subr.mxu0 0.0
        %3071 = vmatpush1.msra.mxu0 0.0
        %3072 = vmatprep.subr.mxu0 0.0
        %3073 = vmatpush1.msra.mxu0 0.0
        %3074 = vmatprep.subr.mxu0 0.0
        %3075 = vmatpush1.msra.mxu0 0.0
        %3076 = vmatprep.subr.mxu0 0.0
        %3077 = vmatpush1.msra.mxu0 0.0
        %3078 = vmatprep.subr.mxu0 0.0
        %3079 = vmatpush1.msra.mxu0 0.0
        %3080 = vmatprep.subr.mxu0 0.0
        %3081 = vmatpush1.msra.mxu0 0.0
        %3082 = vmatprep.subr.mxu0 0.0
        %3083 = vmatpush1.msra.mxu0 0.0
        %3084 = vmatprep.mubr.f32.mxu0 0.0
        %3085 = vmatmul.mubr.f32.gmra.mrb[0].mxu0 %v2938
        %v3086 = vpop.f32.mrb[0].mxu0
        %v3087 = vadd.f32 %v2868, %v3086
        %v3088 = vpop.f32.mrb[0].mxu0
        %v3089 = vadd.f32 %v2872, %v3088
        %3090 = vmatprep.mubr.f32.mxu0 0.0
        %3091 = vmatmul.mubr.f32.gmra.mrb[0].mxu0 %v2941
        %v3092 = vpop.f32.mrb[0].mxu0
        %v3093 = vadd.f32 %v2868, %v3092
        %v3094 = vpop.f32.mrb[0].mxu0
        %v3095 = vadd.f32 %v2872, %v3094
        %3096 = vdwg.mxu0
        %3097 = vmatprep.subr.mxu0 %v2794
        %3098 = vmatpush1.msra.mxu0 %v2793
        %3099 = vmatprep.subr.mxu0 %v2810
        %3100 = vmatpush1.msra.mxu0 %v2809
        %3101 = vmatprep.subr.mxu0 %v2826
        %3102 = vmatpush1.msra.mxu0 %v2825
        %3103 = vmatprep.subr.mxu0 %v2842
        %3104 = vmatpush1.msra.mxu0 %v2841
        %3105 = vmatprep.subr.mxu0 0.0
        %3106 = vmatpush1.msra.mxu0 0.0
        %3107 = vmatprep.subr.mxu0 0.0
        %3108 = vmatpush1.msra.mxu0 0.0
        %3109 = vmatprep.subr.mxu0 0.0
        %3110 = vmatpush1.msra.mxu0 0.0
        %3111 = vmatprep.subr.mxu0 0.0
        %3112 = vmatpush1.msra.mxu0 0.0
        %3113 = vmatprep.subr.mxu0 0.0
        %3114 = vmatpush1.msra.mxu0 0.0
        %3115 = vmatprep.subr.mxu0 0.0
        %3116 = vmatpush1.msra.mxu0 0.0
        %3117 = vmatprep.subr.mxu0 0.0
        %3118 = vmatpush1.msra.mxu0 0.0
        %3119 = vmatprep.subr.mxu0 0.0
        %3120 = vmatpush1.msra.mxu0 0.0
        %3121 = vmatprep.subr.mxu0 0.0
        %3122 = vmatpush1.msra.mxu0 0.0
        %3123 = vmatprep.subr.mxu0 0.0
        %3124 = vmatpush1.msra.mxu0 0.0
        %3125 = vmatprep.subr.mxu0 0.0
        %3126 = vmatpush1.msra.mxu0 0.0
        %3127 = vmatprep.subr.mxu0 0.0
        %3128 = vmatpush1.msra.mxu0 0.0
        %3129 = vmatprep.subr.mxu0 0.0
        %3130 = vmatpush1.msra.mxu0 0.0
        %3131 = vmatprep.subr.mxu0 0.0
        %3132 = vmatpush1.msra.mxu0 0.0
        %3133 = vmatprep.subr.mxu0 0.0
        %3134 = vmatpush1.msra.mxu0 0.0
        %3135 = vmatprep.subr.mxu0 0.0
        %3136 = vmatpush1.msra.mxu0 0.0
        %3137 = vmatprep.subr.mxu0 0.0
        %3138 = vmatpush1.msra.mxu0 0.0
        %3139 = vmatprep.subr.mxu0 0.0
        %3140 = vmatpush1.msra.mxu0 0.0
        %3141 = vmatprep.subr.mxu0 0.0
        %3142 = vmatpush1.msra.mxu0 0.0
        %3143 = vmatprep.subr.mxu0 0.0
        %3144 = vmatpush1.msra.mxu0 0.0
        %3145 = vmatprep.subr.mxu0 0.0
        %3146 = vmatpush1.msra.mxu0 0.0
        %3147 = vmatprep.subr.mxu0 0.0
        %3148 = vmatpush1.msra.mxu0 0.0
        %3149 = vmatprep.subr.mxu0 0.0
        %3150 = vmatpush1.msra.mxu0 0.0
        %3151 = vmatprep.subr.mxu0 0.0
        %3152 = vmatpush1.msra.mxu0 0.0
        %3153 = vmatprep.subr.mxu0 0.0
        %3154 = vmatpush1.msra.mxu0 0.0
        %3155 = vmatprep.subr.mxu0 0.0
        %3156 = vmatpush1.msra.mxu0 0.0
        %3157 = vmatprep.subr.mxu0 0.0
        %3158 = vmatpush1.msra.mxu0 0.0
        %3159 = vmatprep.subr.mxu0 0.0
        %3160 = vmatpush1.msra.mxu0 0.0
        %3161 = vmatprep.mubr.f32.mxu0 0.0
        %3162 = vmatmul.mubr.f32.gmra.mrb[0].mxu0 %v2938
        %v3163 = vpop.f32.mrb[0].mxu0
        %v3164 = vadd.f32 %v2876, %v3163
        %v3165 = vpop.f32.mrb[0].mxu0
        %v3166 = vadd.f32 %v2880, %v3165
        %3167 = vmatprep.mubr.f32.mxu0 0.0
        %3168 = vmatmul.mubr.f32.gmra.mrb[0].mxu0 %v2941
        %v3169 = vpop.f32.mrb[0].mxu0
        %v3170 = vadd.f32 %v2876, %v3169
        %v3171 = vpop.f32.mrb[0].mxu0
        %v3172 = vadd.f32 %v2880, %v3171
        %3173 = vdwg.mxu0
        %3174 = vmatprep.subr.mxu0 %v2796
        %3175 = vmatpush1.msra.mxu0 %v2795
        %3176 = vmatprep.subr.mxu0 %v2812
        %3177 = vmatpush1.msra.mxu0 %v2811
        %3178 = vmatprep.subr.mxu0 %v2828
        %3179 = vmatpush1.msra.mxu0 %v2827
        %3180 = vmatprep.subr.mxu0 %v2844
        %3181 = vmatpush1.msra.mxu0 %v2843
        %3182 = vmatprep.subr.mxu0 0.0
        %3183 = vmatpush1.msra.mxu0 0.0
        %3184 = vmatprep.subr.mxu0 0.0
        %3185 = vmatpush1.msra.mxu0 0.0
        %3186 = vmatprep.subr.mxu0 0.0
        %3187 = vmatpush1.msra.mxu0 0.0
        %3188 = vmatprep.subr.mxu0 0.0
        %3189 = vmatpush1.msra.mxu0 0.0
        %3190 = vmatprep.subr.mxu0 0.0
        %3191 = vmatpush1.msra.mxu0 0.0
        %3192 = vmatprep.subr.mxu0 0.0
        %3193 = vmatpush1.msra.mxu0 0.0
        %3194 = vmatprep.subr.mxu0 0.0
        %3195 = vmatpush1.msra.mxu0 0.0
        %3196 = vmatprep.subr.mxu0 0.0
        %3197 = vmatpush1.msra.mxu0 0.0
        %3198 = vmatprep.subr.mxu0 0.0
        %3199 = vmatpush1.msra.mxu0 0.0
        %3200 = vmatprep.subr.mxu0 0.0
        %3201 = vmatpush1.msra.mxu0 0.0
        %3202 = vmatprep.subr.mxu0 0.0
        %3203 = vmatpush1.msra.mxu0 0.0
        %3204 = vmatprep.subr.mxu0 0.0
        %3205 = vmatpush1.msra.mxu0 0.0
        %3206 = vmatprep.subr.mxu0 0.0
        %3207 = vmatpush1.msra.mxu0 0.0
        %3208 = vmatprep.subr.mxu0 0.0
        %3209 = vmatpush1.msra.mxu0 0.0
        %3210 = vmatprep.subr.mxu0 0.0
        %3211 = vmatpush1.msra.mxu0 0.0
        %3212 = vmatprep.subr.mxu0 0.0
        %3213 = vmatpush1.msra.mxu0 0.0
        %3214 = vmatprep.subr.mxu0 0.0
        %3215 = vmatpush1.msra.mxu0 0.0
        %3216 = vmatprep.subr.mxu0 0.0
        %3217 = vmatpush1.msra.mxu0 0.0
        %3218 = vmatprep.subr.mxu0 0.0
        %3219 = vmatpush1.msra.mxu0 0.0
        %3220 = vmatprep.subr.mxu0 0.0
        %3221 = vmatpush1.msra.mxu0 0.0
        %3222 = vmatprep.subr.mxu0 0.0
        %3223 = vmatpush1.msra.mxu0 0.0
        %3224 = vmatprep.subr.mxu0 0.0
        %3225 = vmatpush1.msra.mxu0 0.0
        %3226 = vmatprep.subr.mxu0 0.0
        %3227 = vmatpush1.msra.mxu0 0.0
        %3228 = vmatprep.subr.mxu0 0.0
        %3229 = vmatpush1.msra.mxu0 0.0
        %3230 = vmatprep.subr.mxu0 0.0
        %3231 = vmatpush1.msra.mxu0 0.0
        %3232 = vmatprep.subr.mxu0 0.0
        %3233 = vmatpush1.msra.mxu0 0.0
        %3234 = vmatprep.subr.mxu0 0.0
        %3235 = vmatpush1.msra.mxu0 0.0
        %3236 = vmatprep.subr.mxu0 0.0
        %3237 = vmatpush1.msra.mxu0 0.0
        %3238 = vmatprep.mubr.f32.mxu0 0.0
        %3239 = vmatmul.mubr.f32.gmra.mrb[0].mxu0 %v2938
        %v3240 = vpop.f32.mrb[0].mxu0
        %v3241 = vadd.f32 %v2884, %v3240
        %v3242 = vpop.f32.mrb[0].mxu0
        %v3243 = vadd.f32 %v2888, %v3242
        %3244 = vmatprep.mubr.f32.mxu0 0.0
        %3245 = vmatmul.mubr.f32.gmra.mrb[0].mxu0 %v2941
        %v3246 = vpop.f32.mrb[0].mxu0
        %v3247 = vadd.f32 %v2884, %v3246
        %v3248 = vpop.f32.mrb[0].mxu0
        %v3249 = vadd.f32 %v2888, %v3248
        %3250 = vdwg.mxu0
        %3251 = vmatprep.subr.mxu0 %v2798
        %3252 = vmatpush1.msra.mxu0 %v2797
        %3253 = vmatprep.subr.mxu0 %v2814
        %3254 = vmatpush1.msra.mxu0 %v2813
        %3255 = vmatprep.subr.mxu0 %v2830
        %3256 = vmatpush1.msra.mxu0 %v2829
        %3257 = vmatprep.subr.mxu0 %v2846
        %3258 = vmatpush1.msra.mxu0 %v2845
        %3259 = vmatprep.subr.mxu0 0.0
        %3260 = vmatpush1.msra.mxu0 0.0
        %3261 = vmatprep.subr.mxu0 0.0
        %3262 = vmatpush1.msra.mxu0 0.0
        %3263 = vmatprep.subr.mxu0 0.0
        %3264 = vmatpush1.msra.mxu0 0.0
        %3265 = vmatprep.subr.mxu0 0.0
        %3266 = vmatpush1.msra.mxu0 0.0
        %3267 = vmatprep.subr.mxu0 0.0
        %3268 = vmatpush1.msra.mxu0 0.0
        %3269 = vmatprep.subr.mxu0 0.0
        %3270 = vmatpush1.msra.mxu0 0.0
        %3271 = vmatprep.subr.mxu0 0.0
        %3272 = vmatpush1.msra.mxu0 0.0
        %3273 = vmatprep.subr.mxu0 0.0
        %3274 = vmatpush1.msra.mxu0 0.0
        %3275 = vmatprep.subr.mxu0 0.0
        %3276 = vmatpush1.msra.mxu0 0.0
        %3277 = vmatprep.subr.mxu0 0.0
        %3278 = vmatpush1.msra.mxu0 0.0
        %3279 = vmatprep.subr.mxu0 0.0
        %3280 = vmatpush1.msra.mxu0 0.0
        %3281 = vmatprep.subr.mxu0 0.0
        %3282 = vmatpush1.msra.mxu0 0.0
        %3283 = vmatprep.subr.mxu0 0.0
        %3284 = vmatpush1.msra.mxu0 0.0
        %3285 = vmatprep.subr.mxu0 0.0
        %3286 = vmatpush1.msra.mxu0 0.0
        %3287 = vmatprep.subr.mxu0 0.0
        %3288 = vmatpush1.msra.mxu0 0.0
        %3289 = vmatprep.subr.mxu0 0.0
        %3290 = vmatpush1.msra.mxu0 0.0
        %3291 = vmatprep.subr.mxu0 0.0
        %3292 = vmatpush1.msra.mxu0 0.0
        %3293 = vmatprep.subr.mxu0 0.0
        %3294 = vmatpush1.msra.mxu0 0.0
        %3295 = vmatprep.subr.mxu0 0.0
        %3296 = vmatpush1.msra.mxu0 0.0
        %3297 = vmatprep.subr.mxu0 0.0
        %3298 = vmatpush1.msra.mxu0 0.0
        %3299 = vmatprep.subr.mxu0 0.0
        %3300 = vmatpush1.msra.mxu0 0.0
        %3301 = vmatprep.subr.mxu0 0.0
        %3302 = vmatpush1.msra.mxu0 0.0
        %3303 = vmatprep.subr.mxu0 0.0
        %3304 = vmatpush1.msra.mxu0 0.0
        %3305 = vmatprep.subr.mxu0 0.0
        %3306 = vmatpush1.msra.mxu0 0.0
        %3307 = vmatprep.subr.mxu0 0.0
        %3308 = vmatpush1.msra.mxu0 0.0
        %3309 = vmatprep.subr.mxu0 0.0
        %3310 = vmatpush1.msra.mxu0 0.0
        %3311 = vmatprep.subr.mxu0 0.0
        %3312 = vmatpush1.msra.mxu0 0.0
        %3313 = vmatprep.subr.mxu0 0.0
        %3314 = vmatpush1.msra.mxu0 0.0
        %3315 = vmatprep.mubr.f32.mxu0 0.0
        %3316 = vmatmul.mubr.f32.gmra.mrb[0].mxu0 %v2938
        %v3317 = vpop.f32.mrb[0].mxu0
        %v3318 = vadd.f32 %v2892, %v3317
        %v3319 = vpop.f32.mrb[0].mxu0
        %v3320 = vadd.f32 %v2896, %v3319
        %3321 = vmatprep.mubr.f32.mxu0 0.0
        %3322 = vmatmul.mubr.f32.gmra.mrb[0].mxu0 %v2941
        %v3323 = vpop.f32.mrb[0].mxu0
        %v3324 = vadd.f32 %v2892, %v3323
        %v3325 = vpop.f32.mrb[0].mxu0
        %v3326 = vadd.f32 %v2896, %v3325
        %3327 = vdwg.mxu0
        %3328 = vmatprep.subr.mxu0 %v2800
        %3329 = vmatpush1.msra.mxu0 %v2799
        %3330 = vmatprep.subr.mxu0 %v2816
        %3331 = vmatpush1.msra.mxu0 %v2815
        %3332 = vmatprep.subr.mxu0 %v2832
        %3333 = vmatpush1.msra.mxu0 %v2831
        %3334 = vmatprep.subr.mxu0 %v2848
        %3335 = vmatpush1.msra.mxu0 %v2847
        %3336 = vmatprep.subr.mxu0 0.0
        %3337 = vmatpush1.msra.mxu0 0.0
        %3338 = vmatprep.subr.mxu0 0.0
        %3339 = vmatpush1.msra.mxu0 0.0
        %3340 = vmatprep.subr.mxu0 0.0
        %3341 = vmatpush1.msra.mxu0 0.0
        %3342 = vmatprep.subr.mxu0 0.0
        %3343 = vmatpush1.msra.mxu0 0.0
        %3344 = vmatprep.subr.mxu0 0.0
        %3345 = vmatpush1.msra.mxu0 0.0
        %3346 = vmatprep.subr.mxu0 0.0
        %3347 = vmatpush1.msra.mxu0 0.0
        %3348 = vmatprep.subr.mxu0 0.0
        %3349 = vmatpush1.msra.mxu0 0.0
        %3350 = vmatprep.subr.mxu0 0.0
        %3351 = vmatpush1.msra.mxu0 0.0
        %3352 = vmatprep.subr.mxu0 0.0
        %3353 = vmatpush1.msra.mxu0 0.0
        %3354 = vmatprep.subr.mxu0 0.0
        %3355 = vmatpush1.msra.mxu0 0.0
        %3356 = vmatprep.subr.mxu0 0.0
        %3357 = vmatpush1.msra.mxu0 0.0
        %3358 = vmatprep.subr.mxu0 0.0
        %3359 = vmatpush1.msra.mxu0 0.0
        %3360 = vmatprep.subr.mxu0 0.0
        %3361 = vmatpush1.msra.mxu0 0.0
        %3362 = vmatprep.subr.mxu0 0.0
        %3363 = vmatpush1.msra.mxu0 0.0
        %3364 = vmatprep.subr.mxu0 0.0
        %3365 = vmatpush1.msra.mxu0 0.0
        %3366 = vmatprep.subr.mxu0 0.0
        %3367 = vmatpush1.msra.mxu0 0.0
        %3368 = vmatprep.subr.mxu0 0.0
        %3369 = vmatpush1.msra.mxu0 0.0
        %3370 = vmatprep.subr.mxu0 0.0
        %3371 = vmatpush1.msra.mxu0 0.0
        %3372 = vmatprep.subr.mxu0 0.0
        %3373 = vmatpush1.msra.mxu0 0.0
        %3374 = vmatprep.subr.mxu0 0.0
        %3375 = vmatpush1.msra.mxu0 0.0
        %3376 = vmatprep.subr.mxu0 0.0
        %3377 = vmatpush1.msra.mxu0 0.0
        %3378 = vmatprep.subr.mxu0 0.0
        %3379 = vmatpush1.msra.mxu0 0.0
        %3380 = vmatprep.subr.mxu0 0.0
        %3381 = vmatpush1.msra.mxu0 0.0
        %3382 = vmatprep.subr.mxu0 0.0
        %3383 = vmatpush1.msra.mxu0 0.0
        %3384 = vmatprep.subr.mxu0 0.0
        %3385 = vmatpush1.msra.mxu0 0.0
        %3386 = vmatprep.subr.mxu0 0.0
        %3387 = vmatpush1.msra.mxu0 0.0
        %3388 = vmatprep.subr.mxu0 0.0
        %3389 = vmatpush1.msra.mxu0 0.0
        %3390 = vmatprep.subr.mxu0 0.0
        %3391 = vmatpush1.msra.mxu0 0.0
        %3392 = vmatprep.mubr.f32.mxu0 0.0
        %3393 = vmatmul.mubr.f32.gmra.mrb[0].mxu0 %v2938
        %v3394 = vpop.f32.mrb[0].mxu0
        %v3395 = vadd.f32 %v2900, %v3394
        %v3396 = vpop.f32.mrb[0].mxu0
        %v3397 = vadd.f32 %v2904, %v3396
        %3398 = vmatprep.mubr.f32.mxu0 0.0
        %3399 = vmatmul.mubr.f32.gmra.mrb[0].mxu0 %v2941
        %v3400 = vpop.f32.mrb[0].mxu0
        %v3401 = vadd.f32 %v2900, %v3400
        %v3402 = vpop.f32.mrb[0].mxu0
        %v3403 = vadd.f32 %v2904, %v3402
        %3404 = vdwg.mxu0
        %3405 = vmatprep.subr.mxu0 %v2802
        %3406 = vmatpush1.msra.mxu0 %v2801
        %3407 = vmatprep.subr.mxu0 %v2818
        %3408 = vmatpush1.msra.mxu0 %v2817
        %3409 = vmatprep.subr.mxu0 %v2834
        %3410 = vmatpush1.msra.mxu0 %v2833
        %3411 = vmatprep.subr.mxu0 %v2850
        %3412 = vmatpush1.msra.mxu0 %v2849
        %3413 = vmatprep.subr.mxu0 0.0
        %3414 = vmatpush1.msra.mxu0 0.0
        %3415 = vmatprep.subr.mxu0 0.0
        %3416 = vmatpush1.msra.mxu0 0.0
        %3417 = vmatprep.subr.mxu0 0.0
        %3418 = vmatpush1.msra.mxu0 0.0
        %3419 = vmatprep.subr.mxu0 0.0
        %3420 = vmatpush1.msra.mxu0 0.0
        %3421 = vmatprep.subr.mxu0 0.0
        %3422 = vmatpush1.msra.mxu0 0.0
        %3423 = vmatprep.subr.mxu0 0.0
        %3424 = vmatpush1.msra.mxu0 0.0
        %3425 = vmatprep.subr.mxu0 0.0
        %3426 = vmatpush1.msra.mxu0 0.0
        %3427 = vmatprep.subr.mxu0 0.0
        %3428 = vmatpush1.msra.mxu0 0.0
        %3429 = vmatprep.subr.mxu0 0.0
        %3430 = vmatpush1.msra.mxu0 0.0
        %3431 = vmatprep.subr.mxu0 0.0
        %3432 = vmatpush1.msra.mxu0 0.0
        %3433 = vmatprep.subr.mxu0 0.0
        %3434 = vmatpush1.msra.mxu0 0.0
        %3435 = vmatprep.subr.mxu0 0.0
        %3436 = vmatpush1.msra.mxu0 0.0
        %3437 = vmatprep.subr.mxu0 0.0
        %3438 = vmatpush1.msra.mxu0 0.0
        %3439 = vmatprep.subr.mxu0 0.0
        %3440 = vmatpush1.msra.mxu0 0.0
        %3441 = vmatprep.subr.mxu0 0.0
        %3442 = vmatpush1.msra.mxu0 0.0
        %3443 = vmatprep.subr.mxu0 0.0
        %3444 = vmatpush1.msra.mxu0 0.0
        %3445 = vmatprep.subr.mxu0 0.0
        %3446 = vmatpush1.msra.mxu0 0.0
        %3447 = vmatprep.subr.mxu0 0.0
        %3448 = vmatpush1.msra.mxu0 0.0
        %3449 = vmatprep.subr.mxu0 0.0
        %3450 = vmatpush1.msra.mxu0 0.0
        %3451 = vmatprep.subr.mxu0 0.0
        %3452 = vmatpush1.msra.mxu0 0.0
        %3453 = vmatprep.subr.mxu0 0.0
        %3454 = vmatpush1.msra.mxu0 0.0
        %3455 = vmatprep.subr.mxu0 0.0
        %3456 = vmatpush1.msra.mxu0 0.0
        %3457 = vmatprep.subr.mxu0 0.0
        %3458 = vmatpush1.msra.mxu0 0.0
        %3459 = vmatprep.subr.mxu0 0.0
        %3460 = vmatpush1.msra.mxu0 0.0
        %3461 = vmatprep.subr.mxu0 0.0
        %3462 = vmatpush1.msra.mxu0 0.0
        %3463 = vmatprep.subr.mxu0 0.0
        %3464 = vmatpush1.msra.mxu0 0.0
        %3465 = vmatprep.subr.mxu0 0.0
        %3466 = vmatpush1.msra.mxu0 0.0
        %3467 = vmatprep.subr.mxu0 0.0
        %3468 = vmatpush1.msra.mxu0 0.0
        %3469 = vmatprep.mubr.f32.mxu0 0.0
        %3470 = vmatmul.mubr.f32.gmra.mrb[0].mxu0 %v2938
        %v3471 = vpop.f32.mrb[0].mxu0
        %v3472 = vadd.f32 %v2908, %v3471
        %v3473 = vpop.f32.mrb[0].mxu0
        %v3474 = vadd.f32 %v2912, %v3473
        %3475 = vmatprep.mubr.f32.mxu0 0.0
        %3476 = vmatmul.mubr.f32.gmra.mrb[0].mxu0 %v2941
        %v3477 = vpop.f32.mrb[0].mxu0
        %v3478 = vadd.f32 %v2908, %v3477
        %v3479 = vpop.f32.mrb[0].mxu0
        %v3480 = vadd.f32 %v2912, %v3479
        %3481 = vdwg.mxu0
        %3482 = vmatprep.subr.mxu0 %v2804
        %3483 = vmatpush1.msra.mxu0 %v2803
        %3484 = vmatprep.subr.mxu0 %v2820
        %3485 = vmatpush1.msra.mxu0 %v2819
        %3486 = vmatprep.subr.mxu0 %v2836
        %3487 = vmatpush1.msra.mxu0 %v2835
        %3488 = vmatprep.subr.mxu0 %v2852
        %3489 = vmatpush1.msra.mxu0 %v2851
        %3490 = vmatprep.subr.mxu0 0.0
        %3491 = vmatpush1.msra.mxu0 0.0
        %3492 = vmatprep.subr.mxu0 0.0
        %3493 = vmatpush1.msra.mxu0 0.0
        %3494 = vmatprep.subr.mxu0 0.0
        %3495 = vmatpush1.msra.mxu0 0.0
        %3496 = vmatprep.subr.mxu0 0.0
        %3497 = vmatpush1.msra.mxu0 0.0
        %3498 = vmatprep.subr.mxu0 0.0
        %3499 = vmatpush1.msra.mxu0 0.0
        %3500 = vmatprep.subr.mxu0 0.0
        %3501 = vmatpush1.msra.mxu0 0.0
        %3502 = vmatprep.subr.mxu0 0.0
        %3503 = vmatpush1.msra.mxu0 0.0
        %3504 = vmatprep.subr.mxu0 0.0
        %3505 = vmatpush1.msra.mxu0 0.0
        %3506 = vmatprep.subr.mxu0 0.0
        %3507 = vmatpush1.msra.mxu0 0.0
        %3508 = vmatprep.subr.mxu0 0.0
        %3509 = vmatpush1.msra.mxu0 0.0
        %3510 = vmatprep.subr.mxu0 0.0
        %3511 = vmatpush1.msra.mxu0 0.0
        %3512 = vmatprep.subr.mxu0 0.0
        %3513 = vmatpush1.msra.mxu0 0.0
        %3514 = vmatprep.subr.mxu0 0.0
        %3515 = vmatpush1.msra.mxu0 0.0
        %3516 = vmatprep.subr.mxu0 0.0
        %3517 = vmatpush1.msra.mxu0 0.0
        %3518 = vmatprep.subr.mxu0 0.0
        %3519 = vmatpush1.msra.mxu0 0.0
        %3520 = vmatprep.subr.mxu0 0.0
        %3521 = vmatpush1.msra.mxu0 0.0
        %3522 = vmatprep.subr.mxu0 0.0
        %3523 = vmatpush1.msra.mxu0 0.0
        %3524 = vmatprep.subr.mxu0 0.0
        %3525 = vmatpush1.msra.mxu0 0.0
        %3526 = vmatprep.subr.mxu0 0.0
        %3527 = vmatpush1.msra.mxu0 0.0
        %3528 = vmatprep.subr.mxu0 0.0
        %3529 = vmatpush1.msra.mxu0 0.0
        %3530 = vmatprep.subr.mxu0 0.0
        %3531 = vmatpush1.msra.mxu0 0.0
        %3532 = vmatprep.subr.mxu0 0.0
        %3533 = vmatpush1.msra.mxu0 0.0
        %3534 = vmatprep.subr.mxu0 0.0
        %3535 = vmatpush1.msra.mxu0 0.0
        %3536 = vmatprep.subr.mxu0 0.0
        %3537 = vmatpush1.msra.mxu0 0.0
        %3538 = vmatprep.subr.mxu0 0.0
        %3539 = vmatpush1.msra.mxu0 0.0
        %3540 = vmatprep.subr.mxu0 0.0
        %3541 = vmatpush1.msra.mxu0 0.0
        %3542 = vmatprep.subr.mxu0 0.0
        %3543 = vmatpush1.msra.mxu0 0.0
        %3544 = vmatprep.subr.mxu0 0.0
        %3545 = vmatpush1.msra.mxu0 0.0
        %3546 = vmatprep.mubr.f32.mxu0 0.0
        %3547 = vmatmul.mubr.f32.gmra.mrb[0].mxu0 %v2938
        %v3548 = vpop.f32.mrb[0].mxu0
        %v3549 = vadd.f32 %v2916, %v3548
        %v3550 = vpop.f32.mrb[0].mxu0
        %v3551 = vadd.f32 %v2920, %v3550
        %3552 = vmatprep.mubr.f32.mxu0 0.0
        %3553 = vmatmul.mubr.f32.gmra.mrb[0].mxu0 %v2941
        %v3554 = vpop.f32.mrb[0].mxu0
        %v3555 = vadd.f32 %v2916, %v3554
        %v3556 = vpop.f32.mrb[0].mxu0
        %v3557 = vadd.f32 %v2920, %v3556
        %3558 = vdwg.mxu0
        %v3559 = vmax.f32 %v3010, 0.0
        %v3560 = vmax.f32 %v3012, 0.0
        %v3561 = vmax.f32 %v3087, 0.0
        %v3562 = vmax.f32 %v3089, 0.0
        %v3563 = vmax.f32 %v3164, 0.0
        %v3564 = vmax.f32 %v3166, 0.0
        %v3565 = vmax.f32 %v3241, 0.0
        %v3566 = vmax.f32 %v3243, 0.0
        %v3567 = vmax.f32 %v3318, 0.0
        %v3568 = vmax.f32 %v3320, 0.0
        %v3569 = vmax.f32 %v3395, 0.0
        %v3570 = vmax.f32 %v3397, 0.0
        %v3571 = vmax.f32 %v3472, 0.0
        %v3572 = vmax.f32 %v3474, 0.0
        %v3573 = vmax.f32 %v3549, 0.0
        %v3574 = vmax.f32 %v3551, 0.0
        %v3575 = vmax.f32 %v3016, 0.0
        %v3576 = vmax.f32 %v3018, 0.0
        %v3577 = vmax.f32 %v3093, 0.0
        %v3578 = vmax.f32 %v3095, 0.0
        %v3579 = vmax.f32 %v3170, 0.0
        %v3580 = vmax.f32 %v3172, 0.0
        %v3581 = vmax.f32 %v3247, 0.0
        %v3582 = vmax.f32 %v3249, 0.0
        %v3583 = vmax.f32 %v3324, 0.0
        %v3584 = vmax.f32 %v3326, 0.0
        %v3585 = vmax.f32 %v3401, 0.0
        %v3586 = vmax.f32 %v3403, 0.0
        %v3587 = vmax.f32 %v3478, 0.0
        %v3588 = vmax.f32 %v3480, 0.0
        %v3589 = vmax.f32 %v3555, 0.0
        %v3590 = vmax.f32 %v3557, 0.0
        %v3591 = vld [vmem:[%s986] sm:$0xff]
        %v3592 = vld [vmem:[%s986 + $0x8] sm:$0xff]
        %v3593 = vld [vmem:[%s986 + $0x10] sm:$0xff]
        %v3594 = vld [vmem:[%s986 + $0x18] sm:$0xff]
        %v3595 = vld [vmem:[%s986 + $0x20] sm:$0xff]
        %v3596 = vld [vmem:[%s986 + $0x28] sm:$0xff]
        %v3597 = vld [vmem:[%s986 + $0x30] sm:$0xff]
        %v3598 = vld [vmem:[%s986 + $0x38] sm:$0xff]
        %v3599 = vld [vmem:[%s986 + $0x40] sm:$0xff]
        %v3600 = vld [vmem:[%s986 + $0x48] sm:$0xff]
        %v3601 = vld [vmem:[%s986 + $0x50] sm:$0xff]
        %v3602 = vld [vmem:[%s986 + $0x58] sm:$0xff]
        %v3603 = vld [vmem:[%s986 + $0x60] sm:$0xff]
        %v3604 = vld [vmem:[%s986 + $0x68] sm:$0xff]
        %v3605 = vld [vmem:[%s986 + $0x70] sm:$0xff]
        %v3606 = vld [vmem:[%s986 + $0x78] sm:$0xff]
        %v3607 = vld [vmem:[%s986 + $0x80] sm:$0xff]
        %v3608 = vld [vmem:[%s986 + $0x88] sm:$0xff]
        %v3609 = vld [vmem:[%s986 + $0x90] sm:$0xff]
        %v3610 = vld [vmem:[%s986 + $0x98] sm:$0xff]
        %v3611 = vld [vmem:[%s986 + $0xa0] sm:$0xff]
        %v3612 = vld [vmem:[%s986 + $0xa8] sm:$0xff]
        %v3613 = vld [vmem:[%s986 + $0xb0] sm:$0xff]
        %v3614 = vld [vmem:[%s986 + $0xb8] sm:$0xff]
        %v3615 = vld [vmem:[%s986 + $0xc0] sm:$0xff]
        %v3616 = vld [vmem:[%s986 + $0xc8] sm:$0xff]
        %v3617 = vld [vmem:[%s986 + $0xd0] sm:$0xff]
        %v3618 = vld [vmem:[%s986 + $0xd8] sm:$0xff]
        %v3619 = vld [vmem:[%s986 + $0xe0] sm:$0xff]
        %v3620 = vld [vmem:[%s986 + $0xe8] sm:$0xff]
        %v3621 = vld [vmem:[%s986 + $0xf0] sm:$0xff]
        %v3622 = vld [vmem:[%s986 + $0xf8] sm:$0xff]
        %v3623 = vld [vmem:[%s986 + $0x100] sm:$0xff]
        %v3624 = vld [vmem:[%s986 + $0x108] sm:$0xff]
        %v3625 = vld [vmem:[%s986 + $0x110] sm:$0xff]
        %v3626 = vld [vmem:[%s986 + $0x118] sm:$0xff]
        %v3627 = vld [vmem:[%s986 + $0x120] sm:$0xff]
        %v3628 = vld [vmem:[%s986 + $0x128] sm:$0xff]
        %v3629 = vld [vmem:[%s986 + $0x130] sm:$0xff]
        %v3630 = vld [vmem:[%s986 + $0x138] sm:$0xff]
        %v3631 = vld [vmem:[%s986 + $0x140] sm:$0xff]
        %v3632 = vld [vmem:[%s986 + $0x148] sm:$0xff]
        %v3633 = vld [vmem:[%s986 + $0x150] sm:$0xff]
        %v3634 = vld [vmem:[%s986 + $0x158] sm:$0xff]
        %v3635 = vld [vmem:[%s986 + $0x160] sm:$0xff]
        %v3636 = vld [vmem:[%s986 + $0x168] sm:$0xff]
        %v3637 = vld [vmem:[%s986 + $0x170] sm:$0xff]
        %v3638 = vld [vmem:[%s986 + $0x178] sm:$0xff]
        %v3639 = vld [vmem:[%s986 + $0x180] sm:$0xff]
        %v3640 = vld [vmem:[%s986 + $0x188] sm:$0xff]
        %v3641 = vld [vmem:[%s986 + $0x190] sm:$0xff]
        %v3642 = vld [vmem:[%s986 + $0x198] sm:$0xff]
        %v3643 = vld [vmem:[%s986 + $0x1a0] sm:$0xff]
        %v3644 = vld [vmem:[%s986 + $0x1a8] sm:$0xff]
        %v3645 = vld [vmem:[%s986 + $0x1b0] sm:$0xff]
        %v3646 = vld [vmem:[%s986 + $0x1b8] sm:$0xff]
        %v3647 = vld [vmem:[%s986 + $0x1c0] sm:$0xff]
        %v3648 = vld [vmem:[%s986 + $0x1c8] sm:$0xff]
        %v3649 = vld [vmem:[%s986 + $0x1d0] sm:$0xff]
        %v3650 = vld [vmem:[%s986 + $0x1d8] sm:$0xff]
        %v3651 = vld [vmem:[%s986 + $0x1e0] sm:$0xff]
        %v3652 = vld [vmem:[%s986 + $0x1e8] sm:$0xff]
        %v3653 = vld [vmem:[%s986 + $0x1f0] sm:$0xff]
        %v3654 = vld [vmem:[%s986 + $0x1f8] sm:$0xff]
        %v3655 = vld [vmem:[%s986 + $0x200] sm:$0xff]
        %v3656 = vld [vmem:[%s986 + $0x208] sm:$0xff]
        %v3657 = vld [vmem:[%s986 + $0x210] sm:$0xff]
        %v3658 = vld [vmem:[%s986 + $0x218] sm:$0xff]
        %v3659 = vld [vmem:[%s986 + $0x220] sm:$0xff]
        %v3660 = vld [vmem:[%s986 + $0x228] sm:$0xff]
        %v3661 = vld [vmem:[%s986 + $0x230] sm:$0xff]
        %v3662 = vld [vmem:[%s986 + $0x238] sm:$0xff]
        %v3663 = vld [vmem:[%s986 + $0x240] sm:$0xff]
        %v3664 = vld [vmem:[%s986 + $0x248] sm:$0xff]
        %v3665 = vld [vmem:[%s986 + $0x250] sm:$0xff]
        %v3666 = vld [vmem:[%s986 + $0x258] sm:$0xff]
        %v3667 = vld [vmem:[%s986 + $0x260] sm:$0xff]
        %v3668 = vld [vmem:[%s986 + $0x268] sm:$0xff]
        %v3669 = vld [vmem:[%s986 + $0x270] sm:$0xff]
        %v3670 = vld [vmem:[%s986 + $0x278] sm:$0xff]
        %v3671 = vld [vmem:[%s986 + $0x280] sm:$0xff]
        %v3672 = vld [vmem:[%s986 + $0x288] sm:$0xff]
        %v3673 = vld [vmem:[%s986 + $0x290] sm:$0xff]
        %v3674 = vld [vmem:[%s986 + $0x298] sm:$0xff]
        %v3675 = vld [vmem:[%s986 + $0x2a0] sm:$0xff]
        %v3676 = vld [vmem:[%s986 + $0x2a8] sm:$0xff]
        %v3677 = vld [vmem:[%s986 + $0x2b0] sm:$0xff]
        %v3678 = vld [vmem:[%s986 + $0x2b8] sm:$0xff]
        %v3679 = vld [vmem:[%s986 + $0x2c0] sm:$0xff]
        %v3680 = vld [vmem:[%s986 + $0x2c8] sm:$0xff]
        %v3681 = vld [vmem:[%s986 + $0x2d0] sm:$0xff]
        %v3682 = vld [vmem:[%s986 + $0x2d8] sm:$0xff]
        %v3683 = vld [vmem:[%s986 + $0x2e0] sm:$0xff]
        %v3684 = vld [vmem:[%s986 + $0x2e8] sm:$0xff]
        %v3685 = vld [vmem:[%s986 + $0x2f0] sm:$0xff]
        %v3686 = vld [vmem:[%s986 + $0x2f8] sm:$0xff]
        %v3687 = vld [vmem:[%s986 + $0x300] sm:$0xff]
        %v3688 = vld [vmem:[%s986 + $0x308] sm:$0xff]
        %v3689 = vld [vmem:[%s986 + $0x310] sm:$0xff]
        %v3690 = vld [vmem:[%s986 + $0x318] sm:$0xff]
        %v3691 = vld [vmem:[%s986 + $0x320] sm:$0xff]
        %v3692 = vld [vmem:[%s986 + $0x328] sm:$0xff]
        %v3693 = vld [vmem:[%s986 + $0x330] sm:$0xff]
        %v3694 = vld [vmem:[%s986 + $0x338] sm:$0xff]
        %v3695 = vld [vmem:[%s986 + $0x340] sm:$0xff]
        %v3696 = vld [vmem:[%s986 + $0x348] sm:$0xff]
        %v3697 = vld [vmem:[%s986 + $0x350] sm:$0xff]
        %v3698 = vld [vmem:[%s986 + $0x358] sm:$0xff]
        %v3699 = vld [vmem:[%s986 + $0x360] sm:$0xff]
        %v3700 = vld [vmem:[%s986 + $0x368] sm:$0xff]
        %v3701 = vld [vmem:[%s986 + $0x370] sm:$0xff]
        %v3702 = vld [vmem:[%s986 + $0x378] sm:$0xff]
        %v3703 = vld [vmem:[%s986 + $0x380] sm:$0xff]
        %v3704 = vld [vmem:[%s986 + $0x388] sm:$0xff]
        %v3705 = vld [vmem:[%s986 + $0x390] sm:$0xff]
        %v3706 = vld [vmem:[%s986 + $0x398] sm:$0xff]
        %v3707 = vld [vmem:[%s986 + $0x3a0] sm:$0xff]
        %v3708 = vld [vmem:[%s986 + $0x3a8] sm:$0xff]
        %v3709 = vld [vmem:[%s986 + $0x3b0] sm:$0xff]
        %v3710 = vld [vmem:[%s986 + $0x3b8] sm:$0xff]
        %v3711 = vld [vmem:[%s986 + $0x3c0] sm:$0xff]
        %v3712 = vld [vmem:[%s986 + $0x3c8] sm:$0xff]
        %v3713 = vld [vmem:[%s986 + $0x3d0] sm:$0xff]
        %v3714 = vld [vmem:[%s986 + $0x3d8] sm:$0xff]
        %v3715 = vld [vmem:[%s986 + $0x3e0] sm:$0xff]
        %v3716 = vld [vmem:[%s986 + $0x3e8] sm:$0xff]
        %v3717 = vld [vmem:[%s986 + $0x3f0] sm:$0xff]
        %v3718 = vld [vmem:[%s986 + $0x3f8] sm:$0xff]
        %v3719 = vld [vmem:[%s986 + $0x400] sm:$0xff]
        %v3720 = vld [vmem:[%s986 + $0x408] sm:$0xff]
        %v3721 = vld [vmem:[%s986 + $0x410] sm:$0xff]
        %v3722 = vld [vmem:[%s986 + $0x418] sm:$0xff]
        %v3723 = vld [vmem:[%s986 + $0x420] sm:$0xff]
        %v3724 = vld [vmem:[%s986 + $0x428] sm:$0xff]
        %v3725 = vld [vmem:[%s986 + $0x430] sm:$0xff]
        %v3726 = vld [vmem:[%s986 + $0x438] sm:$0xff]
        %v3727 = vld [vmem:[%s986 + $0x440] sm:$0xff]
        %v3728 = vld [vmem:[%s986 + $0x448] sm:$0xff]
        %v3729 = vld [vmem:[%s986 + $0x450] sm:$0xff]
        %v3730 = vld [vmem:[%s986 + $0x458] sm:$0xff]
        %v3731 = vld [vmem:[%s986 + $0x460] sm:$0xff]
        %v3732 = vld [vmem:[%s986 + $0x468] sm:$0xff]
        %v3733 = vld [vmem:[%s986 + $0x470] sm:$0xff]
        %v3734 = vld [vmem:[%s986 + $0x478] sm:$0xff]
        %v3735 = vld [vmem:[%s986 + $0x480] sm:$0xff]
        %v3736 = vld [vmem:[%s986 + $0x488] sm:$0xff]
        %v3737 = vld [vmem:[%s986 + $0x490] sm:$0xff]
        %v3738 = vld [vmem:[%s986 + $0x498] sm:$0xff]
        %v3739 = vld [vmem:[%s986 + $0x4a0] sm:$0xff]
        %v3740 = vld [vmem:[%s986 + $0x4a8] sm:$0xff]
        %v3741 = vld [vmem:[%s986 + $0x4b0] sm:$0xff]
        %v3742 = vld [vmem:[%s986 + $0x4b8] sm:$0xff]
        %v3743 = vld [vmem:[%s986 + $0x4c0] sm:$0xff]
        %v3744 = vld [vmem:[%s986 + $0x4c8] sm:$0xff]
        %v3745 = vld [vmem:[%s986 + $0x4d0] sm:$0xff]
        %v3746 = vld [vmem:[%s986 + $0x4d8] sm:$0xff]
        %v3747 = vld [vmem:[%s986 + $0x4e0] sm:$0xff]
        %v3748 = vld [vmem:[%s986 + $0x4e8] sm:$0xff]
        %v3749 = vld [vmem:[%s986 + $0x4f0] sm:$0xff]
        %v3750 = vld [vmem:[%s986 + $0x4f8] sm:$0xff]
        %v3751 = vld [vmem:[%s986 + $0x500] sm:$0xff]
        %v3752 = vld [vmem:[%s986 + $0x508] sm:$0xff]
        %v3753 = vld [vmem:[%s986 + $0x510] sm:$0xff]
        %v3754 = vld [vmem:[%s986 + $0x518] sm:$0xff]
        %v3755 = vld [vmem:[%s986 + $0x520] sm:$0xff]
        %v3756 = vld [vmem:[%s986 + $0x528] sm:$0xff]
        %v3757 = vld [vmem:[%s986 + $0x530] sm:$0xff]
        %v3758 = vld [vmem:[%s986 + $0x538] sm:$0xff]
        %v3759 = vld [vmem:[%s986 + $0x540] sm:$0xff]
        %v3760 = vld [vmem:[%s986 + $0x548] sm:$0xff]
        %v3761 = vld [vmem:[%s986 + $0x550] sm:$0xff]
        %v3762 = vld [vmem:[%s986 + $0x558] sm:$0xff]
        %v3763 = vld [vmem:[%s986 + $0x560] sm:$0xff]
        %v3764 = vld [vmem:[%s986 + $0x568] sm:$0xff]
        %v3765 = vld [vmem:[%s986 + $0x570] sm:$0xff]
        %v3766 = vld [vmem:[%s986 + $0x578] sm:$0xff]
        %v3767 = vld [vmem:[%s986 + $0x580] sm:$0xff]
        %v3768 = vld [vmem:[%s986 + $0x588] sm:$0xff]
        %v3769 = vld [vmem:[%s986 + $0x590] sm:$0xff]
        %v3770 = vld [vmem:[%s986 + $0x598] sm:$0xff]
        %v3771 = vld [vmem:[%s986 + $0x5a0] sm:$0xff]
        %v3772 = vld [vmem:[%s986 + $0x5a8] sm:$0xff]
        %v3773 = vld [vmem:[%s986 + $0x5b0] sm:$0xff]
        %v3774 = vld [vmem:[%s986 + $0x5b8] sm:$0xff]
        %v3775 = vld [vmem:[%s986 + $0x5c0] sm:$0xff]
        %v3776 = vld [vmem:[%s986 + $0x5c8] sm:$0xff]
        %v3777 = vld [vmem:[%s986 + $0x5d0] sm:$0xff]
        %v3778 = vld [vmem:[%s986 + $0x5d8] sm:$0xff]
        %v3779 = vld [vmem:[%s986 + $0x5e0] sm:$0xff]
        %v3780 = vld [vmem:[%s986 + $0x5e8] sm:$0xff]
        %v3781 = vld [vmem:[%s986 + $0x5f0] sm:$0xff]
        %v3782 = vld [vmem:[%s986 + $0x5f8] sm:$0xff]
        %v3783 = vld [vmem:[%s986 + $0x600] sm:$0xff]
        %v3784 = vld [vmem:[%s986 + $0x608] sm:$0xff]
        %v3785 = vld [vmem:[%s986 + $0x610] sm:$0xff]
        %v3786 = vld [vmem:[%s986 + $0x618] sm:$0xff]
        %v3787 = vld [vmem:[%s986 + $0x620] sm:$0xff]
        %v3788 = vld [vmem:[%s986 + $0x628] sm:$0xff]
        %v3789 = vld [vmem:[%s986 + $0x630] sm:$0xff]
        %v3790 = vld [vmem:[%s986 + $0x638] sm:$0xff]
        %v3791 = vld [vmem:[%s986 + $0x640] sm:$0xff]
        %v3792 = vld [vmem:[%s986 + $0x648] sm:$0xff]
        %v3793 = vld [vmem:[%s986 + $0x650] sm:$0xff]
        %v3794 = vld [vmem:[%s986 + $0x658] sm:$0xff]
        %v3795 = vld [vmem:[%s986 + $0x660] sm:$0xff]
        %v3796 = vld [vmem:[%s986 + $0x668] sm:$0xff]
        %v3797 = vld [vmem:[%s986 + $0x670] sm:$0xff]
        %v3798 = vld [vmem:[%s986 + $0x678] sm:$0xff]
        %v3799 = vld [vmem:[%s986 + $0x680] sm:$0xff]
        %v3800 = vld [vmem:[%s986 + $0x688] sm:$0xff]
        %v3801 = vld [vmem:[%s986 + $0x690] sm:$0xff]
        %v3802 = vld [vmem:[%s986 + $0x698] sm:$0xff]
        %v3803 = vld [vmem:[%s986 + $0x6a0] sm:$0xff]
        %v3804 = vld [vmem:[%s986 + $0x6a8] sm:$0xff]
        %v3805 = vld [vmem:[%s986 + $0x6b0] sm:$0xff]
        %v3806 = vld [vmem:[%s986 + $0x6b8] sm:$0xff]
        %v3807 = vld [vmem:[%s986 + $0x6c0] sm:$0xff]
        %v3808 = vld [vmem:[%s986 + $0x6c8] sm:$0xff]
        %v3809 = vld [vmem:[%s986 + $0x6d0] sm:$0xff]
        %v3810 = vld [vmem:[%s986 + $0x6d8] sm:$0xff]
        %v3811 = vld [vmem:[%s986 + $0x6e0] sm:$0xff]
        %v3812 = vld [vmem:[%s986 + $0x6e8] sm:$0xff]
        %v3813 = vld [vmem:[%s986 + $0x6f0] sm:$0xff]
        %v3814 = vld [vmem:[%s986 + $0x6f8] sm:$0xff]
        %v3815 = vld [vmem:[%s986 + $0x700] sm:$0xff]
        %v3816 = vld [vmem:[%s986 + $0x708] sm:$0xff]
        %v3817 = vld [vmem:[%s986 + $0x710] sm:$0xff]
        %v3818 = vld [vmem:[%s986 + $0x718] sm:$0xff]
        %v3819 = vld [vmem:[%s986 + $0x720] sm:$0xff]
        %v3820 = vld [vmem:[%s986 + $0x728] sm:$0xff]
        %v3821 = vld [vmem:[%s986 + $0x730] sm:$0xff]
        %v3822 = vld [vmem:[%s986 + $0x738] sm:$0xff]
        %v3823 = vld [vmem:[%s986 + $0x740] sm:$0xff]
        %v3824 = vld [vmem:[%s986 + $0x748] sm:$0xff]
        %v3825 = vld [vmem:[%s986 + $0x750] sm:$0xff]
        %v3826 = vld [vmem:[%s986 + $0x758] sm:$0xff]
        %v3827 = vld [vmem:[%s986 + $0x760] sm:$0xff]
        %v3828 = vld [vmem:[%s986 + $0x768] sm:$0xff]
        %v3829 = vld [vmem:[%s986 + $0x770] sm:$0xff]
        %v3830 = vld [vmem:[%s986 + $0x778] sm:$0xff]
        %v3831 = vld [vmem:[%s986 + $0x780] sm:$0xff]
        %v3832 = vld [vmem:[%s986 + $0x788] sm:$0xff]
        %v3833 = vld [vmem:[%s986 + $0x790] sm:$0xff]
        %v3834 = vld [vmem:[%s986 + $0x798] sm:$0xff]
        %v3835 = vld [vmem:[%s986 + $0x7a0] sm:$0xff]
        %v3836 = vld [vmem:[%s986 + $0x7a8] sm:$0xff]
        %v3837 = vld [vmem:[%s986 + $0x7b0] sm:$0xff]
        %v3838 = vld [vmem:[%s986 + $0x7b8] sm:$0xff]
        %v3839 = vld [vmem:[%s986 + $0x7c0] sm:$0xff]
        %v3840 = vld [vmem:[%s986 + $0x7c8] sm:$0xff]
        %v3841 = vld [vmem:[%s986 + $0x7d0] sm:$0xff]
        %v3842 = vld [vmem:[%s986 + $0x7d8] sm:$0xff]
        %v3843 = vld [vmem:[%s986 + $0x7e0] sm:$0xff]
        %v3844 = vld [vmem:[%s986 + $0x7e8] sm:$0xff]
        %v3845 = vld [vmem:[%s986 + $0x7f0] sm:$0xff]
        %v3846 = vld [vmem:[%s986 + $0x7f8] sm:$0xff]
        %v3847 = vld [vmem:[%s989] sm:$0x1]
        %v3849 = vlaneseq
        %v3850 = vshrl.u32 %v3849, 7
        %v3851 = vsub.s32 0, %v3850
        %v3852 = vrot.slane %v3847, %v3851
        %3854 = vmatprep.subr.mxu0 0.0
        %3855 = vmatpush1.msra.mxu0 %v3591
        %3856 = vmatprep.subr.mxu0 0.0
        %3857 = vmatpush1.msra.mxu0 %v3592
        %3858 = vmatprep.subr.mxu0 0.0
        %3859 = vmatpush1.msra.mxu0 %v3593
        %3860 = vmatprep.subr.mxu0 0.0
        %3861 = vmatpush1.msra.mxu0 %v3594
        %3862 = vmatprep.subr.mxu0 0.0
        %3863 = vmatpush1.msra.mxu0 %v3595
        %3864 = vmatprep.subr.mxu0 0.0
        %3865 = vmatpush1.msra.mxu0 %v3596
        %3866 = vmatprep.subr.mxu0 0.0
        %3867 = vmatpush1.msra.mxu0 %v3597
        %3868 = vmatprep.subr.mxu0 0.0
        %3869 = vmatpush1.msra.mxu0 %v3598
        %3870 = vmatprep.subr.mxu0 0.0
        %3871 = vmatpush1.msra.mxu0 %v3599
        %3872 = vmatprep.subr.mxu0 0.0
        %3873 = vmatpush1.msra.mxu0 %v3600
        %3874 = vmatprep.subr.mxu0 0.0
        %3875 = vmatpush1.msra.mxu0 %v3601
        %3876 = vmatprep.subr.mxu0 0.0
        %3877 = vmatpush1.msra.mxu0 %v3602
        %3878 = vmatprep.subr.mxu0 0.0
        %3879 = vmatpush1.msra.mxu0 %v3603
        %3880 = vmatprep.subr.mxu0 0.0
        %3881 = vmatpush1.msra.mxu0 %v3604
        %3882 = vmatprep.subr.mxu0 0.0
        %3883 = vmatpush1.msra.mxu0 %v3605
        %3884 = vmatprep.subr.mxu0 0.0
        %3885 = vmatpush1.msra.mxu0 %v3606
        %3886 = vmatprep.subr.mxu0 0.0
        %3887 = vmatpush1.msra.mxu0 %v3607
        %3888 = vmatprep.subr.mxu0 0.0
        %3889 = vmatpush1.msra.mxu0 %v3608
        %3890 = vmatprep.subr.mxu0 0.0
        %3891 = vmatpush1.msra.mxu0 %v3609
        %3892 = vmatprep.subr.mxu0 0.0
        %3893 = vmatpush1.msra.mxu0 %v3610
        %3894 = vmatprep.subr.mxu0 0.0
        %3895 = vmatpush1.msra.mxu0 %v3611
        %3896 = vmatprep.subr.mxu0 0.0
        %3897 = vmatpush1.msra.mxu0 %v3612
        %3898 = vmatprep.subr.mxu0 0.0
        %3899 = vmatpush1.msra.mxu0 %v3613
        %3900 = vmatprep.subr.mxu0 0.0
        %3901 = vmatpush1.msra.mxu0 %v3614
        %3902 = vmatprep.subr.mxu0 0.0
        %3903 = vmatpush1.msra.mxu0 %v3615
        %3904 = vmatprep.subr.mxu0 0.0
        %3905 = vmatpush1.msra.mxu0 %v3616
        %3906 = vmatprep.subr.mxu0 0.0
        %3907 = vmatpush1.msra.mxu0 %v3617
        %3908 = vmatprep.subr.mxu0 0.0
        %3909 = vmatpush1.msra.mxu0 %v3618
        %3910 = vmatprep.subr.mxu0 0.0
        %3911 = vmatpush1.msra.mxu0 %v3619
        %3912 = vmatprep.subr.mxu0 0.0
        %3913 = vmatpush1.msra.mxu0 %v3620
        %3914 = vmatprep.subr.mxu0 0.0
        %3915 = vmatpush1.msra.mxu0 %v3621
        %3916 = vmatprep.subr.mxu0 0.0
        %3917 = vmatpush1.msra.mxu0 %v3622
        %3918 = vmatprep.mubr.f32.mxu0 %v3560
        %3919 = vmatmul.mubr.f32.gmra.mrb[0].mxu0 %v3559
        %v3920 = vpop.f32.mrb[0].mxu0
        %v3921 = vadd.f32 %v3852, %v3920
        %v3922 = vpop.f32.mrb[0].mxu0
        %3923 = vmatprep.mubr.f32.mxu0 %v3576
        %3924 = vmatmul.mubr.f32.gmra.mrb[0].mxu0 %v3575
        %v3925 = vpop.f32.mrb[0].mxu0
        %v3926 = vadd.f32 %v3852, %v3925
        %v3927 = vpop.f32.mrb[0].mxu0
        %3928 = vdwg.mxu0
        %3929 = vmatprep.subr.mxu0 0.0
        %3930 = vmatpush1.msra.mxu0 %v3623
        %3931 = vmatprep.subr.mxu0 0.0
        %3932 = vmatpush1.msra.mxu0 %v3624
        %3933 = vmatprep.subr.mxu0 0.0
        %3934 = vmatpush1.msra.mxu0 %v3625
        %3935 = vmatprep.subr.mxu0 0.0
        %3936 = vmatpush1.msra.mxu0 %v3626
        %3937 = vmatprep.subr.mxu0 0.0
        %3938 = vmatpush1.msra.mxu0 %v3627
        %3939 = vmatprep.subr.mxu0 0.0
        %3940 = vmatpush1.msra.mxu0 %v3628
        %3941 = vmatprep.subr.mxu0 0.0
        %3942 = vmatpush1.msra.mxu0 %v3629
        %3943 = vmatprep.subr.mxu0 0.0
        %3944 = vmatpush1.msra.mxu0 %v3630
        %3945 = vmatprep.subr.mxu0 0.0
        %3946 = vmatpush1.msra.mxu0 %v3631
        %3947 = vmatprep.subr.mxu0 0.0
        %3948 = vmatpush1.msra.mxu0 %v3632
        %3949 = vmatprep.subr.mxu0 0.0
        %3950 = vmatpush1.msra.mxu0 %v3633
        %3951 = vmatprep.subr.mxu0 0.0
        %3952 = vmatpush1.msra.mxu0 %v3634
        %3953 = vmatprep.subr.mxu0 0.0
        %3954 = vmatpush1.msra.mxu0 %v3635
        %3955 = vmatprep.subr.mxu0 0.0
        %3956 = vmatpush1.msra.mxu0 %v3636
        %3957 = vmatprep.subr.mxu0 0.0
        %3958 = vmatpush1.msra.mxu0 %v3637
        %3959 = vmatprep.subr.mxu0 0.0
        %3960 = vmatpush1.msra.mxu0 %v3638
        %3961 = vmatprep.subr.mxu0 0.0
        %3962 = vmatpush1.msra.mxu0 %v3639
        %3963 = vmatprep.subr.mxu0 0.0
        %3964 = vmatpush1.msra.mxu0 %v3640
        %3965 = vmatprep.subr.mxu0 0.0
        %3966 = vmatpush1.msra.mxu0 %v3641
        %3967 = vmatprep.subr.mxu0 0.0
        %3968 = vmatpush1.msra.mxu0 %v3642
        %3969 = vmatprep.subr.mxu0 0.0
        %3970 = vmatpush1.msra.mxu0 %v3643
        %3971 = vmatprep.subr.mxu0 0.0
        %3972 = vmatpush1.msra.mxu0 %v3644
        %3973 = vmatprep.subr.mxu0 0.0
        %3974 = vmatpush1.msra.mxu0 %v3645
        %3975 = vmatprep.subr.mxu0 0.0
        %3976 = vmatpush1.msra.mxu0 %v3646
        %3977 = vmatprep.subr.mxu0 0.0
        %3978 = vmatpush1.msra.mxu0 %v3647
        %3979 = vmatprep.subr.mxu0 0.0
        %3980 = vmatpush1.msra.mxu0 %v3648
        %3981 = vmatprep.subr.mxu0 0.0
        %3982 = vmatpush1.msra.mxu0 %v3649
        %3983 = vmatprep.subr.mxu0 0.0
        %3984 = vmatpush1.msra.mxu0 %v3650
        %3985 = vmatprep.subr.mxu0 0.0
        %3986 = vmatpush1.msra.mxu0 %v3651
        %3987 = vmatprep.subr.mxu0 0.0
        %3988 = vmatpush1.msra.mxu0 %v3652
        %3989 = vmatprep.subr.mxu0 0.0
        %3990 = vmatpush1.msra.mxu0 %v3653
        %3991 = vmatprep.subr.mxu0 0.0
        %3992 = vmatpush1.msra.mxu0 %v3654
        %3993 = vmatprep.mubr.f32.mxu0 %v3562
        %3994 = vmatmul.mubr.f32.gmra.mrb[0].mxu0 %v3561
        %v3995 = vpop.f32.mrb[0].mxu0
        %v3996 = vadd.f32 %v3921, %v3995
        %v3997 = vpop.f32.mrb[0].mxu0
        %3998 = vmatprep.mubr.f32.mxu0 %v3578
        %3999 = vmatmul.mubr.f32.gmra.mrb[0].mxu0 %v3577
        %v4000 = vpop.f32.mrb[0].mxu0
        %v4001 = vadd.f32 %v3926, %v4000
        %v4002 = vpop.f32.mrb[0].mxu0
        %4003 = vdwg.mxu0
        %4004 = vmatprep.subr.mxu0 0.0
        %4005 = vmatpush1.msra.mxu0 %v3655
        %4006 = vmatprep.subr.mxu0 0.0
        %4007 = vmatpush1.msra.mxu0 %v3656
        %4008 = vmatprep.subr.mxu0 0.0
        %4009 = vmatpush1.msra.mxu0 %v3657
        %4010 = vmatprep.subr.mxu0 0.0
        %4011 = vmatpush1.msra.mxu0 %v3658
        %4012 = vmatprep.subr.mxu0 0.0
        %4013 = vmatpush1.msra.mxu0 %v3659
        %4014 = vmatprep.subr.mxu0 0.0
        %4015 = vmatpush1.msra.mxu0 %v3660
        %4016 = vmatprep.subr.mxu0 0.0
        %4017 = vmatpush1.msra.mxu0 %v3661
        %4018 = vmatprep.subr.mxu0 0.0
        %4019 = vmatpush1.msra.mxu0 %v3662
        %4020 = vmatprep.subr.mxu0 0.0
        %4021 = vmatpush1.msra.mxu0 %v3663
        %4022 = vmatprep.subr.mxu0 0.0
        %4023 = vmatpush1.msra.mxu0 %v3664
        %4024 = vmatprep.subr.mxu0 0.0
        %4025 = vmatpush1.msra.mxu0 %v3665
        %4026 = vmatprep.subr.mxu0 0.0
        %4027 = vmatpush1.msra.mxu0 %v3666
        %4028 = vmatprep.subr.mxu0 0.0
        %4029 = vmatpush1.msra.mxu0 %v3667
        %4030 = vmatprep.subr.mxu0 0.0
        %4031 = vmatpush1.msra.mxu0 %v3668
        %4032 = vmatprep.subr.mxu0 0.0
        %4033 = vmatpush1.msra.mxu0 %v3669
        %4034 = vmatprep.subr.mxu0 0.0
        %4035 = vmatpush1.msra.mxu0 %v3670
        %4036 = vmatprep.subr.mxu0 0.0
        %4037 = vmatpush1.msra.mxu0 %v3671
        %4038 = vmatprep.subr.mxu0 0.0
        %4039 = vmatpush1.msra.mxu0 %v3672
        %4040 = vmatprep.subr.mxu0 0.0
        %4041 = vmatpush1.msra.mxu0 %v3673
        %4042 = vmatprep.subr.mxu0 0.0
        %4043 = vmatpush1.msra.mxu0 %v3674
        %4044 = vmatprep.subr.mxu0 0.0
        %4045 = vmatpush1.msra.mxu0 %v3675
        %4046 = vmatprep.subr.mxu0 0.0
        %4047 = vmatpush1.msra.mxu0 %v3676
        %4048 = vmatprep.subr.mxu0 0.0
        %4049 = vmatpush1.msra.mxu0 %v3677
        %4050 = vmatprep.subr.mxu0 0.0
        %4051 = vmatpush1.msra.mxu0 %v3678
        %4052 = vmatprep.subr.mxu0 0.0
        %4053 = vmatpush1.msra.mxu0 %v3679
        %4054 = vmatprep.subr.mxu0 0.0
        %4055 = vmatpush1.msra.mxu0 %v3680
        %4056 = vmatprep.subr.mxu0 0.0
        %4057 = vmatpush1.msra.mxu0 %v3681
        %4058 = vmatprep.subr.mxu0 0.0
        %4059 = vmatpush1.msra.mxu0 %v3682
        %4060 = vmatprep.subr.mxu0 0.0
        %4061 = vmatpush1.msra.mxu0 %v3683
        %4062 = vmatprep.subr.mxu0 0.0
        %4063 = vmatpush1.msra.mxu0 %v3684
        %4064 = vmatprep.subr.mxu0 0.0
        %4065 = vmatpush1.msra.mxu0 %v3685
        %4066 = vmatprep.subr.mxu0 0.0
        %4067 = vmatpush1.msra.mxu0 %v3686
        %4068 = vmatprep.mubr.f32.mxu0 %v3564
        %4069 = vmatmul.mubr.f32.gmra.mrb[0].mxu0 %v3563
        %v4070 = vpop.f32.mrb[0].mxu0
        %v4071 = vadd.f32 %v3996, %v4070
        %v4072 = vpop.f32.mrb[0].mxu0
        %4073 = vmatprep.mubr.f32.mxu0 %v3580
        %4074 = vmatmul.mubr.f32.gmra.mrb[0].mxu0 %v3579
        %v4075 = vpop.f32.mrb[0].mxu0
        %v4076 = vadd.f32 %v4001, %v4075
        %v4077 = vpop.f32.mrb[0].mxu0
        %4078 = vdwg.mxu0
        %4079 = vmatprep.subr.mxu0 0.0
        %4080 = vmatpush1.msra.mxu0 %v3687
        %4081 = vmatprep.subr.mxu0 0.0
        %4082 = vmatpush1.msra.mxu0 %v3688
        %4083 = vmatprep.subr.mxu0 0.0
        %4084 = vmatpush1.msra.mxu0 %v3689
        %4085 = vmatprep.subr.mxu0 0.0
        %4086 = vmatpush1.msra.mxu0 %v3690
        %4087 = vmatprep.subr.mxu0 0.0
        %4088 = vmatpush1.msra.mxu0 %v3691
        %4089 = vmatprep.subr.mxu0 0.0
        %4090 = vmatpush1.msra.mxu0 %v3692
        %4091 = vmatprep.subr.mxu0 0.0
        %4092 = vmatpush1.msra.mxu0 %v3693
        %4093 = vmatprep.subr.mxu0 0.0
        %4094 = vmatpush1.msra.mxu0 %v3694
        %4095 = vmatprep.subr.mxu0 0.0
        %4096 = vmatpush1.msra.mxu0 %v3695
        %4097 = vmatprep.subr.mxu0 0.0
        %4098 = vmatpush1.msra.mxu0 %v3696
        %4099 = vmatprep.subr.mxu0 0.0
        %4100 = vmatpush1.msra.mxu0 %v3697
        %4101 = vmatprep.subr.mxu0 0.0
        %4102 = vmatpush1.msra.mxu0 %v3698
        %4103 = vmatprep.subr.mxu0 0.0
        %4104 = vmatpush1.msra.mxu0 %v3699
        %4105 = vmatprep.subr.mxu0 0.0
        %4106 = vmatpush1.msra.mxu0 %v3700
        %4107 = vmatprep.subr.mxu0 0.0
        %4108 = vmatpush1.msra.mxu0 %v3701
        %4109 = vmatprep.subr.mxu0 0.0
        %4110 = vmatpush1.msra.mxu0 %v3702
        %4111 = vmatprep.subr.mxu0 0.0
        %4112 = vmatpush1.msra.mxu0 %v3703
        %4113 = vmatprep.subr.mxu0 0.0
        %4114 = vmatpush1.msra.mxu0 %v3704
        %4115 = vmatprep.subr.mxu0 0.0
        %4116 = vmatpush1.msra.mxu0 %v3705
        %4117 = vmatprep.subr.mxu0 0.0
        %4118 = vmatpush1.msra.mxu0 %v3706
        %4119 = vmatprep.subr.mxu0 0.0
        %4120 = vmatpush1.msra.mxu0 %v3707
        %4121 = vmatprep.subr.mxu0 0.0
        %4122 = vmatpush1.msra.mxu0 %v3708
        %4123 = vmatprep.subr.mxu0 0.0
        %4124 = vmatpush1.msra.mxu0 %v3709
        %4125 = vmatprep.subr.mxu0 0.0
        %4126 = vmatpush1.msra.mxu0 %v3710
        %4127 = vmatprep.subr.mxu0 0.0
        %4128 = vmatpush1.msra.mxu0 %v3711
        %4129 = vmatprep.subr.mxu0 0.0
        %4130 = vmatpush1.msra.mxu0 %v3712
        %4131 = vmatprep.subr.mxu0 0.0
        %4132 = vmatpush1.msra.mxu0 %v3713
        %4133 = vmatprep.subr.mxu0 0.0
        %4134 = vmatpush1.msra.mxu0 %v3714
        %4135 = vmatprep.subr.mxu0 0.0
        %4136 = vmatpush1.msra.mxu0 %v3715
        %4137 = vmatprep.subr.mxu0 0.0
        %4138 = vmatpush1.msra.mxu0 %v3716
        %4139 = vmatprep.subr.mxu0 0.0
        %4140 = vmatpush1.msra.mxu0 %v3717
        %4141 = vmatprep.subr.mxu0 0.0
        %4142 = vmatpush1.msra.mxu0 %v3718
        %4143 = vmatprep.mubr.f32.mxu0 %v3566
        %4144 = vmatmul.mubr.f32.gmra.mrb[0].mxu0 %v3565
        %v4145 = vpop.f32.mrb[0].mxu0
        %v4146 = vadd.f32 %v4071, %v4145
        %v4147 = vpop.f32.mrb[0].mxu0
        %4148 = vmatprep.mubr.f32.mxu0 %v3582
        %4149 = vmatmul.mubr.f32.gmra.mrb[0].mxu0 %v3581
        %v4150 = vpop.f32.mrb[0].mxu0
        %v4151 = vadd.f32 %v4076, %v4150
        %v4152 = vpop.f32.mrb[0].mxu0
        %4153 = vdwg.mxu0
        %4154 = vmatprep.subr.mxu0 0.0
        %4155 = vmatpush1.msra.mxu0 %v3719
        %4156 = vmatprep.subr.mxu0 0.0
        %4157 = vmatpush1.msra.mxu0 %v3720
        %4158 = vmatprep.subr.mxu0 0.0
        %4159 = vmatpush1.msra.mxu0 %v3721
        %4160 = vmatprep.subr.mxu0 0.0
        %4161 = vmatpush1.msra.mxu0 %v3722
        %4162 = vmatprep.subr.mxu0 0.0
        %4163 = vmatpush1.msra.mxu0 %v3723
        %4164 = vmatprep.subr.mxu0 0.0
        %4165 = vmatpush1.msra.mxu0 %v3724
        %4166 = vmatprep.subr.mxu0 0.0
        %4167 = vmatpush1.msra.mxu0 %v3725
        %4168 = vmatprep.subr.mxu0 0.0
        %4169 = vmatpush1.msra.mxu0 %v3726
        %4170 = vmatprep.subr.mxu0 0.0
        %4171 = vmatpush1.msra.mxu0 %v3727
        %4172 = vmatprep.subr.mxu0 0.0
        %4173 = vmatpush1.msra.mxu0 %v3728
        %4174 = vmatprep.subr.mxu0 0.0
        %4175 = vmatpush1.msra.mxu0 %v3729
        %4176 = vmatprep.subr.mxu0 0.0
        %4177 = vmatpush1.msra.mxu0 %v3730
        %4178 = vmatprep.subr.mxu0 0.0
        %4179 = vmatpush1.msra.mxu0 %v3731
        %4180 = vmatprep.subr.mxu0 0.0
        %4181 = vmatpush1.msra.mxu0 %v3732
        %4182 = vmatprep.subr.mxu0 0.0
        %4183 = vmatpush1.msra.mxu0 %v3733
        %4184 = vmatprep.subr.mxu0 0.0
        %4185 = vmatpush1.msra.mxu0 %v3734
        %4186 = vmatprep.subr.mxu0 0.0
        %4187 = vmatpush1.msra.mxu0 %v3735
        %4188 = vmatprep.subr.mxu0 0.0
        %4189 = vmatpush1.msra.mxu0 %v3736
        %4190 = vmatprep.subr.mxu0 0.0
        %4191 = vmatpush1.msra.mxu0 %v3737
        %4192 = vmatprep.subr.mxu0 0.0
        %4193 = vmatpush1.msra.mxu0 %v3738
        %4194 = vmatprep.subr.mxu0 0.0
        %4195 = vmatpush1.msra.mxu0 %v3739
        %4196 = vmatprep.subr.mxu0 0.0
        %4197 = vmatpush1.msra.mxu0 %v3740
        %4198 = vmatprep.subr.mxu0 0.0
        %4199 = vmatpush1.msra.mxu0 %v3741
        %4200 = vmatprep.subr.mxu0 0.0
        %4201 = vmatpush1.msra.mxu0 %v3742
        %4202 = vmatprep.subr.mxu0 0.0
        %4203 = vmatpush1.msra.mxu0 %v3743
        %4204 = vmatprep.subr.mxu0 0.0
        %4205 = vmatpush1.msra.mxu0 %v3744
        %4206 = vmatprep.subr.mxu0 0.0
        %4207 = vmatpush1.msra.mxu0 %v3745
        %4208 = vmatprep.subr.mxu0 0.0
        %4209 = vmatpush1.msra.mxu0 %v3746
        %4210 = vmatprep.subr.mxu0 0.0
        %4211 = vmatpush1.msra.mxu0 %v3747
        %4212 = vmatprep.subr.mxu0 0.0
        %4213 = vmatpush1.msra.mxu0 %v3748
        %4214 = vmatprep.subr.mxu0 0.0
        %4215 = vmatpush1.msra.mxu0 %v3749
        %4216 = vmatprep.subr.mxu0 0.0
        %4217 = vmatpush1.msra.mxu0 %v3750
        %4218 = vmatprep.mubr.f32.mxu0 %v3568
        %4219 = vmatmul.mubr.f32.gmra.mrb[0].mxu0 %v3567
        %v4220 = vpop.f32.mrb[0].mxu0
        %v4221 = vadd.f32 %v4146, %v4220
        %v4222 = vpop.f32.mrb[0].mxu0
        %4223 = vmatprep.mubr.f32.mxu0 %v3584
        %4224 = vmatmul.mubr.f32.gmra.mrb[0].mxu0 %v3583
        %v4225 = vpop.f32.mrb[0].mxu0
        %v4226 = vadd.f32 %v4151, %v4225
        %v4227 = vpop.f32.mrb[0].mxu0
        %4228 = vdwg.mxu0
        %4229 = vmatprep.subr.mxu0 0.0
        %4230 = vmatpush1.msra.mxu0 %v3751
        %4231 = vmatprep.subr.mxu0 0.0
        %4232 = vmatpush1.msra.mxu0 %v3752
        %4233 = vmatprep.subr.mxu0 0.0
        %4234 = vmatpush1.msra.mxu0 %v3753
        %4235 = vmatprep.subr.mxu0 0.0
        %4236 = vmatpush1.msra.mxu0 %v3754
        %4237 = vmatprep.subr.mxu0 0.0
        %4238 = vmatpush1.msra.mxu0 %v3755
        %4239 = vmatprep.subr.mxu0 0.0
        %4240 = vmatpush1.msra.mxu0 %v3756
        %4241 = vmatprep.subr.mxu0 0.0
        %4242 = vmatpush1.msra.mxu0 %v3757
        %4243 = vmatprep.subr.mxu0 0.0
        %4244 = vmatpush1.msra.mxu0 %v3758
        %4245 = vmatprep.subr.mxu0 0.0
        %4246 = vmatpush1.msra.mxu0 %v3759
        %4247 = vmatprep.subr.mxu0 0.0
        %4248 = vmatpush1.msra.mxu0 %v3760
        %4249 = vmatprep.subr.mxu0 0.0
        %4250 = vmatpush1.msra.mxu0 %v3761
        %4251 = vmatprep.subr.mxu0 0.0
        %4252 = vmatpush1.msra.mxu0 %v3762
        %4253 = vmatprep.subr.mxu0 0.0
        %4254 = vmatpush1.msra.mxu0 %v3763
        %4255 = vmatprep.subr.mxu0 0.0
        %4256 = vmatpush1.msra.mxu0 %v3764
        %4257 = vmatprep.subr.mxu0 0.0
        %4258 = vmatpush1.msra.mxu0 %v3765
        %4259 = vmatprep.subr.mxu0 0.0
        %4260 = vmatpush1.msra.mxu0 %v3766
        %4261 = vmatprep.subr.mxu0 0.0
        %4262 = vmatpush1.msra.mxu0 %v3767
        %4263 = vmatprep.subr.mxu0 0.0
        %4264 = vmatpush1.msra.mxu0 %v3768
        %4265 = vmatprep.subr.mxu0 0.0
        %4266 = vmatpush1.msra.mxu0 %v3769
        %4267 = vmatprep.subr.mxu0 0.0
        %4268 = vmatpush1.msra.mxu0 %v3770
        %4269 = vmatprep.subr.mxu0 0.0
        %4270 = vmatpush1.msra.mxu0 %v3771
        %4271 = vmatprep.subr.mxu0 0.0
        %4272 = vmatpush1.msra.mxu0 %v3772
        %4273 = vmatprep.subr.mxu0 0.0
        %4274 = vmatpush1.msra.mxu0 %v3773
        %4275 = vmatprep.subr.mxu0 0.0
        %4276 = vmatpush1.msra.mxu0 %v3774
        %4277 = vmatprep.subr.mxu0 0.0
        %4278 = vmatpush1.msra.mxu0 %v3775
        %4279 = vmatprep.subr.mxu0 0.0
        %4280 = vmatpush1.msra.mxu0 %v3776
        %4281 = vmatprep.subr.mxu0 0.0
        %4282 = vmatpush1.msra.mxu0 %v3777
        %4283 = vmatprep.subr.mxu0 0.0
        %4284 = vmatpush1.msra.mxu0 %v3778
        %4285 = vmatprep.subr.mxu0 0.0
        %4286 = vmatpush1.msra.mxu0 %v3779
        %4287 = vmatprep.subr.mxu0 0.0
        %4288 = vmatpush1.msra.mxu0 %v3780
        %4289 = vmatprep.subr.mxu0 0.0
        %4290 = vmatpush1.msra.mxu0 %v3781
        %4291 = vmatprep.subr.mxu0 0.0
        %4292 = vmatpush1.msra.mxu0 %v3782
        %4293 = vmatprep.mubr.f32.mxu0 %v3570
        %4294 = vmatmul.mubr.f32.gmra.mrb[0].mxu0 %v3569
        %v4295 = vpop.f32.mrb[0].mxu0
        %v4296 = vadd.f32 %v4221, %v4295
        %v4297 = vpop.f32.mrb[0].mxu0
        %4298 = vmatprep.mubr.f32.mxu0 %v3586
        %4299 = vmatmul.mubr.f32.gmra.mrb[0].mxu0 %v3585
        %v4300 = vpop.f32.mrb[0].mxu0
        %v4301 = vadd.f32 %v4226, %v4300
        %v4302 = vpop.f32.mrb[0].mxu0
        %4303 = vdwg.mxu0
        %4304 = vmatprep.subr.mxu0 0.0
        %4305 = vmatpush1.msra.mxu0 %v3783
        %4306 = vmatprep.subr.mxu0 0.0
        %4307 = vmatpush1.msra.mxu0 %v3784
        %4308 = vmatprep.subr.mxu0 0.0
        %4309 = vmatpush1.msra.mxu0 %v3785
        %4310 = vmatprep.subr.mxu0 0.0
        %4311 = vmatpush1.msra.mxu0 %v3786
        %4312 = vmatprep.subr.mxu0 0.0
        %4313 = vmatpush1.msra.mxu0 %v3787
        %4314 = vmatprep.subr.mxu0 0.0
        %4315 = vmatpush1.msra.mxu0 %v3788
        %4316 = vmatprep.subr.mxu0 0.0
        %4317 = vmatpush1.msra.mxu0 %v3789
        %4318 = vmatprep.subr.mxu0 0.0
        %4319 = vmatpush1.msra.mxu0 %v3790
        %4320 = vmatprep.subr.mxu0 0.0
        %4321 = vmatpush1.msra.mxu0 %v3791
        %4322 = vmatprep.subr.mxu0 0.0
        %4323 = vmatpush1.msra.mxu0 %v3792
        %4324 = vmatprep.subr.mxu0 0.0
        %4325 = vmatpush1.msra.mxu0 %v3793
        %4326 = vmatprep.subr.mxu0 0.0
        %4327 = vmatpush1.msra.mxu0 %v3794
        %4328 = vmatprep.subr.mxu0 0.0
        %4329 = vmatpush1.msra.mxu0 %v3795
        %4330 = vmatprep.subr.mxu0 0.0
        %4331 = vmatpush1.msra.mxu0 %v3796
        %4332 = vmatprep.subr.mxu0 0.0
        %4333 = vmatpush1.msra.mxu0 %v3797
        %4334 = vmatprep.subr.mxu0 0.0
        %4335 = vmatpush1.msra.mxu0 %v3798
        %4336 = vmatprep.subr.mxu0 0.0
        %4337 = vmatpush1.msra.mxu0 %v3799
        %4338 = vmatprep.subr.mxu0 0.0
        %4339 = vmatpush1.msra.mxu0 %v3800
        %4340 = vmatprep.subr.mxu0 0.0
        %4341 = vmatpush1.msra.mxu0 %v3801
        %4342 = vmatprep.subr.mxu0 0.0
        %4343 = vmatpush1.msra.mxu0 %v3802
        %4344 = vmatprep.subr.mxu0 0.0
        %4345 = vmatpush1.msra.mxu0 %v3803
        %4346 = vmatprep.subr.mxu0 0.0
        %4347 = vmatpush1.msra.mxu0 %v3804
        %4348 = vmatprep.subr.mxu0 0.0
        %4349 = vmatpush1.msra.mxu0 %v3805
        %4350 = vmatprep.subr.mxu0 0.0
        %4351 = vmatpush1.msra.mxu0 %v3806
        %4352 = vmatprep.subr.mxu0 0.0
        %4353 = vmatpush1.msra.mxu0 %v3807
        %4354 = vmatprep.subr.mxu0 0.0
        %4355 = vmatpush1.msra.mxu0 %v3808
        %4356 = vmatprep.subr.mxu0 0.0
        %4357 = vmatpush1.msra.mxu0 %v3809
        %4358 = vmatprep.subr.mxu0 0.0
        %4359 = vmatpush1.msra.mxu0 %v3810
        %4360 = vmatprep.subr.mxu0 0.0
        %4361 = vmatpush1.msra.mxu0 %v3811
        %4362 = vmatprep.subr.mxu0 0.0
        %4363 = vmatpush1.msra.mxu0 %v3812
        %4364 = vmatprep.subr.mxu0 0.0
        %4365 = vmatpush1.msra.mxu0 %v3813
        %4366 = vmatprep.subr.mxu0 0.0
        %4367 = vmatpush1.msra.mxu0 %v3814
        %4368 = vmatprep.mubr.f32.mxu0 %v3572
        %4369 = vmatmul.mubr.f32.gmra.mrb[0].mxu0 %v3571
        %v4370 = vpop.f32.mrb[0].mxu0
        %v4371 = vadd.f32 %v4296, %v4370
        %v4372 = vpop.f32.mrb[0].mxu0
        %4373 = vmatprep.mubr.f32.mxu0 %v3588
        %4374 = vmatmul.mubr.f32.gmra.mrb[0].mxu0 %v3587
        %v4375 = vpop.f32.mrb[0].mxu0
        %v4376 = vadd.f32 %v4301, %v4375
        %v4377 = vpop.f32.mrb[0].mxu0
        %4378 = vdwg.mxu0
        %4379 = vmatprep.subr.mxu0 0.0
        %4380 = vmatpush1.msra.mxu0 %v3815
        %4381 = vmatprep.subr.mxu0 0.0
        %4382 = vmatpush1.msra.mxu0 %v3816
        %4383 = vmatprep.subr.mxu0 0.0
        %4384 = vmatpush1.msra.mxu0 %v3817
        %4385 = vmatprep.subr.mxu0 0.0
        %4386 = vmatpush1.msra.mxu0 %v3818
        %4387 = vmatprep.subr.mxu0 0.0
        %4388 = vmatpush1.msra.mxu0 %v3819
        %4389 = vmatprep.subr.mxu0 0.0
        %4390 = vmatpush1.msra.mxu0 %v3820
        %4391 = vmatprep.subr.mxu0 0.0
        %4392 = vmatpush1.msra.mxu0 %v3821
        %4393 = vmatprep.subr.mxu0 0.0
        %4394 = vmatpush1.msra.mxu0 %v3822
        %4395 = vmatprep.subr.mxu0 0.0
        %4396 = vmatpush1.msra.mxu0 %v3823
        %4397 = vmatprep.subr.mxu0 0.0
        %4398 = vmatpush1.msra.mxu0 %v3824
        %4399 = vmatprep.subr.mxu0 0.0
        %4400 = vmatpush1.msra.mxu0 %v3825
        %4401 = vmatprep.subr.mxu0 0.0
        %4402 = vmatpush1.msra.mxu0 %v3826
        %4403 = vmatprep.subr.mxu0 0.0
        %4404 = vmatpush1.msra.mxu0 %v3827
        %4405 = vmatprep.subr.mxu0 0.0
        %4406 = vmatpush1.msra.mxu0 %v3828
        %4407 = vmatprep.subr.mxu0 0.0
        %4408 = vmatpush1.msra.mxu0 %v3829
        %4409 = vmatprep.subr.mxu0 0.0
        %4410 = vmatpush1.msra.mxu0 %v3830
        %4411 = vmatprep.subr.mxu0 0.0
        %4412 = vmatpush1.msra.mxu0 %v3831
        %4413 = vmatprep.subr.mxu0 0.0
        %4414 = vmatpush1.msra.mxu0 %v3832
        %4415 = vmatprep.subr.mxu0 0.0
        %4416 = vmatpush1.msra.mxu0 %v3833
        %4417 = vmatprep.subr.mxu0 0.0
        %4418 = vmatpush1.msra.mxu0 %v3834
        %4419 = vmatprep.subr.mxu0 0.0
        %4420 = vmatpush1.msra.mxu0 %v3835
        %4421 = vmatprep.subr.mxu0 0.0
        %4422 = vmatpush1.msra.mxu0 %v3836
        %4423 = vmatprep.subr.mxu0 0.0
        %4424 = vmatpush1.msra.mxu0 %v3837
        %4425 = vmatprep.subr.mxu0 0.0
        %4426 = vmatpush1.msra.mxu0 %v3838
        %4427 = vmatprep.subr.mxu0 0.0
        %4428 = vmatpush1.msra.mxu0 %v3839
        %4429 = vmatprep.subr.mxu0 0.0
        %4430 = vmatpush1.msra.mxu0 %v3840
        %4431 = vmatprep.subr.mxu0 0.0
        %4432 = vmatpush1.msra.mxu0 %v3841
        %4433 = vmatprep.subr.mxu0 0.0
        %4434 = vmatpush1.msra.mxu0 %v3842
        %4435 = vmatprep.subr.mxu0 0.0
        %4436 = vmatpush1.msra.mxu0 %v3843
        %4437 = vmatprep.subr.mxu0 0.0
        %4438 = vmatpush1.msra.mxu0 %v3844
        %4439 = vmatprep.subr.mxu0 0.0
        %4440 = vmatpush1.msra.mxu0 %v3845
        %4441 = vmatprep.subr.mxu0 0.0
        %4442 = vmatpush1.msra.mxu0 %v3846
        %4443 = vmatprep.mubr.f32.mxu0 %v3574
        %4444 = vmatmul.mubr.f32.gmra.mrb[0].mxu0 %v3573
        %v4445 = vpop.f32.mrb[0].mxu0
        %v4446 = vadd.f32 %v4371, %v4445
        %v4447 = vpop.f32.mrb[0].mxu0
        %4448 = vmatprep.mubr.f32.mxu0 %v3590
        %4449 = vmatmul.mubr.f32.gmra.mrb[0].mxu0 %v3589
        %v4450 = vpop.f32.mrb[0].mxu0
        %v4451 = vadd.f32 %v4376, %v4450
        %v4452 = vpop.f32.mrb[0].mxu0
        %4453 = vdwg.mxu0
        %v4454 = vadd.f32 %v2787, %v4446
        %v4455 = vadd.f32 %v2788, %v4451
        %v4456 = vld [vmem:[%s992] sm:$0x1]
        %v4457 = vld [vmem:[%s995] sm:$0x1]
        %v4458 = vsel %vm1049, %v4454, 0.0
        %4459 = vadd.xlane.f32.xlu0 %v4458
        %v4460 = vpop.xlane.xlu0 %4459
        %v4461 = vsel %vm1049, %v4455, 0.0
        %4462 = vadd.xlane.f32.xlu0 %v4461
        %v4463 = vpop.xlane.xlu0 %4462
        %v4464 = vmul.f32 %v4460, %v2752
        %v4465 = vmul.f32 %v4463, %v2752
        %v4466 = vsub.f32 %v4454, %v4464
        %v4467 = vsub.f32 %v4455, %v4465
        %v4468 = vmul.f32 %v4466, %v4466
        %v4469 = vmul.f32 %v4467, %v4467
        %v4470 = vsel %vm1049, %v4468, 0.0
        %4471 = vadd.xlane.f32.xlu0 %v4470
        %v4472 = vpop.xlane.xlu0 %4471
        %v4473 = vsel %vm1049, %v4469, 0.0
        %4474 = vadd.xlane.f32.xlu0 %v4473
        %v4475 = vpop.xlane.xlu0 %4474
        %v4476 = vmul.f32 %v4472, %v2752
        %v4477 = vmul.f32 %v4475, %v2752
        %v4478 = vadd.f32 %v4476, 1e-05
        %v4479 = vadd.f32 %v4477, 1e-05
        %v4480 = vrsqrt.pop %v4478
        %v4481 = vrsqrt.pop %v4479
        %v4482 = vmul.f32 %v4466, %v4480
        %v4483 = vmul.f32 %v4467, %v4481
        %v4485 = vlaneseq
        %v4486 = vshrl.u32 %v4485, 7
        %v4487 = vsub.s32 0, %v4486
        %v4488 = vrot.slane %v4456, %v4487
        %v4490 = vmul.f32 %v4482, %v4488
        %v4491 = vmul.f32 %v4483, %v4488
        %v4493 = vlaneseq
        %v4494 = vshrl.u32 %v4493, 7
        %v4495 = vsub.s32 0, %v4494
        %v4496 = vrot.slane %v4457, %v4495
        %v4498 = vadd.f32 %v4490, %v4496
        %v4499 = vadd.f32 %v4491, %v4496
        %4500 = vst.msk [vmem:[#allocation2] sm:$0xff] %vm1049, %v4498
        %4501 = vst.msk [vmem:[#allocation2 + $0x8] sm:$0xff] %vm1049, %v4499
        %p4502 = scmp.eq.s32.totalorder %s39, 1
        // Predicated region
        $region125: #{ts_transformer_forward.1} parent=119 // pred_check
          %p4503 = pneg %p4502
        $region126: #{ts_transformer_forward.1} parent=119 // pred_check_branch
          %4505 = sbr.rel (%p4503) target = $region128
        $region127: #{ts_transformer_forward.1} parent=119 // pred_region
          %v4506 = vld [vmem:[%s4] sm:$0x1]
          %v4508 = vlaneseq
          %v4509 = vshrl.u32 %v4508, 7
          %v4510 = vsub.s32 0, %v4509
          %v4511 = vrot.slane %v4506, %v4510
          %v4513 = vmul.f32 %v4498, %v4511
          %v4514 = vmul.f32 %v4499, %v4511
          %v4515 = vsel %vm1049, %v4513, 0.0
          %4516 = vadd.xlane.f32.xlu0 %v4515
          %v4517 = vpop.xlane.xlu0 %4516
          %v4518 = vsel %vm1049, %v4514, 0.0
          %4519 = vadd.xlane.f32.xlu0 %v4518
          %v4520 = vpop.xlane.xlu0 %4519
          %v4521 = vld [vmem:[#allocation3] sm:$0x1]
          %v4523 = vlaneseq
          %v4524 = vshrl.u32 %v4523, 7
          %v4525 = vsub.s32 0, %v4524
          %v4526 = vrot.slane %v4521, %v4525
          %v4528 = vadd.f32 %v4517, %v4526
          %v4529 = vadd.f32 %v4520, %v4526
          %v4530 = vld [vmem:[%s6] sm:$0xff]
          %v4531 = vld [vmem:[%s6 + $0x8] sm:$0xff]
          %4533 = vset.pattern.permute.xlu0 0
          %4534 = vperm.xlu0 %4533, %v4528
          %v4535 = vpop.permute.xlu0 %4534
          %4538 = vset.pattern.permute.xlu0 0
          %4539 = vperm.xlu0 %4538, %v4529
          %v4540 = vpop.permute.xlu0 %4539
          %v4542 = vmul.f32 %v4535, %v4530
          %v4543 = vmul.f32 %v4540, %v4531
          %v4544 = vld [vmem:[%s7] sm:$0x3]
          %v4545 = vld [vmem:[%s8] sm:$0x1]
          %v4547 = vlaneseq
          %v4548 = vshrl.u32 %v4547, 7
          %v4549 = vsub.s32 0, %v4548
          %v4550 = vrot.slane %v4545, %v4549
          %v4553 = vsel %vm2644, %v4544, 0
          %4555 = vmatprep.subr.mxu0 0.0
          %4556 = vmatpush1.msra.mxu0 %v4542
          %4557 = vmatprep.subr.mxu0 0.0
          %4558 = vmatpush1.msra.mxu0 %v4543
          %4559 = vmatprep.subr.mxu0 0.0
          %4560 = vmatpush1.msra.mxu0 0.0
          %4561 = vmatprep.subr.mxu0 0.0
          %4562 = vmatpush1.msra.mxu0 0.0
          %4563 = vmatprep.subr.mxu0 0.0
          %4564 = vmatpush1.msra.mxu0 0.0
          %4565 = vmatprep.subr.mxu0 0.0
          %4566 = vmatpush1.msra.mxu0 0.0
          %4567 = vmatprep.subr.mxu0 0.0
          %4568 = vmatpush1.msra.mxu0 0.0
          %4569 = vmatprep.subr.mxu0 0.0
          %4570 = vmatpush1.msra.mxu0 0.0
          %4571 = vmatprep.subr.mxu0 0.0
          %4572 = vmatpush1.msra.mxu0 0.0
          %4573 = vmatprep.subr.mxu0 0.0
          %4574 = vmatpush1.msra.mxu0 0.0
          %4575 = vmatprep.subr.mxu0 0.0
          %4576 = vmatpush1.msra.mxu0 0.0
          %4577 = vmatprep.subr.mxu0 0.0
          %4578 = vmatpush1.msra.mxu0 0.0
          %4579 = vmatprep.subr.mxu0 0.0
          %4580 = vmatpush1.msra.mxu0 0.0
          %4581 = vmatprep.subr.mxu0 0.0
          %4582 = vmatpush1.msra.mxu0 0.0
          %4583 = vmatprep.subr.mxu0 0.0
          %4584 = vmatpush1.msra.mxu0 0.0
          %4585 = vmatprep.subr.mxu0 0.0
          %4586 = vmatpush1.msra.mxu0 0.0
          %4587 = vmatprep.subr.mxu0 0.0
          %4588 = vmatpush1.msra.mxu0 0.0
          %4589 = vmatprep.subr.mxu0 0.0
          %4590 = vmatpush1.msra.mxu0 0.0
          %4591 = vmatprep.subr.mxu0 0.0
          %4592 = vmatpush1.msra.mxu0 0.0
          %4593 = vmatprep.subr.mxu0 0.0
          %4594 = vmatpush1.msra.mxu0 0.0
          %4595 = vmatprep.subr.mxu0 0.0
          %4596 = vmatpush1.msra.mxu0 0.0
          %4597 = vmatprep.subr.mxu0 0.0
          %4598 = vmatpush1.msra.mxu0 0.0
          %4599 = vmatprep.subr.mxu0 0.0
          %4600 = vmatpush1.msra.mxu0 0.0
          %4601 = vmatprep.subr.mxu0 0.0
          %4602 = vmatpush1.msra.mxu0 0.0
          %4603 = vmatprep.subr.mxu0 0.0
          %4604 = vmatpush1.msra.mxu0 0.0
          %4605 = vmatprep.subr.mxu0 0.0
          %4606 = vmatpush1.msra.mxu0 0.0
          %4607 = vmatprep.subr.mxu0 0.0
          %4608 = vmatpush1.msra.mxu0 0.0
          %4609 = vmatprep.subr.mxu0 0.0
          %4610 = vmatpush1.msra.mxu0 0.0
          %4611 = vmatprep.subr.mxu0 0.0
          %4612 = vmatpush1.msra.mxu0 0.0
          %4613 = vmatprep.subr.mxu0 0.0
          %4614 = vmatpush1.msra.mxu0 0.0
          %4615 = vmatprep.subr.mxu0 0.0
          %4616 = vmatpush1.msra.mxu0 0.0
          %4617 = vmatprep.subr.mxu0 0.0
          %4618 = vmatpush1.msra.mxu0 0.0
          %4619 = vmatprep.mubr.f32.mxu0 0.0
          %4620 = vmatmul.mubr.f32.gmra.mrb[0].mxu0 %v4553
          %v4621 = vpop.f32.mrb[0].mxu0
          %v4622 = vadd.f32 %v4550, %v4621
          %v4623 = vpop.f32.mrb[0].mxu0
          %4624 = vdwg.mxu0
          %vm4625 = vcmask 25600
          %4626 = vst.msk [vmem:[#allocation4] sm:$0x3] %vm4625, %v4622
        $region128: #{ts_transformer_forward.1} parent=119 // pred_fallthru
          _
        // Predicated region
        $region129: #{ts_transformer_forward.1} parent=119 // pred_check
          %p4627 = pneg %p657
        $region130: #{ts_transformer_forward.1} parent=119 // pred_check_branch
          %4629 = sbr.rel (%p4627) target = $region132
        $region131: #{ts_transformer_forward.1} parent=119 // pred_region
          %s4631 = ssub.s32 32, 32
          %4632 = vsyncadd [#allocation5], %s4631
          %s4634 = sshll.u32 [#allocation4], 4
          %s4635 = int_to_ptr.vmem [resolvable:$true] %s4634
          %4637 = dma.vmem_to_hbm [thread:$0]  %s4635, 32, %s25, [#allocation5]
        $region132: #{ts_transformer_forward.1} parent=119 // pred_fallthru
          _
        // Predicated region
        $region133: #{ts_transformer_forward.1} parent=119 // pred_check
          %p4638 = pneg %p657
        $region134: #{ts_transformer_forward.1} parent=119 // pred_check_branch
          %4640 = sbr.rel (%p4638) target = $region136
        $region135: #{ts_transformer_forward.1} parent=119 // pred_region
          %4641 = dma.done [#allocation5], 32
        $region136: #{ts_transformer_forward.1} parent=119 // pred_fallthru
          _
      $region120: #{ts_transformer_forward.1} parent=5 // pred_fallthru
        _
      %p4642 = scmp.le.s32.totalorder 2, %s34
      // Predicated region
      $region137: #{ts_transformer_forward.1} parent=5 // pred_check
        %p4643 = pneg %p4642
      $region138: #{ts_transformer_forward.1} parent=5 // pred_check_branch
        %4645 = sbr.rel (%p4643) target = $region140
      $region139: #{ts_transformer_forward.1} parent=5 // pred_region
        %s4646 = ssub.s32 %s34, 2
      $region140: #{ts_transformer_forward.1} parent=5 // pred_fallthru
        _
    $region6: #{ts_transformer_forward.1} parent=1 // loop_footer
      %s38 = sadd.s32 1, %s34
    $region7: #{ts_transformer_forward.1} parent=1 // loop_footer_branch
      %33 = sbr.rel target = $region3
    $region8: #{ts_transformer_forward.1} parent=1 // loop_exit
      _
    %4647 = vsyncpa [#allocation5], 1
    %s4648 = scalar_lea.sflag [#allocation5], 1
    %4649 = vsyncpa %s4648, 1

</llo_original>
